<compile_context>
chip_gen: v6e
topology: v6e:2x2x1
jax: 0.10.0
libtpu: 0.0.40
codegen_flags: <defaults>
</compile_context>

<pallas_src>
import functools

import jax
import jax.numpy as jnp
from jax import lax
from jax.experimental import pallas as pl
from jax.experimental.pallas import tpu as pltpu


# ----------------------------- Pallas kernel --------------------------------
def bilstm_tagger_kernel(
    x_ref,       # (T, BB, E)    embedded inputs, time-major, one batch block (f32)
    wih_f_ref,   # (E, 4*HP)     forward  input->gates, lane-aligned gates (bf16)
    whh_f_ref,   # (HP, 4*HP)    forward  hidden->gates (bf16)
    b_f_ref,     # (1, 4*HP)     forward  combined bias b_ih + b_hh (f32)
    wih_b_ref,   # (E, 4*HP)     backward input->gates (bf16)
    whh_b_ref,   # (HP, 4*HP)    backward hidden->gates (bf16)
    b_b_ref,     # (1, 4*HP)     backward combined bias (f32)
    wout_ref,    # (2*HP, NT)    hidden2tag weight: fwd rows [:HP], bwd rows [HP:] (bf16)
    bout_ref,    # (1, NT)       hidden2tag bias (f32)
    out_ref,     # (T, BB, NT)   logits (f32, lane-dense NT)
    # scratch
    gx_f_ref,    # (T, BB, 4*HP) hoisted x@Wih_f + b_f   (bf16)
    gx_b_ref,    # (T, BB, 4*HP) hoisted x@Wih_b + b_b   (bf16)
    hseq_ref,    # (T, BB, 2*HP) hidden states: fwd [..., :HP], bwd [..., HP:] (f32)
    *,
    act_dtype,   # dtype for sigmoid/tanh (bf16 on v6e/v7x, f32 on v5e)
    unroll,      # bounded unroll factor for the recurrence loop
):
    T, BB, E = x_ref.shape
    HP = whh_f_ref.shape[0]
    f32, bf16 = jnp.float32, jnp.bfloat16

    # ---- 1) hoisted input projections: one large MXU matmul per direction ----
    # Bias folded in; only the irreducible h@Whh recurrence stays in the loop.
    # (T, BB, E) -> (T*BB, E) is layout-preserving for f32 since BB % 8 == 0.
    x2 = x_ref[...].reshape(T * BB, E).astype(bf16)
    gx_f_ref[...] = (
        jnp.dot(x2, wih_f_ref[...], preferred_element_type=f32) + b_f_ref[...]
    ).reshape(T, BB, 4 * HP).astype(gx_f_ref.dtype)
    gx_b_ref[...] = (
        jnp.dot(x2, wih_b_ref[...], preferred_element_type=f32) + b_b_ref[...]
    ).reshape(T, BB, 4 * HP).astype(gx_b_ref.dtype)

    # Recurrent weights loaded once (already bf16 -> no per-block cast work).
    whh_f = whh_f_ref[...]
    whh_b = whh_b_ref[...]

    def cell(gx, h, c, whh):
        # gx already holds x@Wih + b_ih + b_hh; PyTorch gate order i, f, g, o.
        # Gates live in HP-lane-aligned regions -> slices are free sub-views.
        g = gx.astype(f32) + jnp.dot(h.astype(bf16), whh, preferred_element_type=f32)
        ga = g.astype(act_dtype)
        i = jax.nn.sigmoid(ga[:, 0 * HP:1 * HP]).astype(f32)
        f = jax.nn.sigmoid(ga[:, 1 * HP:2 * HP]).astype(f32)
        gg = jnp.tanh(ga[:, 2 * HP:3 * HP]).astype(f32)
        o = jax.nn.sigmoid(ga[:, 3 * HP:4 * HP]).astype(f32)
        c_new = f * c + i * gg                                   # state update in f32
        h_new = o * jnp.tanh(c_new.astype(act_dtype)).astype(f32)
        return h_new, c_new

    # ---- 2) fused fwd+bwd recurrence (two independent dependency chains) ----
    def body(t, carry):
        h_f, c_f, h_b, c_b = carry
        s = T - 1 - t
        h_f, c_f = cell(gx_f_ref[t], h_f, c_f, whh_f)
        hseq_ref[t, :, 0:HP] = h_f
        h_b, c_b = cell(gx_b_ref[s], h_b, c_b, whh_b)
        hseq_ref[s, :, HP:2 * HP] = h_b
        return (h_f, c_f, h_b, c_b)

    z = jnp.zeros((BB, HP), f32)
    lax.fori_loop(0, T, body, (z, z, z, z), unroll=unroll)

    # ---- 3) hidden2tag: one MXU dot over the shared (T*BB, 2*HP) scratch ----
    h2 = hseq_ref[...].reshape(T * BB, 2 * HP).astype(bf16)
    logits = jnp.dot(h2, wout_ref[...], preferred_element_type=f32) + bout_ref[...]
    out_ref[...] = logits.reshape(T, BB, -1)     # lane-dense (NT % 128 == 0) store


# ------------------------------- wrapper -------------------------------------
def _round_up(x, m):
    return ((x + m - 1) // m) * m


def lstm_sequence_forward(sentence, params, *, b_block=128):
    """sentence: (B, T) int32 token ids. Returns (B, T, n_tags) float32 logits."""
    emb = params["embedding"]                        # (V, E)
    # Gather with transposed indices -> x is produced time-major directly
    # (no extra HBM transpose pass over the (B, T, E) activations).
    x = emb[sentence.T]                              # (T, B, E) f32
    T, B, E = x.shape
    H = params["whh_f"].shape[0]
    n_tags = params["wout"].shape[1]

    HP = _round_up(H, 128)        # lane-aligned per-gate width
    NT = _round_up(n_tags, 128)   # lane-dense tag width (unmasked vst)

    # Batch block: 128 rows for good MXU row utilization on the per-step
    # (BB, HP) @ (HP, 4*HP) matmul; capped to the 8-aligned batch so tiny
    # batches are not over-padded.  (On v7x pick b_block so B_pad//b_block >= 2
    # and both TensorCores get batch blocks.)
    b_block = max(8, min(_round_up(b_block, 8), _round_up(B, 8)))
    B_pad = _round_up(B, b_block)
    if B_pad != B:
        x = jnp.pad(x, ((0, 0), (0, B_pad - B), (0, 0)))

    bf16 = jnp.bfloat16

    # ---- weight prep: lane-aligned gate layout + bf16 pre-cast (would be done
    # once offline in production; cheap XLA ops here) ----
    def pad_gates(w):
        pads = [(0, 0)] * (w.ndim - 1) + [(0, HP - H)]
        return jnp.concatenate(
            [jnp.pad(w[..., k * H:(k + 1) * H], pads) for k in range(4)], axis=-1)

    wih_f = pad_gates(params["wih_f"]).astype(bf16)                                   # (E, 4*HP)
    wih_b = pad_gates(params["wih_b"]).astype(bf16)
    whh_f = pad_gates(jnp.pad(params["whh_f"], ((0, HP - H), (0, 0)))).astype(bf16)   # (HP, 4*HP)
    whh_b = pad_gates(jnp.pad(params["whh_b"], ((0, HP - H), (0, 0)))).astype(bf16)
    b_f = pad_gates(params["b_f"])                                                    # (1, 4*HP) f32
    b_b = pad_gates(params["b_b"])

    wout = jnp.zeros((2 * HP, NT), jnp.float32)
    wout = wout.at[:H, :n_tags].set(params["wout"][:H])
    wout = wout.at[HP:HP + H, :n_tags].set(params["wout"][H:])
    wout = wout.astype(bf16)                                                          # (2*HP, NT)
    bout = jnp.pad(params["bout"], ((0, 0), (0, NT - n_tags)))                        # (1, NT) f32

    # Gate transcendentals in bf16 on v6e/v7x (bf16 EUP path); f32 elsewhere.
    kind = jax.devices()[0].device_kind.lower()
    act_dtype = bf16 if any(tag in kind for tag in ("v6", "v7", "7x")) else jnp.float32

    # Explicit VMEM budget: double-buffered in/out blocks + weights + scratch.
    est = (
        2 * T * b_block * (E + NT) * 4                      # x / out blocks (f32, x2 buf)
        + 2 * 2 * (E * 4 * HP + HP * 4 * HP + 2 * HP * NT)  # bf16 weights (x2 buf)
        + 2 * 4 * (8 * HP + NT)                             # f32 biases (x2 buf)
        + 2 * T * b_block * 4 * HP * 2                      # gx_f + gx_b (bf16)
        + T * b_block * 2 * HP * 4                          # h_seq (f32)
    )
    vmem_limit = int(min(64 * 2**20, max(32 * 2**20, est + (4 << 20))))

    grid = (B_pad // b_block,)

    def batch_spec(feat):
        return pl.BlockSpec((T, b_block, feat), lambda b: (0, b, 0))

    def fixed(shape):
        # Constant block index: Pallas DMAs these once and re-uses the buffer.
        return pl.BlockSpec(shape, lambda b: (0, 0))

    kernel = functools.partial(
        bilstm_tagger_kernel, act_dtype=act_dtype, unroll=min(int(T), 8))

    out_tbn = pl.pallas_call(
        kernel,
        out_shape=jax.ShapeDtypeStruct((T, B_pad, NT), jnp.float32),
        grid=grid,
        in_specs=[
            batch_spec(E),
            fixed((E, 4 * HP)), fixed((HP, 4 * HP)), fixed((1, 4 * HP)),
            fixed((E, 4 * HP)), fixed((HP, 4 * HP)), fixed((1, 4 * HP)),
            fixed((2 * HP, NT)), fixed((1, NT)),
        ],
        out_specs=batch_spec(NT),
        scratch_shapes=[
            pltpu.VMEM((T, b_block, 4 * HP), jnp.bfloat16),   # gx_f
            pltpu.VMEM((T, b_block, 4 * HP), jnp.bfloat16),   # gx_b
            pltpu.VMEM((T, b_block, 2 * HP), jnp.float32),    # h_seq (fwd | bwd)
        ],
        compiler_params=pltpu.CompilerParams(
            dimension_semantics=("parallel",),
            vmem_limit_bytes=vmem_limit,
        ),
    )(x, wih_f, whh_f, b_f, wih_b, whh_b, b_b, wout, bout)

    # Slice off batch/tag padding *before* the final transpose so XLA only moves
    # the real (T, B, n_tags) logits, never the NT=128-padded slab.
    return jnp.transpose(out_tbn[:, :B, :n_tags], (1, 0, 2))


# --------------------------- pure-JAX reference -------------------------------
def lstm_sequence_ref(sentence, params):
    emb = params["embedding"]
    x = jnp.transpose(emb[sentence], (1, 0, 2))    # (T, B, E)
    H = params["whh_f"].shape[0]

    def run_dir(xs, wih, whh, b):
        B = xs.shape[1]

        def step(carry, x_t):
            h, c = carry
            g = x_t @ wih + h @ whh + b
            i = jax.nn.sigmoid(g[:, 0 * H:1 * H])
            f = jax.nn.sigmoid(g[:, 1 * H:2 * H])
            gg = jnp.tanh(g[:, 2 * H:3 * H])
            o = jax.nn.sigmoid(g[:, 3 * H:4 * H])
            c_new = f * c + i * gg
            h_new = o * jnp.tanh(c_new)
            return (h_new, c_new), h_new

        init = (jnp.zeros((B, H), jnp.float32), jnp.zeros((B, H), jnp.float32))
        _, hs = lax.scan(step, init, xs)
        return hs

    hf = run_dir(x, params["wih_f"], params["whh_f"], params["b_f"])
    hb = run_dir(x[::-1], params["wih_b"], params["whh_b"], params["b_b"])[::-1]
    h_cat = jnp.concatenate([hf, hb], axis=-1)
    out = h_cat @ params["wout"] + params["bout"]
    return jnp.transpose(out, (1, 0, 2))


# --------------------------------- main ---------------------------------------
if __name__ == "__main__":
    # small shapes consistent with the module's __init__
    V, E, H, NTAGS = 50, 32, 32, 8     # vocab, emb dim, hidden dim, tagset size
    B, T = 2, 8                        # batch, sequence length

    key = jax.random.PRNGKey(0)
    ks = jax.random.split(key, 12)
    s = 1.0 / jnp.sqrt(H)

    def unif(k, shape, scale):
        return jax.random.uniform(k, shape, jnp.float32, -scale, scale)

    params = {
        "embedding": jax.random.normal(ks[0], (V, E), jnp.float32),
        # forward direction (weights stored pre-transposed: (in, 4H))
        "wih_f": unif(ks[1], (E, 4 * H), s),
        "whh_f": unif(ks[2], (H, 4 * H), s),
        "b_f":   unif(ks[3], (1, 4 * H), s),   # b_ih + b_hh combined
        # backward direction
        "wih_b": unif(ks[4], (E, 4 * H), s),
        "whh_b": unif(ks[5], (H, 4 * H), s),
        "b_b":   unif(ks[6], (1, 4 * H), s),
        # hidden2tag
        "wout":  unif(ks[7], (2 * H, NTAGS), 1.0 / jnp.sqrt(2 * H)),
        "bout":  unif(ks[8], (1, NTAGS), 1.0 / jnp.sqrt(2 * H)),
    }

    sentence = jax.random.randint(ks[9], (B, T), 0, V, dtype=jnp.int32)

    out = jax.block_until_ready(lstm_sequence_forward(sentence, params))
    ref = jax.block_until_ready(lstm_sequence_ref(sentence, params))

    assert out.shape == (B, T, NTAGS)
    # bf16 MXU operands (+ bf16 gate transcendentals on v6e/v7x) vs pure-f32
    # reference => modest tolerance.
    assert jnp.allclose(out, ref, rtol=5e-2, atol=5e-2)
    print("KERNEL_OK")
</pallas_src>

<mosaic_0001>
module attributes {stable_mosaic.version = 11 : i64} {
  func.func @bilstm_tagger_kernel(%arg0: i32, %arg1: memref<8x8x32xf32, #tpu.memory_space<vmem>>, %arg2: memref<32x512xbf16, #tpu.memory_space<vmem>>, %arg3: memref<128x512xbf16, #tpu.memory_space<vmem>>, %arg4: memref<1x512xf32, #tpu.memory_space<vmem>>, %arg5: memref<32x512xbf16, #tpu.memory_space<vmem>>, %arg6: memref<128x512xbf16, #tpu.memory_space<vmem>>, %arg7: memref<1x512xf32, #tpu.memory_space<vmem>>, %arg8: memref<256x128xbf16, #tpu.memory_space<vmem>>, %arg9: memref<1x128xf32, #tpu.memory_space<vmem>>, %arg10: memref<8x8x128xf32, #tpu.memory_space<vmem>>, %arg11: memref<8x8x512xbf16, #tpu.memory_space<vmem>>, %arg12: memref<8x8x512xbf16, #tpu.memory_space<vmem>>, %arg13: memref<8x8x256xf32, #tpu.memory_space<vmem>>) attributes {dimension_semantics = [#tpu.dimension_semantics<parallel>], iteration_bounds = array<i64: 1>, scalar_prefetch = 0 : i64, scratch_operands = 3 : i64, tpu.core_type = #tpu.core_type<tc>, window_params = [{transform_indices = @transform_0, window_bounds = array<i64: 8, 8, 32>}, {pipeline_mode = #tpu.pipeline_mode<synchronous>, transform_indices = @transform_1, window_bounds = array<i64: 32, 512>}, {pipeline_mode = #tpu.pipeline_mode<synchronous>, transform_indices = @transform_2, window_bounds = array<i64: 128, 512>}, {pipeline_mode = #tpu.pipeline_mode<synchronous>, transform_indices = @transform_3, window_bounds = array<i64: 1, 512>}, {pipeline_mode = #tpu.pipeline_mode<synchronous>, transform_indices = @transform_4, window_bounds = array<i64: 32, 512>}, {pipeline_mode = #tpu.pipeline_mode<synchronous>, transform_indices = @transform_5, window_bounds = array<i64: 128, 512>}, {pipeline_mode = #tpu.pipeline_mode<synchronous>, transform_indices = @transform_6, window_bounds = array<i64: 1, 512>}, {pipeline_mode = #tpu.pipeline_mode<synchronous>, transform_indices = @transform_7, window_bounds = array<i64: 256, 128>}, {pipeline_mode = #tpu.pipeline_mode<synchronous>, transform_indices = @transform_8, window_bounds = array<i64: 1, 128>}, {transform_indices = @transform_9, window_bounds = array<i64: 8, 8, 128>}]} {
    %c0 = arith.constant 0 : index
    %c0_0 = arith.constant 0 : index
    %c0_1 = arith.constant 0 : index
    %0 = vector.load %arg1[%c0, %c0_0, %c0_1] : memref<8x8x32xf32, #tpu.memory_space<vmem>>, vector<8x8x32xf32>
    %1 = vector.shape_cast %0 : vector<8x8x32xf32> to vector<64x32xf32>
    %2 = arith.truncf %1 : vector<64x32xf32> to vector<64x32xbf16>
    %c0_2 = arith.constant 0 : index
    %c0_3 = arith.constant 0 : index
    %3 = vector.load %arg2[%c0_2, %c0_3] : memref<32x512xbf16, #tpu.memory_space<vmem>>, vector<32x512xbf16>
    %cst = arith.constant dense<0.000000e+00> : vector<64x512xf32>
    %4 = tpu.matmul %2, %3, %cst {dimension_numbers = #tpu.dot_dimension_numbers<[1], [0], [0], [1], [0, 0, 1, 1], [], []>} : vector<64x32xbf16>, vector<32x512xbf16>, vector<64x512xf32> -> vector<64x512xf32>
    %c0_4 = arith.constant 0 : index
    %c0_5 = arith.constant 0 : index
    %5 = vector.load %arg4[%c0_4, %c0_5] : memref<1x512xf32, #tpu.memory_space<vmem>>, vector<1x512xf32>
    %6 = vector.broadcast %5 : vector<1x512xf32> to vector<64x512xf32>
    %7 = arith.addf %4, %6 : vector<64x512xf32>
    %8 = vector.shape_cast %7 : vector<64x512xf32> to vector<8x8x512xf32>
    %9 = arith.truncf %8 : vector<8x8x512xf32> to vector<8x8x512xbf16>
    %c0_6 = arith.constant 0 : index
    %c0_7 = arith.constant 0 : index
    %c0_8 = arith.constant 0 : index
    %10 = vector.load %arg11[%c0_6, %c0_7, %c0_8] : memref<8x8x512xbf16, #tpu.memory_space<vmem>>, vector<8x8x512xbf16>
    tpu.vector_store %arg11[%c0_6, %c0_7, %c0_8], %9 {strides = array<i32>} : memref<8x8x512xbf16, #tpu.memory_space<vmem>>, vector<8x8x512xbf16>,
    %c0_9 = arith.constant 0 : index
    %c0_10 = arith.constant 0 : index
    %11 = vector.load %arg5[%c0_9, %c0_10] : memref<32x512xbf16, #tpu.memory_space<vmem>>, vector<32x512xbf16>
    %cst_11 = arith.constant dense<0.000000e+00> : vector<64x512xf32>
    %12 = tpu.matmul %2, %11, %cst_11 {dimension_numbers = #tpu.dot_dimension_numbers<[1], [0], [0], [1], [0, 0, 1, 1], [], []>} : vector<64x32xbf16>, vector<32x512xbf16>, vector<64x512xf32> -> vector<64x512xf32>
    %c0_12 = arith.constant 0 : index
    %c0_13 = arith.constant 0 : index
    %13 = vector.load %arg7[%c0_12, %c0_13] : memref<1x512xf32, #tpu.memory_space<vmem>>, vector<1x512xf32>
    %14 = vector.broadcast %13 : vector<1x512xf32> to vector<64x512xf32>
    %15 = arith.addf %12, %14 : vector<64x512xf32>
    %16 = vector.shape_cast %15 : vector<64x512xf32> to vector<8x8x512xf32>
    %17 = arith.truncf %16 : vector<8x8x512xf32> to vector<8x8x512xbf16>
    %c0_14 = arith.constant 0 : index
    %c0_15 = arith.constant 0 : index
    %c0_16 = arith.constant 0 : index
    %18 = vector.load %arg12[%c0_14, %c0_15, %c0_16] : memref<8x8x512xbf16, #tpu.memory_space<vmem>>, vector<8x8x512xbf16>
    tpu.vector_store %arg12[%c0_14, %c0_15, %c0_16], %17 {strides = array<i32>} : memref<8x8x512xbf16, #tpu.memory_space<vmem>>, vector<8x8x512xbf16>,
    %c0_17 = arith.constant 0 : index
    %c0_18 = arith.constant 0 : index
    %19 = vector.load %arg3[%c0_17, %c0_18] : memref<128x512xbf16, #tpu.memory_space<vmem>>, vector<128x512xbf16>
    %c0_19 = arith.constant 0 : index
    %c0_20 = arith.constant 0 : index
    %20 = vector.load %arg6[%c0_19, %c0_20] : memref<128x512xbf16, #tpu.memory_space<vmem>>, vector<128x512xbf16>
    %cst_21 = arith.constant 0.000000e+00 : f32
    %21 = vector.broadcast %cst_21 : f32 to vector<8x128xf32>
    %c0_i32 = arith.constant 0 : i32
    %c7_i32 = arith.constant 7 : i32
    %22 = arith.subi %c7_i32, %c0_i32 : i32
    %23 = arith.index_cast %c0_i32 : i32 to index
    %c0_22 = arith.constant 0 : index
    %c0_23 = arith.constant 0 : index
    %24 = vector.load %arg11[%23, %c0_22, %c0_23] : memref<8x8x512xbf16, #tpu.memory_space<vmem>>, vector<1x8x512xbf16>
    %25 = vector.shape_cast %24 : vector<1x8x512xbf16> to vector<8x512xbf16>
    %26 = arith.extf %25 : vector<8x512xbf16> to vector<8x512xf32>
    %27 = arith.truncf %21 : vector<8x128xf32> to vector<8x128xbf16>
    %cst_24 = arith.constant dense<0.000000e+00> : vector<8x512xf32>
    %28 = tpu.matmul %27, %19, %cst_24 {dimension_numbers = #tpu.dot_dimension_numbers<[1], [0], [0], [1], [0, 0, 1, 1], [], []>} : vector<8x128xbf16>, vector<128x512xbf16>, vector<8x512xf32> -> vector<8x512xf32>
    %29 = arith.addf %26, %28 : vector<8x512xf32>
    %30 = vector.extract_strided_slice %29 {offsets = [0, 0], sizes = [8, 128], strides = [1, 1]} : vector<8x512xf32> to vector<8x128xf32>
    %31 = arith.negf %30 : vector<8x128xf32>
    %32 = math.exp %31 : vector<8x128xf32>
    %cst_25 = arith.constant 1.000000e+00 : f32
    %33 = vector.broadcast %cst_25 : f32 to vector<8x128xf32>
    %34 = arith.addf %33, %32 : vector<8x128xf32>
    %35 = arith.divf %33, %34 : vector<8x128xf32>
    %36 = vector.extract_strided_slice %29 {offsets = [0, 128], sizes = [8, 128], strides = [1, 1]} : vector<8x512xf32> to vector<8x128xf32>
    %37 = arith.negf %36 : vector<8x128xf32>
    %38 = math.exp %37 : vector<8x128xf32>
    %cst_26 = arith.constant 1.000000e+00 : f32
    %39 = vector.broadcast %cst_26 : f32 to vector<8x128xf32>
    %40 = arith.addf %39, %38 : vector<8x128xf32>
    %41 = arith.divf %39, %40 : vector<8x128xf32>
    %42 = vector.extract_strided_slice %29 {offsets = [0, 256], sizes = [8, 128], strides = [1, 1]} : vector<8x512xf32> to vector<8x128xf32>
    %43 = math.tanh %42 : vector<8x128xf32>
    %44 = vector.extract_strided_slice %29 {offsets = [0, 384], sizes = [8, 128], strides = [1, 1]} : vector<8x512xf32> to vector<8x128xf32>
    %45 = arith.negf %44 : vector<8x128xf32>
    %46 = math.exp %45 : vector<8x128xf32>
    %cst_27 = arith.constant 1.000000e+00 : f32
    %47 = vector.broadcast %cst_27 : f32 to vector<8x128xf32>
    %48 = arith.addf %47, %46 : vector<8x128xf32>
    %49 = arith.divf %47, %48 : vector<8x128xf32>
    %50 = arith.mulf %41, %21 : vector<8x128xf32>
    %51 = arith.mulf %35, %43 : vector<8x128xf32>
    %52 = arith.addf %50, %51 : vector<8x128xf32>
    %53 = math.tanh %52 : vector<8x128xf32>
    %54 = arith.mulf %49, %53 : vector<8x128xf32>
    %55 = arith.index_cast %c0_i32 : i32 to index
    %c0_28 = arith.constant 0 : index
    %c0_29 = arith.constant 0 : index
    %56 = vector.load %arg13[%55, %c0_28, %c0_29] : memref<8x8x256xf32, #tpu.memory_space<vmem>>, vector<1x8x128xf32>
    %57 = vector.shape_cast %56 : vector<1x8x128xf32> to vector<8x128xf32>
    %58 = vector.shape_cast %54 : vector<8x128xf32> to vector<1x8x128xf32>
    tpu.vector_store %arg13[%55, %c0_28, %c0_29], %58 {strides = array<i32>} : memref<8x8x256xf32, #tpu.memory_space<vmem>>, vector<1x8x128xf32>,
    %59 = arith.index_cast %22 : i32 to index
    %c0_30 = arith.constant 0 : index
    %c0_31 = arith.constant 0 : index
    %60 = vector.load %arg12[%59, %c0_30, %c0_31] : memref<8x8x512xbf16, #tpu.memory_space<vmem>>, vector<1x8x512xbf16>
    %61 = vector.shape_cast %60 : vector<1x8x512xbf16> to vector<8x512xbf16>
    %62 = arith.extf %61 : vector<8x512xbf16> to vector<8x512xf32>
    %63 = arith.truncf %21 : vector<8x128xf32> to vector<8x128xbf16>
    %cst_32 = arith.constant dense<0.000000e+00> : vector<8x512xf32>
    %64 = tpu.matmul %63, %20, %cst_32 {dimension_numbers = #tpu.dot_dimension_numbers<[1], [0], [0], [1], [0, 0, 1, 1], [], []>} : vector<8x128xbf16>, vector<128x512xbf16>, vector<8x512xf32> -> vector<8x512xf32>
    %65 = arith.addf %62, %64 : vector<8x512xf32>
    %66 = vector.extract_strided_slice %65 {offsets = [0, 0], sizes = [8, 128], strides = [1, 1]} : vector<8x512xf32> to vector<8x128xf32>
    %67 = arith.negf %66 : vector<8x128xf32>
    %68 = math.exp %67 : vector<8x128xf32>
    %cst_33 = arith.constant 1.000000e+00 : f32
    %69 = vector.broadcast %cst_33 : f32 to vector<8x128xf32>
    %70 = arith.addf %69, %68 : vector<8x128xf32>
    %71 = arith.divf %69, %70 : vector<8x128xf32>
    %72 = vector.extract_strided_slice %65 {offsets = [0, 128], sizes = [8, 128], strides = [1, 1]} : vector<8x512xf32> to vector<8x128xf32>
    %73 = arith.negf %72 : vector<8x128xf32>
    %74 = math.exp %73 : vector<8x128xf32>
    %cst_34 = arith.constant 1.000000e+00 : f32
    %75 = vector.broadcast %cst_34 : f32 to vector<8x128xf32>
    %76 = arith.addf %75, %74 : vector<8x128xf32>
    %77 = arith.divf %75, %76 : vector<8x128xf32>
    %78 = vector.extract_strided_slice %65 {offsets = [0, 256], sizes = [8, 128], strides = [1, 1]} : vector<8x512xf32> to vector<8x128xf32>
    %79 = math.tanh %78 : vector<8x128xf32>
    %80 = vector.extract_strided_slice %65 {offsets = [0, 384], sizes = [8, 128], strides = [1, 1]} : vector<8x512xf32> to vector<8x128xf32>
    %81 = arith.negf %80 : vector<8x128xf32>
    %82 = math.exp %81 : vector<8x128xf32>
    %cst_35 = arith.constant 1.000000e+00 : f32
    %83 = vector.broadcast %cst_35 : f32 to vector<8x128xf32>
    %84 = arith.addf %83, %82 : vector<8x128xf32>
    %85 = arith.divf %83, %84 : vector<8x128xf32>
    %86 = arith.mulf %77, %21 : vector<8x128xf32>
    %87 = arith.mulf %71, %79 : vector<8x128xf32>
    %88 = arith.addf %86, %87 : vector<8x128xf32>
    %89 = math.tanh %88 : vector<8x128xf32>
    %90 = arith.mulf %85, %89 : vector<8x128xf32>
    %91 = arith.index_cast %22 : i32 to index
    %c0_36 = arith.constant 0 : index
    %c128 = arith.constant 128 : index
    %92 = vector.load %arg13[%91, %c0_36, %c128] : memref<8x8x256xf32, #tpu.memory_space<vmem>>, vector<1x8x128xf32>
    %93 = vector.shape_cast %92 : vector<1x8x128xf32> to vector<8x128xf32>
    %94 = vector.shape_cast %90 : vector<8x128xf32> to vector<1x8x128xf32>
    tpu.vector_store %arg13[%91, %c0_36, %c128], %94 {strides = array<i32>} : memref<8x8x256xf32, #tpu.memory_space<vmem>>, vector<1x8x128xf32>,
    %c1_i32 = arith.constant 1 : i32
    %c7_i32_37 = arith.constant 7 : i32
    %95 = arith.subi %c7_i32_37, %c1_i32 : i32
    %96 = arith.index_cast %c1_i32 : i32 to index
    %c0_38 = arith.constant 0 : index
    %c0_39 = arith.constant 0 : index
    %97 = vector.load %arg11[%96, %c0_38, %c0_39] : memref<8x8x512xbf16, #tpu.memory_space<vmem>>, vector<1x8x512xbf16>
    %98 = vector.shape_cast %97 : vector<1x8x512xbf16> to vector<8x512xbf16>
    %99 = arith.extf %98 : vector<8x512xbf16> to vector<8x512xf32>
    %100 = arith.truncf %54 : vector<8x128xf32> to vector<8x128xbf16>
    %cst_40 = arith.constant dense<0.000000e+00> : vector<8x512xf32>
    %101 = tpu.matmul %100, %19, %cst_40 {dimension_numbers = #tpu.dot_dimension_numbers<[1], [0], [0], [1], [0, 0, 1, 1], [], []>} : vector<8x128xbf16>, vector<128x512xbf16>, vector<8x512xf32> -> vector<8x512xf32>
    %102 = arith.addf %99, %101 : vector<8x512xf32>
    %103 = vector.extract_strided_slice %102 {offsets = [0, 0], sizes = [8, 128], strides = [1, 1]} : vector<8x512xf32> to vector<8x128xf32>
    %104 = arith.negf %103 : vector<8x128xf32>
    %105 = math.exp %104 : vector<8x128xf32>
    %cst_41 = arith.constant 1.000000e+00 : f32
    %106 = vector.broadcast %cst_41 : f32 to vector<8x128xf32>
    %107 = arith.addf %106, %105 : vector<8x128xf32>
    %108 = arith.divf %106, %107 : vector<8x128xf32>
    %109 = vector.extract_strided_slice %102 {offsets = [0, 128], sizes = [8, 128], strides = [1, 1]} : vector<8x512xf32> to vector<8x128xf32>
    %110 = arith.negf %109 : vector<8x128xf32>
    %111 = math.exp %110 : vector<8x128xf32>
    %cst_42 = arith.constant 1.000000e+00 : f32
    %112 = vector.broadcast %cst_42 : f32 to vector<8x128xf32>
    %113 = arith.addf %112, %111 : vector<8x128xf32>
    %114 = arith.divf %112, %113 : vector<8x128xf32>
    %115 = vector.extract_strided_slice %102 {offsets = [0, 256], sizes = [8, 128], strides = [1, 1]} : vector<8x512xf32> to vector<8x128xf32>
    %116 = math.tanh %115 : vector<8x128xf32>
    %117 = vector.extract_strided_slice %102 {offsets = [0, 384], sizes = [8, 128], strides = [1, 1]} : vector<8x512xf32> to vector<8x128xf32>
    %118 = arith.negf %117 : vector<8x128xf32>
    %119 = math.exp %118 : vector<8x128xf32>
    %cst_43 = arith.constant 1.000000e+00 : f32
    %120 = vector.broadcast %cst_43 : f32 to vector<8x128xf32>
    %121 = arith.addf %120, %119 : vector<8x128xf32>
    %122 = arith.divf %120, %121 : vector<8x128xf32>
    %123 = arith.mulf %114, %52 : vector<8x128xf32>
    %124 = arith.mulf %108, %116 : vector<8x128xf32>
    %125 = arith.addf %123, %124 : vector<8x128xf32>
    %126 = math.tanh %125 : vector<8x128xf32>
    %127 = arith.mulf %122, %126 : vector<8x128xf32>
    %128 = arith.index_cast %c1_i32 : i32 to index
    %c0_44 = arith.constant 0 : index
    %c0_45 = arith.constant 0 : index
    %129 = vector.load %arg13[%128, %c0_44, %c0_45] : memref<8x8x256xf32, #tpu.memory_space<vmem>>, vector<1x8x128xf32>
    %130 = vector.shape_cast %129 : vector<1x8x128xf32> to vector<8x128xf32>
    %131 = vector.shape_cast %127 : vector<8x128xf32> to vector<1x8x128xf32>
    tpu.vector_store %arg13[%128, %c0_44, %c0_45], %131 {strides = array<i32>} : memref<8x8x256xf32, #tpu.memory_space<vmem>>, vector<1x8x128xf32>,
    %132 = arith.index_cast %95 : i32 to index
    %c0_46 = arith.constant 0 : index
    %c0_47 = arith.constant 0 : index
    %133 = vector.load %arg12[%132, %c0_46, %c0_47] : memref<8x8x512xbf16, #tpu.memory_space<vmem>>, vector<1x8x512xbf16>
    %134 = vector.shape_cast %133 : vector<1x8x512xbf16> to vector<8x512xbf16>
    %135 = arith.extf %134 : vector<8x512xbf16> to vector<8x512xf32>
    %136 = arith.truncf %90 : vector<8x128xf32> to vector<8x128xbf16>
    %cst_48 = arith.constant dense<0.000000e+00> : vector<8x512xf32>
    %137 = tpu.matmul %136, %20, %cst_48 {dimension_numbers = #tpu.dot_dimension_numbers<[1], [0], [0], [1], [0, 0, 1, 1], [], []>} : vector<8x128xbf16>, vector<128x512xbf16>, vector<8x512xf32> -> vector<8x512xf32>
    %138 = arith.addf %135, %137 : vector<8x512xf32>
    %139 = vector.extract_strided_slice %138 {offsets = [0, 0], sizes = [8, 128], strides = [1, 1]} : vector<8x512xf32> to vector<8x128xf32>
    %140 = arith.negf %139 : vector<8x128xf32>
    %141 = math.exp %140 : vector<8x128xf32>
    %cst_49 = arith.constant 1.000000e+00 : f32
    %142 = vector.broadcast %cst_49 : f32 to vector<8x128xf32>
    %143 = arith.addf %142, %141 : vector<8x128xf32>
    %144 = arith.divf %142, %143 : vector<8x128xf32>
    %145 = vector.extract_strided_slice %138 {offsets = [0, 128], sizes = [8, 128], strides = [1, 1]} : vector<8x512xf32> to vector<8x128xf32>
    %146 = arith.negf %145 : vector<8x128xf32>
    %147 = math.exp %146 : vector<8x128xf32>
    %cst_50 = arith.constant 1.000000e+00 : f32
    %148 = vector.broadcast %cst_50 : f32 to vector<8x128xf32>
    %149 = arith.addf %148, %147 : vector<8x128xf32>
    %150 = arith.divf %148, %149 : vector<8x128xf32>
    %151 = vector.extract_strided_slice %138 {offsets = [0, 256], sizes = [8, 128], strides = [1, 1]} : vector<8x512xf32> to vector<8x128xf32>
    %152 = math.tanh %151 : vector<8x128xf32>
    %153 = vector.extract_strided_slice %138 {offsets = [0, 384], sizes = [8, 128], strides = [1, 1]} : vector<8x512xf32> to vector<8x128xf32>
    %154 = arith.negf %153 : vector<8x128xf32>
    %155 = math.exp %154 : vector<8x128xf32>
    %cst_51 = arith.constant 1.000000e+00 : f32
    %156 = vector.broadcast %cst_51 : f32 to vector<8x128xf32>
    %157 = arith.addf %156, %155 : vector<8x128xf32>
    %158 = arith.divf %156, %157 : vector<8x128xf32>
    %159 = arith.mulf %150, %88 : vector<8x128xf32>
    %160 = arith.mulf %144, %152 : vector<8x128xf32>
    %161 = arith.addf %159, %160 : vector<8x128xf32>
    %162 = math.tanh %161 : vector<8x128xf32>
    %163 = arith.mulf %158, %162 : vector<8x128xf32>
    %164 = arith.index_cast %95 : i32 to index
    %c0_52 = arith.constant 0 : index
    %c128_53 = arith.constant 128 : index
    %165 = vector.load %arg13[%164, %c0_52, %c128_53] : memref<8x8x256xf32, #tpu.memory_space<vmem>>, vector<1x8x128xf32>
    %166 = vector.shape_cast %165 : vector<1x8x128xf32> to vector<8x128xf32>
    %167 = vector.shape_cast %163 : vector<8x128xf32> to vector<1x8x128xf32>
    tpu.vector_store %arg13[%164, %c0_52, %c128_53], %167 {strides = array<i32>} : memref<8x8x256xf32, #tpu.memory_space<vmem>>, vector<1x8x128xf32>,
    %c2_i32 = arith.constant 2 : i32
    %c7_i32_54 = arith.constant 7 : i32
    %168 = arith.subi %c7_i32_54, %c2_i32 : i32
    %169 = arith.index_cast %c2_i32 : i32 to index
    %c0_55 = arith.constant 0 : index
    %c0_56 = arith.constant 0 : index
    %170 = vector.load %arg11[%169, %c0_55, %c0_56] : memref<8x8x512xbf16, #tpu.memory_space<vmem>>, vector<1x8x512xbf16>
    %171 = vector.shape_cast %170 : vector<1x8x512xbf16> to vector<8x512xbf16>
    %172 = arith.extf %171 : vector<8x512xbf16> to vector<8x512xf32>
    %173 = arith.truncf %127 : vector<8x128xf32> to vector<8x128xbf16>
    %cst_57 = arith.constant dense<0.000000e+00> : vector<8x512xf32>
    %174 = tpu.matmul %173, %19, %cst_57 {dimension_numbers = #tpu.dot_dimension_numbers<[1], [0], [0], [1], [0, 0, 1, 1], [], []>} : vector<8x128xbf16>, vector<128x512xbf16>, vector<8x512xf32> -> vector<8x512xf32>
    %175 = arith.addf %172, %174 : vector<8x512xf32>
    %176 = vector.extract_strided_slice %175 {offsets = [0, 0], sizes = [8, 128], strides = [1, 1]} : vector<8x512xf32> to vector<8x128xf32>
    %177 = arith.negf %176 : vector<8x128xf32>
    %178 = math.exp %177 : vector<8x128xf32>
    %cst_58 = arith.constant 1.000000e+00 : f32
    %179 = vector.broadcast %cst_58 : f32 to vector<8x128xf32>
    %180 = arith.addf %179, %178 : vector<8x128xf32>
    %181 = arith.divf %179, %180 : vector<8x128xf32>
    %182 = vector.extract_strided_slice %175 {offsets = [0, 128], sizes = [8, 128], strides = [1, 1]} : vector<8x512xf32> to vector<8x128xf32>
    %183 = arith.negf %182 : vector<8x128xf32>
    %184 = math.exp %183 : vector<8x128xf32>
    %cst_59 = arith.constant 1.000000e+00 : f32
    %185 = vector.broadcast %cst_59 : f32 to vector<8x128xf32>
    %186 = arith.addf %185, %184 : vector<8x128xf32>
    %187 = arith.divf %185, %186 : vector<8x128xf32>
    %188 = vector.extract_strided_slice %175 {offsets = [0, 256], sizes = [8, 128], strides = [1, 1]} : vector<8x512xf32> to vector<8x128xf32>
    %189 = math.tanh %188 : vector<8x128xf32>
    %190 = vector.extract_strided_slice %175 {offsets = [0, 384], sizes = [8, 128], strides = [1, 1]} : vector<8x512xf32> to vector<8x128xf32>
    %191 = arith.negf %190 : vector<8x128xf32>
    %192 = math.exp %191 : vector<8x128xf32>
    %cst_60 = arith.constant 1.000000e+00 : f32
    %193 = vector.broadcast %cst_60 : f32 to vector<8x128xf32>
    %194 = arith.addf %193, %192 : vector<8x128xf32>
    %195 = arith.divf %193, %194 : vector<8x128xf32>
    %196 = arith.mulf %187, %125 : vector<8x128xf32>
    %197 = arith.mulf %181, %189 : vector<8x128xf32>
    %198 = arith.addf %196, %197 : vector<8x128xf32>
    %199 = math.tanh %198 : vector<8x128xf32>
    %200 = arith.mulf %195, %199 : vector<8x128xf32>
    %201 = arith.index_cast %c2_i32 : i32 to index
    %c0_61 = arith.constant 0 : index
    %c0_62 = arith.constant 0 : index
    %202 = vector.load %arg13[%201, %c0_61, %c0_62] : memref<8x8x256xf32, #tpu.memory_space<vmem>>, vector<1x8x128xf32>
    %203 = vector.shape_cast %202 : vector<1x8x128xf32> to vector<8x128xf32>
    %204 = vector.shape_cast %200 : vector<8x128xf32> to vector<1x8x128xf32>
    tpu.vector_store %arg13[%201, %c0_61, %c0_62], %204 {strides = array<i32>} : memref<8x8x256xf32, #tpu.memory_space<vmem>>, vector<1x8x128xf32>,
    %205 = arith.index_cast %168 : i32 to index
    %c0_63 = arith.constant 0 : index
    %c0_64 = arith.constant 0 : index
    %206 = vector.load %arg12[%205, %c0_63, %c0_64] : memref<8x8x512xbf16, #tpu.memory_space<vmem>>, vector<1x8x512xbf16>
    %207 = vector.shape_cast %206 : vector<1x8x512xbf16> to vector<8x512xbf16>
    %208 = arith.extf %207 : vector<8x512xbf16> to vector<8x512xf32>
    %209 = arith.truncf %163 : vector<8x128xf32> to vector<8x128xbf16>
    %cst_65 = arith.constant dense<0.000000e+00> : vector<8x512xf32>
    %210 = tpu.matmul %209, %20, %cst_65 {dimension_numbers = #tpu.dot_dimension_numbers<[1], [0], [0], [1], [0, 0, 1, 1], [], []>} : vector<8x128xbf16>, vector<128x512xbf16>, vector<8x512xf32> -> vector<8x512xf32>
    %211 = arith.addf %208, %210 : vector<8x512xf32>
    %212 = vector.extract_strided_slice %211 {offsets = [0, 0], sizes = [8, 128], strides = [1, 1]} : vector<8x512xf32> to vector<8x128xf32>
    %213 = arith.negf %212 : vector<8x128xf32>
    %214 = math.exp %213 : vector<8x128xf32>
    %cst_66 = arith.constant 1.000000e+00 : f32
    %215 = vector.broadcast %cst_66 : f32 to vector<8x128xf32>
    %216 = arith.addf %215, %214 : vector<8x128xf32>
    %217 = arith.divf %215, %216 : vector<8x128xf32>
    %218 = vector.extract_strided_slice %211 {offsets = [0, 128], sizes = [8, 128], strides = [1, 1]} : vector<8x512xf32> to vector<8x128xf32>
    %219 = arith.negf %218 : vector<8x128xf32>
    %220 = math.exp %219 : vector<8x128xf32>
    %cst_67 = arith.constant 1.000000e+00 : f32
    %221 = vector.broadcast %cst_67 : f32 to vector<8x128xf32>
    %222 = arith.addf %221, %220 : vector<8x128xf32>
    %223 = arith.divf %221, %222 : vector<8x128xf32>
    %224 = vector.extract_strided_slice %211 {offsets = [0, 256], sizes = [8, 128], strides = [1, 1]} : vector<8x512xf32> to vector<8x128xf32>
    %225 = math.tanh %224 : vector<8x128xf32>
    %226 = vector.extract_strided_slice %211 {offsets = [0, 384], sizes = [8, 128], strides = [1, 1]} : vector<8x512xf32> to vector<8x128xf32>
    %227 = arith.negf %226 : vector<8x128xf32>
    %228 = math.exp %227 : vector<8x128xf32>
    %cst_68 = arith.constant 1.000000e+00 : f32
    %229 = vector.broadcast %cst_68 : f32 to vector<8x128xf32>
    %230 = arith.addf %229, %228 : vector<8x128xf32>
    %231 = arith.divf %229, %230 : vector<8x128xf32>
    %232 = arith.mulf %223, %161 : vector<8x128xf32>
    %233 = arith.mulf %217, %225 : vector<8x128xf32>
    %234 = arith.addf %232, %233 : vector<8x128xf32>
    %235 = math.tanh %234 : vector<8x128xf32>
    %236 = arith.mulf %231, %235 : vector<8x128xf32>
    %237 = arith.index_cast %168 : i32 to index
    %c0_69 = arith.constant 0 : index
    %c128_70 = arith.constant 128 : index
    %238 = vector.load %arg13[%237, %c0_69, %c128_70] : memref<8x8x256xf32, #tpu.memory_space<vmem>>, vector<1x8x128xf32>
    %239 = vector.shape_cast %238 : vector<1x8x128xf32> to vector<8x128xf32>
    %240 = vector.shape_cast %236 : vector<8x128xf32> to vector<1x8x128xf32>
    tpu.vector_store %arg13[%237, %c0_69, %c128_70], %240 {strides = array<i32>} : memref<8x8x256xf32, #tpu.memory_space<vmem>>, vector<1x8x128xf32>,
    %c3_i32 = arith.constant 3 : i32
    %c7_i32_71 = arith.constant 7 : i32
    %241 = arith.subi %c7_i32_71, %c3_i32 : i32
    %242 = arith.index_cast %c3_i32 : i32 to index
    %c0_72 = arith.constant 0 : index
    %c0_73 = arith.constant 0 : index
    %243 = vector.load %arg11[%242, %c0_72, %c0_73] : memref<8x8x512xbf16, #tpu.memory_space<vmem>>, vector<1x8x512xbf16>
    %244 = vector.shape_cast %243 : vector<1x8x512xbf16> to vector<8x512xbf16>
    %245 = arith.extf %244 : vector<8x512xbf16> to vector<8x512xf32>
    %246 = arith.truncf %200 : vector<8x128xf32> to vector<8x128xbf16>
    %cst_74 = arith.constant dense<0.000000e+00> : vector<8x512xf32>
    %247 = tpu.matmul %246, %19, %cst_74 {dimension_numbers = #tpu.dot_dimension_numbers<[1], [0], [0], [1], [0, 0, 1, 1], [], []>} : vector<8x128xbf16>, vector<128x512xbf16>, vector<8x512xf32> -> vector<8x512xf32>
    %248 = arith.addf %245, %247 : vector<8x512xf32>
    %249 = vector.extract_strided_slice %248 {offsets = [0, 0], sizes = [8, 128], strides = [1, 1]} : vector<8x512xf32> to vector<8x128xf32>
    %250 = arith.negf %249 : vector<8x128xf32>
    %251 = math.exp %250 : vector<8x128xf32>
    %cst_75 = arith.constant 1.000000e+00 : f32
    %252 = vector.broadcast %cst_75 : f32 to vector<8x128xf32>
    %253 = arith.addf %252, %251 : vector<8x128xf32>
    %254 = arith.divf %252, %253 : vector<8x128xf32>
    %255 = vector.extract_strided_slice %248 {offsets = [0, 128], sizes = [8, 128], strides = [1, 1]} : vector<8x512xf32> to vector<8x128xf32>
    %256 = arith.negf %255 : vector<8x128xf32>
    %257 = math.exp %256 : vector<8x128xf32>
    %cst_76 = arith.constant 1.000000e+00 : f32
    %258 = vector.broadcast %cst_76 : f32 to vector<8x128xf32>
    %259 = arith.addf %258, %257 : vector<8x128xf32>
    %260 = arith.divf %258, %259 : vector<8x128xf32>
    %261 = vector.extract_strided_slice %248 {offsets = [0, 256], sizes = [8, 128], strides = [1, 1]} : vector<8x512xf32> to vector<8x128xf32>
    %262 = math.tanh %261 : vector<8x128xf32>
    %263 = vector.extract_strided_slice %248 {offsets = [0, 384], sizes = [8, 128], strides = [1, 1]} : vector<8x512xf32> to vector<8x128xf32>
    %264 = arith.negf %263 : vector<8x128xf32>
    %265 = math.exp %264 : vector<8x128xf32>
    %cst_77 = arith.constant 1.000000e+00 : f32
    %266 = vector.broadcast %cst_77 : f32 to vector<8x128xf32>
    %267 = arith.addf %266, %265 : vector<8x128xf32>
    %268 = arith.divf %266, %267 : vector<8x128xf32>
    %269 = arith.mulf %260, %198 : vector<8x128xf32>
    %270 = arith.mulf %254, %262 : vector<8x128xf32>
    %271 = arith.addf %269, %270 : vector<8x128xf32>
    %272 = math.tanh %271 : vector<8x128xf32>
    %273 = arith.mulf %268, %272 : vector<8x128xf32>
    %274 = arith.index_cast %c3_i32 : i32 to index
    %c0_78 = arith.constant 0 : index
    %c0_79 = arith.constant 0 : index
    %275 = vector.load %arg13[%274, %c0_78, %c0_79] : memref<8x8x256xf32, #tpu.memory_space<vmem>>, vector<1x8x128xf32>
    %276 = vector.shape_cast %275 : vector<1x8x128xf32> to vector<8x128xf32>
    %277 = vector.shape_cast %273 : vector<8x128xf32> to vector<1x8x128xf32>
    tpu.vector_store %arg13[%274, %c0_78, %c0_79], %277 {strides = array<i32>} : memref<8x8x256xf32, #tpu.memory_space<vmem>>, vector<1x8x128xf32>,
    %278 = arith.index_cast %241 : i32 to index
    %c0_80 = arith.constant 0 : index
    %c0_81 = arith.constant 0 : index
    %279 = vector.load %arg12[%278, %c0_80, %c0_81] : memref<8x8x512xbf16, #tpu.memory_space<vmem>>, vector<1x8x512xbf16>
    %280 = vector.shape_cast %279 : vector<1x8x512xbf16> to vector<8x512xbf16>
    %281 = arith.extf %280 : vector<8x512xbf16> to vector<8x512xf32>
    %282 = arith.truncf %236 : vector<8x128xf32> to vector<8x128xbf16>
    %cst_82 = arith.constant dense<0.000000e+00> : vector<8x512xf32>
    %283 = tpu.matmul %282, %20, %cst_82 {dimension_numbers = #tpu.dot_dimension_numbers<[1], [0], [0], [1], [0, 0, 1, 1], [], []>} : vector<8x128xbf16>, vector<128x512xbf16>, vector<8x512xf32> -> vector<8x512xf32>
    %284 = arith.addf %281, %283 : vector<8x512xf32>
    %285 = vector.extract_strided_slice %284 {offsets = [0, 0], sizes = [8, 128], strides = [1, 1]} : vector<8x512xf32> to vector<8x128xf32>
    %286 = arith.negf %285 : vector<8x128xf32>
    %287 = math.exp %286 : vector<8x128xf32>
    %cst_83 = arith.constant 1.000000e+00 : f32
    %288 = vector.broadcast %cst_83 : f32 to vector<8x128xf32>
    %289 = arith.addf %288, %287 : vector<8x128xf32>
    %290 = arith.divf %288, %289 : vector<8x128xf32>
    %291 = vector.extract_strided_slice %284 {offsets = [0, 128], sizes = [8, 128], strides = [1, 1]} : vector<8x512xf32> to vector<8x128xf32>
    %292 = arith.negf %291 : vector<8x128xf32>
    %293 = math.exp %292 : vector<8x128xf32>
    %cst_84 = arith.constant 1.000000e+00 : f32
    %294 = vector.broadcast %cst_84 : f32 to vector<8x128xf32>
    %295 = arith.addf %294, %293 : vector<8x128xf32>
    %296 = arith.divf %294, %295 : vector<8x128xf32>
    %297 = vector.extract_strided_slice %284 {offsets = [0, 256], sizes = [8, 128], strides = [1, 1]} : vector<8x512xf32> to vector<8x128xf32>
    %298 = math.tanh %297 : vector<8x128xf32>
    %299 = vector.extract_strided_slice %284 {offsets = [0, 384], sizes = [8, 128], strides = [1, 1]} : vector<8x512xf32> to vector<8x128xf32>
    %300 = arith.negf %299 : vector<8x128xf32>
    %301 = math.exp %300 : vector<8x128xf32>
    %cst_85 = arith.constant 1.000000e+00 : f32
    %302 = vector.broadcast %cst_85 : f32 to vector<8x128xf32>
    %303 = arith.addf %302, %301 : vector<8x128xf32>
    %304 = arith.divf %302, %303 : vector<8x128xf32>
    %305 = arith.mulf %296, %234 : vector<8x128xf32>
    %306 = arith.mulf %290, %298 : vector<8x128xf32>
    %307 = arith.addf %305, %306 : vector<8x128xf32>
    %308 = math.tanh %307 : vector<8x128xf32>
    %309 = arith.mulf %304, %308 : vector<8x128xf32>
    %310 = arith.index_cast %241 : i32 to index
    %c0_86 = arith.constant 0 : index
    %c128_87 = arith.constant 128 : index
    %311 = vector.load %arg13[%310, %c0_86, %c128_87] : memref<8x8x256xf32, #tpu.memory_space<vmem>>, vector<1x8x128xf32>
    %312 = vector.shape_cast %311 : vector<1x8x128xf32> to vector<8x128xf32>
    %313 = vector.shape_cast %309 : vector<8x128xf32> to vector<1x8x128xf32>
    tpu.vector_store %arg13[%310, %c0_86, %c128_87], %313 {strides = array<i32>} : memref<8x8x256xf32, #tpu.memory_space<vmem>>, vector<1x8x128xf32>,
    %c4_i32 = arith.constant 4 : i32
    %c7_i32_88 = arith.constant 7 : i32
    %314 = arith.subi %c7_i32_88, %c4_i32 : i32
    %315 = arith.index_cast %c4_i32 : i32 to index
    %c0_89 = arith.constant 0 : index
    %c0_90 = arith.constant 0 : index
    %316 = vector.load %arg11[%315, %c0_89, %c0_90] : memref<8x8x512xbf16, #tpu.memory_space<vmem>>, vector<1x8x512xbf16>
    %317 = vector.shape_cast %316 : vector<1x8x512xbf16> to vector<8x512xbf16>
    %318 = arith.extf %317 : vector<8x512xbf16> to vector<8x512xf32>
    %319 = arith.truncf %273 : vector<8x128xf32> to vector<8x128xbf16>
    %cst_91 = arith.constant dense<0.000000e+00> : vector<8x512xf32>
    %320 = tpu.matmul %319, %19, %cst_91 {dimension_numbers = #tpu.dot_dimension_numbers<[1], [0], [0], [1], [0, 0, 1, 1], [], []>} : vector<8x128xbf16>, vector<128x512xbf16>, vector<8x512xf32> -> vector<8x512xf32>
    %321 = arith.addf %318, %320 : vector<8x512xf32>
    %322 = vector.extract_strided_slice %321 {offsets = [0, 0], sizes = [8, 128], strides = [1, 1]} : vector<8x512xf32> to vector<8x128xf32>
    %323 = arith.negf %322 : vector<8x128xf32>
    %324 = math.exp %323 : vector<8x128xf32>
    %cst_92 = arith.constant 1.000000e+00 : f32
    %325 = vector.broadcast %cst_92 : f32 to vector<8x128xf32>
    %326 = arith.addf %325, %324 : vector<8x128xf32>
    %327 = arith.divf %325, %326 : vector<8x128xf32>
    %328 = vector.extract_strided_slice %321 {offsets = [0, 128], sizes = [8, 128], strides = [1, 1]} : vector<8x512xf32> to vector<8x128xf32>
    %329 = arith.negf %328 : vector<8x128xf32>
    %330 = math.exp %329 : vector<8x128xf32>
    %cst_93 = arith.constant 1.000000e+00 : f32
    %331 = vector.broadcast %cst_93 : f32 to vector<8x128xf32>
    %332 = arith.addf %331, %330 : vector<8x128xf32>
    %333 = arith.divf %331, %332 : vector<8x128xf32>
    %334 = vector.extract_strided_slice %321 {offsets = [0, 256], sizes = [8, 128], strides = [1, 1]} : vector<8x512xf32> to vector<8x128xf32>
    %335 = math.tanh %334 : vector<8x128xf32>
    %336 = vector.extract_strided_slice %321 {offsets = [0, 384], sizes = [8, 128], strides = [1, 1]} : vector<8x512xf32> to vector<8x128xf32>
    %337 = arith.negf %336 : vector<8x128xf32>
    %338 = math.exp %337 : vector<8x128xf32>
    %cst_94 = arith.constant 1.000000e+00 : f32
    %339 = vector.broadcast %cst_94 : f32 to vector<8x128xf32>
    %340 = arith.addf %339, %338 : vector<8x128xf32>
    %341 = arith.divf %339, %340 : vector<8x128xf32>
    %342 = arith.mulf %333, %271 : vector<8x128xf32>
    %343 = arith.mulf %327, %335 : vector<8x128xf32>
    %344 = arith.addf %342, %343 : vector<8x128xf32>
    %345 = math.tanh %344 : vector<8x128xf32>
    %346 = arith.mulf %341, %345 : vector<8x128xf32>
    %347 = arith.index_cast %c4_i32 : i32 to index
    %c0_95 = arith.constant 0 : index
    %c0_96 = arith.constant 0 : index
    %348 = vector.load %arg13[%347, %c0_95, %c0_96] : memref<8x8x256xf32, #tpu.memory_space<vmem>>, vector<1x8x128xf32>
    %349 = vector.shape_cast %348 : vector<1x8x128xf32> to vector<8x128xf32>
    %350 = vector.shape_cast %346 : vector<8x128xf32> to vector<1x8x128xf32>
    tpu.vector_store %arg13[%347, %c0_95, %c0_96], %350 {strides = array<i32>} : memref<8x8x256xf32, #tpu.memory_space<vmem>>, vector<1x8x128xf32>,
    %351 = arith.index_cast %314 : i32 to index
    %c0_97 = arith.constant 0 : index
    %c0_98 = arith.constant 0 : index
    %352 = vector.load %arg12[%351, %c0_97, %c0_98] : memref<8x8x512xbf16, #tpu.memory_space<vmem>>, vector<1x8x512xbf16>
    %353 = vector.shape_cast %352 : vector<1x8x512xbf16> to vector<8x512xbf16>
    %354 = arith.extf %353 : vector<8x512xbf16> to vector<8x512xf32>
    %355 = arith.truncf %309 : vector<8x128xf32> to vector<8x128xbf16>
    %cst_99 = arith.constant dense<0.000000e+00> : vector<8x512xf32>
    %356 = tpu.matmul %355, %20, %cst_99 {dimension_numbers = #tpu.dot_dimension_numbers<[1], [0], [0], [1], [0, 0, 1, 1], [], []>} : vector<8x128xbf16>, vector<128x512xbf16>, vector<8x512xf32> -> vector<8x512xf32>
    %357 = arith.addf %354, %356 : vector<8x512xf32>
    %358 = vector.extract_strided_slice %357 {offsets = [0, 0], sizes = [8, 128], strides = [1, 1]} : vector<8x512xf32> to vector<8x128xf32>
    %359 = arith.negf %358 : vector<8x128xf32>
    %360 = math.exp %359 : vector<8x128xf32>
    %cst_100 = arith.constant 1.000000e+00 : f32
    %361 = vector.broadcast %cst_100 : f32 to vector<8x128xf32>
    %362 = arith.addf %361, %360 : vector<8x128xf32>
    %363 = arith.divf %361, %362 : vector<8x128xf32>
    %364 = vector.extract_strided_slice %357 {offsets = [0, 128], sizes = [8, 128], strides = [1, 1]} : vector<8x512xf32> to vector<8x128xf32>
    %365 = arith.negf %364 : vector<8x128xf32>
    %366 = math.exp %365 : vector<8x128xf32>
    %cst_101 = arith.constant 1.000000e+00 : f32
    %367 = vector.broadcast %cst_101 : f32 to vector<8x128xf32>
    %368 = arith.addf %367, %366 : vector<8x128xf32>
    %369 = arith.divf %367, %368 : vector<8x128xf32>
    %370 = vector.extract_strided_slice %357 {offsets = [0, 256], sizes = [8, 128], strides = [1, 1]} : vector<8x512xf32> to vector<8x128xf32>
    %371 = math.tanh %370 : vector<8x128xf32>
    %372 = vector.extract_strided_slice %357 {offsets = [0, 384], sizes = [8, 128], strides = [1, 1]} : vector<8x512xf32> to vector<8x128xf32>
    %373 = arith.negf %372 : vector<8x128xf32>
    %374 = math.exp %373 : vector<8x128xf32>
    %cst_102 = arith.constant 1.000000e+00 : f32
    %375 = vector.broadcast %cst_102 : f32 to vector<8x128xf32>
    %376 = arith.addf %375, %374 : vector<8x128xf32>
    %377 = arith.divf %375, %376 : vector<8x128xf32>
    %378 = arith.mulf %369, %307 : vector<8x128xf32>
    %379 = arith.mulf %363, %371 : vector<8x128xf32>
    %380 = arith.addf %378, %379 : vector<8x128xf32>
    %381 = math.tanh %380 : vector<8x128xf32>
    %382 = arith.mulf %377, %381 : vector<8x128xf32>
    %383 = arith.index_cast %314 : i32 to index
    %c0_103 = arith.constant 0 : index
    %c128_104 = arith.constant 128 : index
    %384 = vector.load %arg13[%383, %c0_103, %c128_104] : memref<8x8x256xf32, #tpu.memory_space<vmem>>, vector<1x8x128xf32>
    %385 = vector.shape_cast %384 : vector<1x8x128xf32> to vector<8x128xf32>
    %386 = vector.shape_cast %382 : vector<8x128xf32> to vector<1x8x128xf32>
    tpu.vector_store %arg13[%383, %c0_103, %c128_104], %386 {strides = array<i32>} : memref<8x8x256xf32, #tpu.memory_space<vmem>>, vector<1x8x128xf32>,
    %c5_i32 = arith.constant 5 : i32
    %c7_i32_105 = arith.constant 7 : i32
    %387 = arith.subi %c7_i32_105, %c5_i32 : i32
    %388 = arith.index_cast %c5_i32 : i32 to index
    %c0_106 = arith.constant 0 : index
    %c0_107 = arith.constant 0 : index
    %389 = vector.load %arg11[%388, %c0_106, %c0_107] : memref<8x8x512xbf16, #tpu.memory_space<vmem>>, vector<1x8x512xbf16>
    %390 = vector.shape_cast %389 : vector<1x8x512xbf16> to vector<8x512xbf16>
    %391 = arith.extf %390 : vector<8x512xbf16> to vector<8x512xf32>
    %392 = arith.truncf %346 : vector<8x128xf32> to vector<8x128xbf16>
    %cst_108 = arith.constant dense<0.000000e+00> : vector<8x512xf32>
    %393 = tpu.matmul %392, %19, %cst_108 {dimension_numbers = #tpu.dot_dimension_numbers<[1], [0], [0], [1], [0, 0, 1, 1], [], []>} : vector<8x128xbf16>, vector<128x512xbf16>, vector<8x512xf32> -> vector<8x512xf32>
    %394 = arith.addf %391, %393 : vector<8x512xf32>
    %395 = vector.extract_strided_slice %394 {offsets = [0, 0], sizes = [8, 128], strides = [1, 1]} : vector<8x512xf32> to vector<8x128xf32>
    %396 = arith.negf %395 : vector<8x128xf32>
    %397 = math.exp %396 : vector<8x128xf32>
    %cst_109 = arith.constant 1.000000e+00 : f32
    %398 = vector.broadcast %cst_109 : f32 to vector<8x128xf32>
    %399 = arith.addf %398, %397 : vector<8x128xf32>
    %400 = arith.divf %398, %399 : vector<8x128xf32>
    %401 = vector.extract_strided_slice %394 {offsets = [0, 128], sizes = [8, 128], strides = [1, 1]} : vector<8x512xf32> to vector<8x128xf32>
    %402 = arith.negf %401 : vector<8x128xf32>
    %403 = math.exp %402 : vector<8x128xf32>
    %cst_110 = arith.constant 1.000000e+00 : f32
    %404 = vector.broadcast %cst_110 : f32 to vector<8x128xf32>
    %405 = arith.addf %404, %403 : vector<8x128xf32>
    %406 = arith.divf %404, %405 : vector<8x128xf32>
    %407 = vector.extract_strided_slice %394 {offsets = [0, 256], sizes = [8, 128], strides = [1, 1]} : vector<8x512xf32> to vector<8x128xf32>
    %408 = math.tanh %407 : vector<8x128xf32>
    %409 = vector.extract_strided_slice %394 {offsets = [0, 384], sizes = [8, 128], strides = [1, 1]} : vector<8x512xf32> to vector<8x128xf32>
    %410 = arith.negf %409 : vector<8x128xf32>
    %411 = math.exp %410 : vector<8x128xf32>
    %cst_111 = arith.constant 1.000000e+00 : f32
    %412 = vector.broadcast %cst_111 : f32 to vector<8x128xf32>
    %413 = arith.addf %412, %411 : vector<8x128xf32>
    %414 = arith.divf %412, %413 : vector<8x128xf32>
    %415 = arith.mulf %406, %344 : vector<8x128xf32>
    %416 = arith.mulf %400, %408 : vector<8x128xf32>
    %417 = arith.addf %415, %416 : vector<8x128xf32>
    %418 = math.tanh %417 : vector<8x128xf32>
    %419 = arith.mulf %414, %418 : vector<8x128xf32>
    %420 = arith.index_cast %c5_i32 : i32 to index
    %c0_112 = arith.constant 0 : index
    %c0_113 = arith.constant 0 : index
    %421 = vector.load %arg13[%420, %c0_112, %c0_113] : memref<8x8x256xf32, #tpu.memory_space<vmem>>, vector<1x8x128xf32>
    %422 = vector.shape_cast %421 : vector<1x8x128xf32> to vector<8x128xf32>
    %423 = vector.shape_cast %419 : vector<8x128xf32> to vector<1x8x128xf32>
    tpu.vector_store %arg13[%420, %c0_112, %c0_113], %423 {strides = array<i32>} : memref<8x8x256xf32, #tpu.memory_space<vmem>>, vector<1x8x128xf32>,
    %424 = arith.index_cast %387 : i32 to index
    %c0_114 = arith.constant 0 : index
    %c0_115 = arith.constant 0 : index
    %425 = vector.load %arg12[%424, %c0_114, %c0_115] : memref<8x8x512xbf16, #tpu.memory_space<vmem>>, vector<1x8x512xbf16>
    %426 = vector.shape_cast %425 : vector<1x8x512xbf16> to vector<8x512xbf16>
    %427 = arith.extf %426 : vector<8x512xbf16> to vector<8x512xf32>
    %428 = arith.truncf %382 : vector<8x128xf32> to vector<8x128xbf16>
    %cst_116 = arith.constant dense<0.000000e+00> : vector<8x512xf32>
    %429 = tpu.matmul %428, %20, %cst_116 {dimension_numbers = #tpu.dot_dimension_numbers<[1], [0], [0], [1], [0, 0, 1, 1], [], []>} : vector<8x128xbf16>, vector<128x512xbf16>, vector<8x512xf32> -> vector<8x512xf32>
    %430 = arith.addf %427, %429 : vector<8x512xf32>
    %431 = vector.extract_strided_slice %430 {offsets = [0, 0], sizes = [8, 128], strides = [1, 1]} : vector<8x512xf32> to vector<8x128xf32>
    %432 = arith.negf %431 : vector<8x128xf32>
    %433 = math.exp %432 : vector<8x128xf32>
    %cst_117 = arith.constant 1.000000e+00 : f32
    %434 = vector.broadcast %cst_117 : f32 to vector<8x128xf32>
    %435 = arith.addf %434, %433 : vector<8x128xf32>
    %436 = arith.divf %434, %435 : vector<8x128xf32>
    %437 = vector.extract_strided_slice %430 {offsets = [0, 128], sizes = [8, 128], strides = [1, 1]} : vector<8x512xf32> to vector<8x128xf32>
    %438 = arith.negf %437 : vector<8x128xf32>
    %439 = math.exp %438 : vector<8x128xf32>
    %cst_118 = arith.constant 1.000000e+00 : f32
    %440 = vector.broadcast %cst_118 : f32 to vector<8x128xf32>
    %441 = arith.addf %440, %439 : vector<8x128xf32>
    %442 = arith.divf %440, %441 : vector<8x128xf32>
    %443 = vector.extract_strided_slice %430 {offsets = [0, 256], sizes = [8, 128], strides = [1, 1]} : vector<8x512xf32> to vector<8x128xf32>
    %444 = math.tanh %443 : vector<8x128xf32>
    %445 = vector.extract_strided_slice %430 {offsets = [0, 384], sizes = [8, 128], strides = [1, 1]} : vector<8x512xf32> to vector<8x128xf32>
    %446 = arith.negf %445 : vector<8x128xf32>
    %447 = math.exp %446 : vector<8x128xf32>
    %cst_119 = arith.constant 1.000000e+00 : f32
    %448 = vector.broadcast %cst_119 : f32 to vector<8x128xf32>
    %449 = arith.addf %448, %447 : vector<8x128xf32>
    %450 = arith.divf %448, %449 : vector<8x128xf32>
    %451 = arith.mulf %442, %380 : vector<8x128xf32>
    %452 = arith.mulf %436, %444 : vector<8x128xf32>
    %453 = arith.addf %451, %452 : vector<8x128xf32>
    %454 = math.tanh %453 : vector<8x128xf32>
    %455 = arith.mulf %450, %454 : vector<8x128xf32>
    %456 = arith.index_cast %387 : i32 to index
    %c0_120 = arith.constant 0 : index
    %c128_121 = arith.constant 128 : index
    %457 = vector.load %arg13[%456, %c0_120, %c128_121] : memref<8x8x256xf32, #tpu.memory_space<vmem>>, vector<1x8x128xf32>
    %458 = vector.shape_cast %457 : vector<1x8x128xf32> to vector<8x128xf32>
    %459 = vector.shape_cast %455 : vector<8x128xf32> to vector<1x8x128xf32>
    tpu.vector_store %arg13[%456, %c0_120, %c128_121], %459 {strides = array<i32>} : memref<8x8x256xf32, #tpu.memory_space<vmem>>, vector<1x8x128xf32>,
    %c6_i32 = arith.constant 6 : i32
    %c7_i32_122 = arith.constant 7 : i32
    %460 = arith.subi %c7_i32_122, %c6_i32 : i32
    %461 = arith.index_cast %c6_i32 : i32 to index
    %c0_123 = arith.constant 0 : index
    %c0_124 = arith.constant 0 : index
    %462 = vector.load %arg11[%461, %c0_123, %c0_124] : memref<8x8x512xbf16, #tpu.memory_space<vmem>>, vector<1x8x512xbf16>
    %463 = vector.shape_cast %462 : vector<1x8x512xbf16> to vector<8x512xbf16>
    %464 = arith.extf %463 : vector<8x512xbf16> to vector<8x512xf32>
    %465 = arith.truncf %419 : vector<8x128xf32> to vector<8x128xbf16>
    %cst_125 = arith.constant dense<0.000000e+00> : vector<8x512xf32>
    %466 = tpu.matmul %465, %19, %cst_125 {dimension_numbers = #tpu.dot_dimension_numbers<[1], [0], [0], [1], [0, 0, 1, 1], [], []>} : vector<8x128xbf16>, vector<128x512xbf16>, vector<8x512xf32> -> vector<8x512xf32>
    %467 = arith.addf %464, %466 : vector<8x512xf32>
    %468 = vector.extract_strided_slice %467 {offsets = [0, 0], sizes = [8, 128], strides = [1, 1]} : vector<8x512xf32> to vector<8x128xf32>
    %469 = arith.negf %468 : vector<8x128xf32>
    %470 = math.exp %469 : vector<8x128xf32>
    %cst_126 = arith.constant 1.000000e+00 : f32
    %471 = vector.broadcast %cst_126 : f32 to vector<8x128xf32>
    %472 = arith.addf %471, %470 : vector<8x128xf32>
    %473 = arith.divf %471, %472 : vector<8x128xf32>
    %474 = vector.extract_strided_slice %467 {offsets = [0, 128], sizes = [8, 128], strides = [1, 1]} : vector<8x512xf32> to vector<8x128xf32>
    %475 = arith.negf %474 : vector<8x128xf32>
    %476 = math.exp %475 : vector<8x128xf32>
    %cst_127 = arith.constant 1.000000e+00 : f32
    %477 = vector.broadcast %cst_127 : f32 to vector<8x128xf32>
    %478 = arith.addf %477, %476 : vector<8x128xf32>
    %479 = arith.divf %477, %478 : vector<8x128xf32>
    %480 = vector.extract_strided_slice %467 {offsets = [0, 256], sizes = [8, 128], strides = [1, 1]} : vector<8x512xf32> to vector<8x128xf32>
    %481 = math.tanh %480 : vector<8x128xf32>
    %482 = vector.extract_strided_slice %467 {offsets = [0, 384], sizes = [8, 128], strides = [1, 1]} : vector<8x512xf32> to vector<8x128xf32>
    %483 = arith.negf %482 : vector<8x128xf32>
    %484 = math.exp %483 : vector<8x128xf32>
    %cst_128 = arith.constant 1.000000e+00 : f32
    %485 = vector.broadcast %cst_128 : f32 to vector<8x128xf32>
    %486 = arith.addf %485, %484 : vector<8x128xf32>
    %487 = arith.divf %485, %486 : vector<8x128xf32>
    %488 = arith.mulf %479, %417 : vector<8x128xf32>
    %489 = arith.mulf %473, %481 : vector<8x128xf32>
    %490 = arith.addf %488, %489 : vector<8x128xf32>
    %491 = math.tanh %490 : vector<8x128xf32>
    %492 = arith.mulf %487, %491 : vector<8x128xf32>
    %493 = arith.index_cast %c6_i32 : i32 to index
    %c0_129 = arith.constant 0 : index
    %c0_130 = arith.constant 0 : index
    %494 = vector.load %arg13[%493, %c0_129, %c0_130] : memref<8x8x256xf32, #tpu.memory_space<vmem>>, vector<1x8x128xf32>
    %495 = vector.shape_cast %494 : vector<1x8x128xf32> to vector<8x128xf32>
    %496 = vector.shape_cast %492 : vector<8x128xf32> to vector<1x8x128xf32>
    tpu.vector_store %arg13[%493, %c0_129, %c0_130], %496 {strides = array<i32>} : memref<8x8x256xf32, #tpu.memory_space<vmem>>, vector<1x8x128xf32>,
    %497 = arith.index_cast %460 : i32 to index
    %c0_131 = arith.constant 0 : index
    %c0_132 = arith.constant 0 : index
    %498 = vector.load %arg12[%497, %c0_131, %c0_132] : memref<8x8x512xbf16, #tpu.memory_space<vmem>>, vector<1x8x512xbf16>
    %499 = vector.shape_cast %498 : vector<1x8x512xbf16> to vector<8x512xbf16>
    %500 = arith.extf %499 : vector<8x512xbf16> to vector<8x512xf32>
    %501 = arith.truncf %455 : vector<8x128xf32> to vector<8x128xbf16>
    %cst_133 = arith.constant dense<0.000000e+00> : vector<8x512xf32>
    %502 = tpu.matmul %501, %20, %cst_133 {dimension_numbers = #tpu.dot_dimension_numbers<[1], [0], [0], [1], [0, 0, 1, 1], [], []>} : vector<8x128xbf16>, vector<128x512xbf16>, vector<8x512xf32> -> vector<8x512xf32>
    %503 = arith.addf %500, %502 : vector<8x512xf32>
    %504 = vector.extract_strided_slice %503 {offsets = [0, 0], sizes = [8, 128], strides = [1, 1]} : vector<8x512xf32> to vector<8x128xf32>
    %505 = arith.negf %504 : vector<8x128xf32>
    %506 = math.exp %505 : vector<8x128xf32>
    %cst_134 = arith.constant 1.000000e+00 : f32
    %507 = vector.broadcast %cst_134 : f32 to vector<8x128xf32>
    %508 = arith.addf %507, %506 : vector<8x128xf32>
    %509 = arith.divf %507, %508 : vector<8x128xf32>
    %510 = vector.extract_strided_slice %503 {offsets = [0, 128], sizes = [8, 128], strides = [1, 1]} : vector<8x512xf32> to vector<8x128xf32>
    %511 = arith.negf %510 : vector<8x128xf32>
    %512 = math.exp %511 : vector<8x128xf32>
    %cst_135 = arith.constant 1.000000e+00 : f32
    %513 = vector.broadcast %cst_135 : f32 to vector<8x128xf32>
    %514 = arith.addf %513, %512 : vector<8x128xf32>
    %515 = arith.divf %513, %514 : vector<8x128xf32>
    %516 = vector.extract_strided_slice %503 {offsets = [0, 256], sizes = [8, 128], strides = [1, 1]} : vector<8x512xf32> to vector<8x128xf32>
    %517 = math.tanh %516 : vector<8x128xf32>
    %518 = vector.extract_strided_slice %503 {offsets = [0, 384], sizes = [8, 128], strides = [1, 1]} : vector<8x512xf32> to vector<8x128xf32>
    %519 = arith.negf %518 : vector<8x128xf32>
    %520 = math.exp %519 : vector<8x128xf32>
    %cst_136 = arith.constant 1.000000e+00 : f32
    %521 = vector.broadcast %cst_136 : f32 to vector<8x128xf32>
    %522 = arith.addf %521, %520 : vector<8x128xf32>
    %523 = arith.divf %521, %522 : vector<8x128xf32>
    %524 = arith.mulf %515, %453 : vector<8x128xf32>
    %525 = arith.mulf %509, %517 : vector<8x128xf32>
    %526 = arith.addf %524, %525 : vector<8x128xf32>
    %527 = math.tanh %526 : vector<8x128xf32>
    %528 = arith.mulf %523, %527 : vector<8x128xf32>
    %529 = arith.index_cast %460 : i32 to index
    %c0_137 = arith.constant 0 : index
    %c128_138 = arith.constant 128 : index
    %530 = vector.load %arg13[%529, %c0_137, %c128_138] : memref<8x8x256xf32, #tpu.memory_space<vmem>>, vector<1x8x128xf32>
    %531 = vector.shape_cast %530 : vector<1x8x128xf32> to vector<8x128xf32>
    %532 = vector.shape_cast %528 : vector<8x128xf32> to vector<1x8x128xf32>
    tpu.vector_store %arg13[%529, %c0_137, %c128_138], %532 {strides = array<i32>} : memref<8x8x256xf32, #tpu.memory_space<vmem>>, vector<1x8x128xf32>,
    %c7_i32_139 = arith.constant 7 : i32
    %c7_i32_140 = arith.constant 7 : i32
    %533 = arith.subi %c7_i32_140, %c7_i32_139 : i32
    %534 = arith.index_cast %c7_i32_139 : i32 to index
    %c0_141 = arith.constant 0 : index
    %c0_142 = arith.constant 0 : index
    %535 = vector.load %arg11[%534, %c0_141, %c0_142] : memref<8x8x512xbf16, #tpu.memory_space<vmem>>, vector<1x8x512xbf16>
    %536 = vector.shape_cast %535 : vector<1x8x512xbf16> to vector<8x512xbf16>
    %537 = arith.extf %536 : vector<8x512xbf16> to vector<8x512xf32>
    %538 = arith.truncf %492 : vector<8x128xf32> to vector<8x128xbf16>
    %cst_143 = arith.constant dense<0.000000e+00> : vector<8x512xf32>
    %539 = tpu.matmul %538, %19, %cst_143 {dimension_numbers = #tpu.dot_dimension_numbers<[1], [0], [0], [1], [0, 0, 1, 1], [], []>} : vector<8x128xbf16>, vector<128x512xbf16>, vector<8x512xf32> -> vector<8x512xf32>
    %540 = arith.addf %537, %539 : vector<8x512xf32>
    %541 = vector.extract_strided_slice %540 {offsets = [0, 0], sizes = [8, 128], strides = [1, 1]} : vector<8x512xf32> to vector<8x128xf32>
    %542 = arith.negf %541 : vector<8x128xf32>
    %543 = math.exp %542 : vector<8x128xf32>
    %cst_144 = arith.constant 1.000000e+00 : f32
    %544 = vector.broadcast %cst_144 : f32 to vector<8x128xf32>
    %545 = arith.addf %544, %543 : vector<8x128xf32>
    %546 = arith.divf %544, %545 : vector<8x128xf32>
    %547 = vector.extract_strided_slice %540 {offsets = [0, 128], sizes = [8, 128], strides = [1, 1]} : vector<8x512xf32> to vector<8x128xf32>
    %548 = arith.negf %547 : vector<8x128xf32>
    %549 = math.exp %548 : vector<8x128xf32>
    %cst_145 = arith.constant 1.000000e+00 : f32
    %550 = vector.broadcast %cst_145 : f32 to vector<8x128xf32>
    %551 = arith.addf %550, %549 : vector<8x128xf32>
    %552 = arith.divf %550, %551 : vector<8x128xf32>
    %553 = vector.extract_strided_slice %540 {offsets = [0, 256], sizes = [8, 128], strides = [1, 1]} : vector<8x512xf32> to vector<8x128xf32>
    %554 = math.tanh %553 : vector<8x128xf32>
    %555 = vector.extract_strided_slice %540 {offsets = [0, 384], sizes = [8, 128], strides = [1, 1]} : vector<8x512xf32> to vector<8x128xf32>
    %556 = arith.negf %555 : vector<8x128xf32>
    %557 = math.exp %556 : vector<8x128xf32>
    %cst_146 = arith.constant 1.000000e+00 : f32
    %558 = vector.broadcast %cst_146 : f32 to vector<8x128xf32>
    %559 = arith.addf %558, %557 : vector<8x128xf32>
    %560 = arith.divf %558, %559 : vector<8x128xf32>
    %561 = arith.mulf %552, %490 : vector<8x128xf32>
    %562 = arith.mulf %546, %554 : vector<8x128xf32>
    %563 = arith.addf %561, %562 : vector<8x128xf32>
    %564 = math.tanh %563 : vector<8x128xf32>
    %565 = arith.mulf %560, %564 : vector<8x128xf32>
    %566 = arith.index_cast %c7_i32_139 : i32 to index
    %c0_147 = arith.constant 0 : index
    %c0_148 = arith.constant 0 : index
    %567 = vector.load %arg13[%566, %c0_147, %c0_148] : memref<8x8x256xf32, #tpu.memory_space<vmem>>, vector<1x8x128xf32>
    %568 = vector.shape_cast %567 : vector<1x8x128xf32> to vector<8x128xf32>
    %569 = vector.shape_cast %565 : vector<8x128xf32> to vector<1x8x128xf32>
    tpu.vector_store %arg13[%566, %c0_147, %c0_148], %569 {strides = array<i32>} : memref<8x8x256xf32, #tpu.memory_space<vmem>>, vector<1x8x128xf32>,
    %570 = arith.index_cast %533 : i32 to index
    %c0_149 = arith.constant 0 : index
    %c0_150 = arith.constant 0 : index
    %571 = vector.load %arg12[%570, %c0_149, %c0_150] : memref<8x8x512xbf16, #tpu.memory_space<vmem>>, vector<1x8x512xbf16>
    %572 = vector.shape_cast %571 : vector<1x8x512xbf16> to vector<8x512xbf16>
    %573 = arith.extf %572 : vector<8x512xbf16> to vector<8x512xf32>
    %574 = arith.truncf %528 : vector<8x128xf32> to vector<8x128xbf16>
    %cst_151 = arith.constant dense<0.000000e+00> : vector<8x512xf32>
    %575 = tpu.matmul %574, %20, %cst_151 {dimension_numbers = #tpu.dot_dimension_numbers<[1], [0], [0], [1], [0, 0, 1, 1], [], []>} : vector<8x128xbf16>, vector<128x512xbf16>, vector<8x512xf32> -> vector<8x512xf32>
    %576 = arith.addf %573, %575 : vector<8x512xf32>
    %577 = vector.extract_strided_slice %576 {offsets = [0, 0], sizes = [8, 128], strides = [1, 1]} : vector<8x512xf32> to vector<8x128xf32>
    %578 = arith.negf %577 : vector<8x128xf32>
    %579 = math.exp %578 : vector<8x128xf32>
    %cst_152 = arith.constant 1.000000e+00 : f32
    %580 = vector.broadcast %cst_152 : f32 to vector<8x128xf32>
    %581 = arith.addf %580, %579 : vector<8x128xf32>
    %582 = arith.divf %580, %581 : vector<8x128xf32>
    %583 = vector.extract_strided_slice %576 {offsets = [0, 128], sizes = [8, 128], strides = [1, 1]} : vector<8x512xf32> to vector<8x128xf32>
    %584 = arith.negf %583 : vector<8x128xf32>
    %585 = math.exp %584 : vector<8x128xf32>
    %cst_153 = arith.constant 1.000000e+00 : f32
    %586 = vector.broadcast %cst_153 : f32 to vector<8x128xf32>
    %587 = arith.addf %586, %585 : vector<8x128xf32>
    %588 = arith.divf %586, %587 : vector<8x128xf32>
    %589 = vector.extract_strided_slice %576 {offsets = [0, 256], sizes = [8, 128], strides = [1, 1]} : vector<8x512xf32> to vector<8x128xf32>
    %590 = math.tanh %589 : vector<8x128xf32>
    %591 = vector.extract_strided_slice %576 {offsets = [0, 384], sizes = [8, 128], strides = [1, 1]} : vector<8x512xf32> to vector<8x128xf32>
    %592 = arith.negf %591 : vector<8x128xf32>
    %593 = math.exp %592 : vector<8x128xf32>
    %cst_154 = arith.constant 1.000000e+00 : f32
    %594 = vector.broadcast %cst_154 : f32 to vector<8x128xf32>
    %595 = arith.addf %594, %593 : vector<8x128xf32>
    %596 = arith.divf %594, %595 : vector<8x128xf32>
    %597 = arith.mulf %588, %526 : vector<8x128xf32>
    %598 = arith.mulf %582, %590 : vector<8x128xf32>
    %599 = arith.addf %597, %598 : vector<8x128xf32>
    %600 = math.tanh %599 : vector<8x128xf32>
    %601 = arith.mulf %596, %600 : vector<8x128xf32>
    %602 = arith.index_cast %533 : i32 to index
    %c0_155 = arith.constant 0 : index
    %c128_156 = arith.constant 128 : index
    %603 = vector.load %arg13[%602, %c0_155, %c128_156] : memref<8x8x256xf32, #tpu.memory_space<vmem>>, vector<1x8x128xf32>
    %604 = vector.shape_cast %603 : vector<1x8x128xf32> to vector<8x128xf32>
    %605 = vector.shape_cast %601 : vector<8x128xf32> to vector<1x8x128xf32>
    tpu.vector_store %arg13[%602, %c0_155, %c128_156], %605 {strides = array<i32>} : memref<8x8x256xf32, #tpu.memory_space<vmem>>, vector<1x8x128xf32>,
    %c8_i32 = arith.constant 8 : i32
    %c0_157 = arith.constant 0 : index
    %c0_158 = arith.constant 0 : index
    %c0_159 = arith.constant 0 : index
    %606 = vector.load %arg13[%c0_157, %c0_158, %c0_159] : memref<8x8x256xf32, #tpu.memory_space<vmem>>, vector<8x8x256xf32>
    %607 = vector.shape_cast %606 : vector<8x8x256xf32> to vector<64x256xf32>
    %608 = arith.truncf %607 : vector<64x256xf32> to vector<64x256xbf16>
    %c0_160 = arith.constant 0 : index
    %c0_161 = arith.constant 0 : index
    %609 = vector.load %arg8[%c0_160, %c0_161] : memref<256x128xbf16, #tpu.memory_space<vmem>>, vector<256x128xbf16>
    %cst_162 = arith.constant dense<0.000000e+00> : vector<64x128xf32>
    %610 = tpu.matmul %608, %609, %cst_162 {dimension_numbers = #tpu.dot_dimension_numbers<[1], [0], [0], [1], [0, 0, 1, 1], [], []>} : vector<64x256xbf16>, vector<256x128xbf16>, vector<64x128xf32> -> vector<64x128xf32>
    %c0_163 = arith.constant 0 : index
    %c0_164 = arith.constant 0 : index
    %611 = vector.load %arg9[%c0_163, %c0_164] : memref<1x128xf32, #tpu.memory_space<vmem>>, vector<1x128xf32>
    %612 = vector.broadcast %611 : vector<1x128xf32> to vector<64x128xf32>
    %613 = arith.addf %610, %612 : vector<64x128xf32>
    %614 = vector.shape_cast %613 : vector<64x128xf32> to vector<8x8x128xf32>
    %c0_165 = arith.constant 0 : index
    %c0_166 = arith.constant 0 : index
    %c0_167 = arith.constant 0 : index
    %615 = vector.load %arg10[%c0_165, %c0_166, %c0_167] : memref<8x8x128xf32, #tpu.memory_space<vmem>>, vector<8x8x128xf32>
    tpu.vector_store %arg10[%c0_165, %c0_166, %c0_167], %614 {strides = array<i32>} : memref<8x8x128xf32, #tpu.memory_space<vmem>>, vector<8x8x128xf32>,
    return
  }
  func.func @transform_0(%arg0: i32) -> (i32, i32, i32) {
    %c0_i32 = arith.constant 0 : i32
    %c0_i32_0 = arith.constant 0 : i32
    %c0_i32_1 = arith.constant 0 : i32
    return %c0_i32, %arg0, %c0_i32_0 : i32, i32, i32
  }
  func.func @transform_1(%arg0: i32) -> (i32, i32) {
    %c0_i32 = arith.constant 0 : i32
    %c0_i32_0 = arith.constant 0 : i32
    %c0_i32_1 = arith.constant 0 : i32
    return %c0_i32, %c0_i32_0 : i32, i32
  }
  func.func @transform_2(%arg0: i32) -> (i32, i32) {
    %c0_i32 = arith.constant 0 : i32
    %c0_i32_0 = arith.constant 0 : i32
    %c0_i32_1 = arith.constant 0 : i32
    return %c0_i32, %c0_i32_0 : i32, i32
  }
  func.func @transform_3(%arg0: i32) -> (i32, i32) {
    %c0_i32 = arith.constant 0 : i32
    %c0_i32_0 = arith.constant 0 : i32
    %c0_i32_1 = arith.constant 0 : i32
    return %c0_i32, %c0_i32_0 : i32, i32
  }
  func.func @transform_4(%arg0: i32) -> (i32, i32) {
    %c0_i32 = arith.constant 0 : i32
    %c0_i32_0 = arith.constant 0 : i32
    %c0_i32_1 = arith.constant 0 : i32
    return %c0_i32, %c0_i32_0 : i32, i32
  }
  func.func @transform_5(%arg0: i32) -> (i32, i32) {
    %c0_i32 = arith.constant 0 : i32
    %c0_i32_0 = arith.constant 0 : i32
    %c0_i32_1 = arith.constant 0 : i32
    return %c0_i32, %c0_i32_0 : i32, i32
  }
  func.func @transform_6(%arg0: i32) -> (i32, i32) {
    %c0_i32 = arith.constant 0 : i32
    %c0_i32_0 = arith.constant 0 : i32
    %c0_i32_1 = arith.constant 0 : i32
    return %c0_i32, %c0_i32_0 : i32, i32
  }
  func.func @transform_7(%arg0: i32) -> (i32, i32) {
    %c0_i32 = arith.constant 0 : i32
    %c0_i32_0 = arith.constant 0 : i32
    %c0_i32_1 = arith.constant 0 : i32
    return %c0_i32, %c0_i32_0 : i32, i32
  }
  func.func @transform_8(%arg0: i32) -> (i32, i32) {
    %c0_i32 = arith.constant 0 : i32
    %c0_i32_0 = arith.constant 0 : i32
    %c0_i32_1 = arith.constant 0 : i32
    return %c0_i32, %c0_i32_0 : i32, i32
  }
  func.func @transform_9(%arg0: i32) -> (i32, i32, i32) {
    %c0_i32 = arith.constant 0 : i32
    %c0_i32_0 = arith.constant 0 : i32
    %c0_i32_1 = arith.constant 0 : i32
    return %c0_i32, %arg0, %c0_i32_0 : i32, i32, i32
  }
}

</mosaic_0001>

<llo_original>
// kernel: tpu_custom_call.1
$region0: #{tpu_custom_call.1}
  #allocation0 [shape = 'u32[]', space=smem, size = 0x4, offset = 0x4, fixed_abs, tag = 'smem constant byte address 0x4 - core index']
  #allocation1 [shape = 'u32[144,128]{1,0:T(1,128)}', space=vmem, size = 0x12000, scoped, tag = 'internal scratch']
  #allocation2 [shape = 'bf16[8,8,512]{2,1,0:T(8,128)(2,1)}', space=vmem, size = 0x10000, scoped, tag = 'scratch operand']
  #allocation3 [shape = 'bf16[8,8,512]{2,1,0:T(8,128)(2,1)}', space=vmem, size = 0x10000, scoped, tag = 'scratch operand']
  #allocation4 [shape = 'f32[8,8,256]{2,1,0:T(8,128)}', space=vmem, size = 0x10000, scoped, tag = 'scratch operand']
  %s0 = inlined_call_operand.hbm [shape: f32[8,8,32], index: 0, kind: input, shape index: {}]
  %s1 = inlined_call_operand.hbm [shape: bf16[32,512], index: 1, kind: input, shape index: {}]
  %s2 = inlined_call_operand.hbm [shape: bf16[128,512], index: 2, kind: input, shape index: {}]
  %s3 = inlined_call_operand.vmem [shape: f32[1,512], index: 3, kind: input, shape index: {}]
  %s4 = inlined_call_operand.hbm [shape: bf16[32,512], index: 4, kind: input, shape index: {}]
  %s5 = inlined_call_operand.hbm [shape: bf16[128,512], index: 5, kind: input, shape index: {}]
  %s6 = inlined_call_operand.vmem [shape: f32[1,512], index: 6, kind: input, shape index: {}]
  %s7 = inlined_call_operand.hbm [shape: bf16[256,128], index: 7, kind: input, shape index: {}]
  %s8 = inlined_call_operand.vmem [shape: f32[1,128], index: 8, kind: input, shape index: {}]
  %s9 = inlined_call_operand.hbm [shape: f32[8,8,128], index: 9, kind: output, shape index: {}]
  %s10 = sld [smem:[#allocation0]]
  $region70: #{tpu_custom_call.1} parent=0
    _
  %s12 = ssub.s32 1, %s10
  %s13 = scalar_select 0, %s12, %s10
  $region1: #{tpu_custom_call.1} parent=0
    #allocation5 [shape = 'u8[32768]{0}', space=vmem, size = 0x8000, scoped, tag = 'input window, operand 0, single buffered']
    #allocation6 [shape = 's32[1]{0}', space=sflag, size = 0x4, scoped, tag = 'scoped memory for tpu_custom_call.1']
    #allocation7 [shape = 's32[1]{0}', space=sflag, size = 0x4, scoped, tag = 'scoped memory for tpu_custom_call.1']
    #allocation8 [shape = 'u8[32768]{0}', space=vmem, size = 0x8000, scoped, tag = 'input window, operand 1, single buffered']
    #allocation9 [shape = 's32[1]{0}', space=sflag, size = 0x4, scoped, tag = 'scoped memory for tpu_custom_call.1']
    #allocation10 [shape = 'u8[131072]{0}', space=vmem, size = 0x20000, scoped, tag = 'input window, operand 2, single buffered']
    #allocation11 [shape = 'u8[32768]{0}', space=vmem, size = 0x8000, scoped, tag = 'input window, operand 4, single buffered']
    #allocation12 [shape = 's32[1]{0}', space=sflag, size = 0x4, scoped, tag = 'scoped memory for tpu_custom_call.1']
    #allocation13 [shape = 'u8[131072]{0}', space=vmem, size = 0x20000, scoped, tag = 'input window, operand 5, single buffered']
    #allocation14 [shape = 'u8[65536]{0}', space=vmem, size = 0x10000, scoped, tag = 'input window, operand 7, single buffered']
    #allocation15 [shape = 's32[1]{0}', space=sflag, size = 0x4, scoped, tag = 'scoped memory for tpu_custom_call.1']
    #allocation16 [shape = 'u8[32768]{0}', space=vmem, size = 0x8000, scoped, tag = 'output window, operand 0, single buffered']
    %14 = vsyncpa [#allocation6], 0
    %15 = vsyncpa [#allocation9], 0
    %16 = vsyncpa [#allocation12], 0
    %17 = vsyncpa [#allocation15], 0
    %18 = vsyncpa [#allocation7], 0
    // Predicated region
    $region2: #{tpu_custom_call.1} parent=1 // pred_check
      _
    $region3: #{tpu_custom_call.1} parent=1 // pred_check_branch
      %20 = sbr.rel (0) target = $region5
    $region4: #{tpu_custom_call.1} parent=1 // pred_region
      %s22 = ssub.s32 1024, 1024
      %23 = vsyncadd [#allocation6], %s22
      %s24 = sshll.u32 [#allocation5], 4
      %s25 = int_to_ptr.vmem [resolvable:$true] %s24
      %30 = dma.hbm_to_vmem [thread:$0]  %s0, 1024, %s25, [#allocation6], 128, 128, 8
    $region5: #{tpu_custom_call.1} parent=1 // pred_fallthru
      _
    // Predicated region
    $region6: #{tpu_custom_call.1} parent=1 // pred_check
      _
    $region7: #{tpu_custom_call.1} parent=1 // pred_check_branch
      %32 = sbr.rel (0) target = $region9
    $region8: #{tpu_custom_call.1} parent=1 // pred_region
      %s34 = ssub.s32 1024, 1024
      %35 = vsyncadd [#allocation9], %s34
      %s36 = sshll.u32 [#allocation8], 4
      %s37 = int_to_ptr.vmem [resolvable:$true] %s36
      %42 = dma.hbm_to_vmem [thread:$0]  %s1, 1024, %s37, [#allocation9], 256, 256, 16
    $region9: #{tpu_custom_call.1} parent=1 // pred_fallthru
      _
    // Predicated region
    $region10: #{tpu_custom_call.1} parent=1 // pred_check
      _
    $region11: #{tpu_custom_call.1} parent=1 // pred_check_branch
      %44 = sbr.rel (0) target = $region13
    $region12: #{tpu_custom_call.1} parent=1 // pred_region
      %s46 = ssub.s32 4096, 4096
      %47 = vsyncadd [#allocation9], %s46
      %s48 = sshll.u32 [#allocation10], 4
      %s49 = int_to_ptr.vmem [resolvable:$true] %s48
      %54 = dma.hbm_to_vmem [thread:$0]  %s2, 4096, %s49, [#allocation9], 256, 256, 16
    $region13: #{tpu_custom_call.1} parent=1 // pred_fallthru
      _
    // Predicated region
    $region14: #{tpu_custom_call.1} parent=1 // pred_check
      _
    $region15: #{tpu_custom_call.1} parent=1 // pred_check_branch
      %56 = sbr.rel (0) target = $region17
    $region16: #{tpu_custom_call.1} parent=1 // pred_region
      _
    $region17: #{tpu_custom_call.1} parent=1 // pred_fallthru
      _
    // Predicated region
    $region18: #{tpu_custom_call.1} parent=1 // pred_check
      _
    $region19: #{tpu_custom_call.1} parent=1 // pred_check_branch
      %58 = sbr.rel (0) target = $region21
    $region20: #{tpu_custom_call.1} parent=1 // pred_region
      %s60 = ssub.s32 1024, 1024
      %61 = vsyncadd [#allocation12], %s60
      %s62 = sshll.u32 [#allocation11], 4
      %s63 = int_to_ptr.vmem [resolvable:$true] %s62
      %68 = dma.hbm_to_vmem [thread:$0]  %s4, 1024, %s63, [#allocation12], 256, 256, 16
    $region21: #{tpu_custom_call.1} parent=1 // pred_fallthru
      _
    // Predicated region
    $region22: #{tpu_custom_call.1} parent=1 // pred_check
      _
    $region23: #{tpu_custom_call.1} parent=1 // pred_check_branch
      %70 = sbr.rel (0) target = $region25
    $region24: #{tpu_custom_call.1} parent=1 // pred_region
      %s72 = ssub.s32 4096, 4096
      %73 = vsyncadd [#allocation12], %s72
      %s74 = sshll.u32 [#allocation13], 4
      %s75 = int_to_ptr.vmem [resolvable:$true] %s74
      %80 = dma.hbm_to_vmem [thread:$0]  %s5, 4096, %s75, [#allocation12], 256, 256, 16
    $region25: #{tpu_custom_call.1} parent=1 // pred_fallthru
      _
    // Predicated region
    $region26: #{tpu_custom_call.1} parent=1 // pred_check
      _
    $region27: #{tpu_custom_call.1} parent=1 // pred_check_branch
      %82 = sbr.rel (0) target = $region29
    $region28: #{tpu_custom_call.1} parent=1 // pred_region
      _
    $region29: #{tpu_custom_call.1} parent=1 // pred_fallthru
      _
    // Predicated region
    $region30: #{tpu_custom_call.1} parent=1 // pred_check
      _
    $region31: #{tpu_custom_call.1} parent=1 // pred_check_branch
      %84 = sbr.rel (0) target = $region33
    $region32: #{tpu_custom_call.1} parent=1 // pred_region
      %s86 = ssub.s32 2048, 2048
      %87 = vsyncadd [#allocation15], %s86
      %s88 = sshll.u32 [#allocation14], 4
      %s89 = int_to_ptr.vmem [resolvable:$true] %s88
      %94 = dma.hbm_to_vmem [thread:$0]  %s7, 2048, %s89, [#allocation15], 64, 64, 4
    $region33: #{tpu_custom_call.1} parent=1 // pred_fallthru
      _
    // Predicated region
    $region34: #{tpu_custom_call.1} parent=1 // pred_check
      _
    $region35: #{tpu_custom_call.1} parent=1 // pred_check_branch
      %96 = sbr.rel (0) target = $region37
    $region36: #{tpu_custom_call.1} parent=1 // pred_region
      _
    $region37: #{tpu_custom_call.1} parent=1 // pred_fallthru
      _
    // Predicated region
    $region38: #{tpu_custom_call.1} parent=1 // pred_check
      _
    $region39: #{tpu_custom_call.1} parent=1 // pred_check_branch
      %98 = sbr.rel (0) target = $region41
    $region40: #{tpu_custom_call.1} parent=1 // pred_region
      %99 = dma.done [#allocation6], 1024
    $region41: #{tpu_custom_call.1} parent=1 // pred_fallthru
      _
    // Predicated region
    $region42: #{tpu_custom_call.1} parent=1 // pred_check
      _
    $region43: #{tpu_custom_call.1} parent=1 // pred_check_branch
      %101 = sbr.rel (0) target = $region45
    $region44: #{tpu_custom_call.1} parent=1 // pred_region
      %102 = dma.done [#allocation9], 1024
    $region45: #{tpu_custom_call.1} parent=1 // pred_fallthru
      _
    // Predicated region
    $region46: #{tpu_custom_call.1} parent=1 // pred_check
      _
    $region47: #{tpu_custom_call.1} parent=1 // pred_check_branch
      %104 = sbr.rel (0) target = $region49
    $region48: #{tpu_custom_call.1} parent=1 // pred_region
      %105 = dma.done [#allocation9], 4096
    $region49: #{tpu_custom_call.1} parent=1 // pred_fallthru
      _
    // Predicated region
    $region50: #{tpu_custom_call.1} parent=1 // pred_check
      _
    $region51: #{tpu_custom_call.1} parent=1 // pred_check_branch
      %107 = sbr.rel (0) target = $region53
    $region52: #{tpu_custom_call.1} parent=1 // pred_region
      %108 = dma.done [#allocation12], 1024
    $region53: #{tpu_custom_call.1} parent=1 // pred_fallthru
      _
    // Predicated region
    $region54: #{tpu_custom_call.1} parent=1 // pred_check
      _
    $region55: #{tpu_custom_call.1} parent=1 // pred_check_branch
      %110 = sbr.rel (0) target = $region57
    $region56: #{tpu_custom_call.1} parent=1 // pred_region
      %111 = dma.done [#allocation12], 4096
    $region57: #{tpu_custom_call.1} parent=1 // pred_fallthru
      _
    // Predicated region
    $region58: #{tpu_custom_call.1} parent=1 // pred_check
      _
    $region59: #{tpu_custom_call.1} parent=1 // pred_check_branch
      %113 = sbr.rel (0) target = $region61
    $region60: #{tpu_custom_call.1} parent=1 // pred_region
      %114 = dma.done [#allocation15], 2048
    $region61: #{tpu_custom_call.1} parent=1 // pred_fallthru
      _
    %v116 = vld [vmem:[#allocation5] sm:$0xff]
    %v117 = vld [vmem:[#allocation5 + $0x8] sm:$0xff]
    %v118 = vld [vmem:[#allocation5 + $0x10] sm:$0xff]
    %v119 = vld [vmem:[#allocation5 + $0x18] sm:$0xff]
    %v120 = vld [vmem:[#allocation5 + $0x20] sm:$0xff]
    %v121 = vld [vmem:[#allocation5 + $0x28] sm:$0xff]
    %v122 = vld [vmem:[#allocation5 + $0x30] sm:$0xff]
    %v123 = vld [vmem:[#allocation5 + $0x38] sm:$0xff]
    %v124 = vpack.c.bf16 %v117, %v116
    %v125 = vpack.c.bf16 %v119, %v118
    %v126 = vpack.c.bf16 %v121, %v120
    %v127 = vpack.c.bf16 %v123, %v122
    %v128 = vld [vmem:[#allocation8] sm:$0xff]
    %v129 = vld [vmem:[#allocation8 + $0x8] sm:$0xff]
    %v130 = vld [vmem:[#allocation8 + $0x10] sm:$0xff]
    %v131 = vld [vmem:[#allocation8 + $0x18] sm:$0xff]
    %v132 = vld [vmem:[#allocation8 + $0x20] sm:$0xff]
    %v133 = vld [vmem:[#allocation8 + $0x28] sm:$0xff]
    %v134 = vld [vmem:[#allocation8 + $0x30] sm:$0xff]
    %v135 = vld [vmem:[#allocation8 + $0x38] sm:$0xff]
    %v136 = vld [vmem:[%s3] sm:$0xf]
    %v138 = vlaneseq
    %v139 = vshrl.u32 %v138, 7
    %v140 = vsub.s32 0, %v139
    %v141 = vrot.slane %v136, %v140
    %v142 = vlaneseq
    %v143 = vshrl.u32 %v142, 7
    %v144 = vsub.s32 1, %v143
    %v145 = vrot.slane %v136, %v144
    %v146 = vlaneseq
    %v147 = vshrl.u32 %v146, 7
    %v148 = vsub.s32 2, %v147
    %v149 = vrot.slane %v136, %v148
    %v150 = vlaneseq
    %v151 = vshrl.u32 %v150, 7
    %v152 = vsub.s32 3, %v151
    %v153 = vrot.slane %v136, %v152
    %v166 = vunpack.c.l.b16 %v128
    %v167 = vunpack.c.h.b16 %v128
    %v168 = vunpack.c.l.b16 %v129
    %v169 = vunpack.c.h.b16 %v129
    %v170 = vunpack.c.l.b16 %v130
    %v171 = vunpack.c.h.b16 %v130
    %v172 = vunpack.c.l.b16 %v131
    %v173 = vunpack.c.h.b16 %v131
    %v174 = vunpack.c.l.b16 %v132
    %v175 = vunpack.c.h.b16 %v132
    %v176 = vunpack.c.l.b16 %v133
    %v177 = vunpack.c.h.b16 %v133
    %v178 = vunpack.c.l.b16 %v134
    %v179 = vunpack.c.h.b16 %v134
    %v180 = vunpack.c.l.b16 %v135
    %v181 = vunpack.c.h.b16 %v135
    %v182 = vpack.c.b16 %v170, %v166
    %v183 = vpack.c.b16 %v171, %v167
    %v184 = vpack.c.b16 %v172, %v168
    %v185 = vpack.c.b16 %v173, %v169
    %v186 = vpack.c.b16 %v178, %v174
    %v187 = vpack.c.b16 %v179, %v175
    %v188 = vpack.c.b16 %v180, %v176
    %v189 = vpack.c.b16 %v181, %v177
    %vm198 = vcmask 261120
    %v200 = vsel %vm198, %v124, 0
    %v203 = vsel %vm198, %v125, 0
    %v206 = vsel %vm198, %v126, 0
    %v209 = vsel %vm198, %v127, 0
    %211 = vmatprep.subr.bf16.mxu0 0
    %212 = vmatpush1.bf16.msra.mxu0 0
    %213 = vmatprep.subr.bf16.mxu0 0
    %214 = vmatpush1.bf16.msra.mxu0 0
    %215 = vmatprep.subr.bf16.mxu0 0
    %216 = vmatpush1.bf16.msra.mxu0 0
    %217 = vmatprep.subr.bf16.mxu0 0
    %218 = vmatpush1.bf16.msra.mxu0 0
    %219 = vmatprep.subr.bf16.mxu0 0
    %220 = vmatpush1.bf16.msra.mxu0 0
    %221 = vmatprep.subr.bf16.mxu0 0
    %222 = vmatpush1.bf16.msra.mxu0 0
    %223 = vmatprep.subr.bf16.mxu0 %v187
    %224 = vmatpush1.bf16.msra.mxu0 %v186
    %225 = vmatprep.subr.bf16.mxu0 %v183
    %226 = vmatpush1.bf16.msra.mxu0 %v182
    %227 = vmatprep.subr.bf16.mxu0 0
    %228 = vmatpush2.bf16.msra.mxu0 0
    %229 = vmatprep.subr.bf16.mxu0 0
    %230 = vmatpush2.bf16.msra.mxu0 0
    %231 = vmatprep.subr.bf16.mxu0 0
    %232 = vmatpush2.bf16.msra.mxu0 0
    %233 = vmatprep.subr.bf16.mxu0 0
    %234 = vmatpush2.bf16.msra.mxu0 0
    %235 = vmatprep.subr.bf16.mxu0 0
    %236 = vmatpush2.bf16.msra.mxu0 0
    %237 = vmatprep.subr.bf16.mxu0 0
    %238 = vmatpush2.bf16.msra.mxu0 0
    %239 = vmatprep.subr.bf16.mxu0 0
    %240 = vmatpush2.bf16.msra.mxu0 0
    %241 = vmatprep.subr.bf16.mxu0 0
    %242 = vmatpush2.bf16.msra.mxu0 0
    %243 = vmatprep.mubr.bf16.mxu0 0
    %244 = vmatmul.mubr.bf16.gmra.mxu0 %v200
    %v245 = vpop.f32.mrf.mxu0
    %v246 = vadd.f32 %v141, %v245
    %v247 = vpop.f32.mrf.mxu0
    %v248 = vadd.f32 %v145, %v247
    %v249 = vpop.f32.mrf.mxu0
    %v250 = vadd.f32 %v141, %v249
    %v251 = vpop.f32.mrf.mxu0
    %v252 = vadd.f32 %v145, %v251
    %253 = vmatprep.mubr.bf16.mxu0 0
    %254 = vmatmul.mubr.bf16.gmra.mxu0 %v203
    %v255 = vpop.f32.mrf.mxu0
    %v256 = vadd.f32 %v141, %v255
    %v257 = vpop.f32.mrf.mxu0
    %v258 = vadd.f32 %v145, %v257
    %v259 = vpop.f32.mrf.mxu0
    %v260 = vadd.f32 %v141, %v259
    %v261 = vpop.f32.mrf.mxu0
    %v262 = vadd.f32 %v145, %v261
    %263 = vmatprep.mubr.bf16.mxu0 0
    %264 = vmatmul.mubr.bf16.gmra.mxu0 %v206
    %v265 = vpop.f32.mrf.mxu0
    %v266 = vadd.f32 %v141, %v265
    %v267 = vpop.f32.mrf.mxu0
    %v268 = vadd.f32 %v145, %v267
    %v269 = vpop.f32.mrf.mxu0
    %v270 = vadd.f32 %v141, %v269
    %v271 = vpop.f32.mrf.mxu0
    %v272 = vadd.f32 %v145, %v271
    %273 = vmatprep.mubr.bf16.mxu0 0
    %274 = vmatmul.mubr.bf16.gmra.mxu0 %v209
    %v275 = vpop.f32.mrf.mxu0
    %v276 = vadd.f32 %v141, %v275
    %v277 = vpop.f32.mrf.mxu0
    %v278 = vadd.f32 %v145, %v277
    %v279 = vpop.f32.mrf.mxu0
    %v280 = vadd.f32 %v141, %v279
    %v281 = vpop.f32.mrf.mxu0
    %v282 = vadd.f32 %v145, %v281
    %283 = vdwg.mxu0
    %284 = vmatprep.subr.bf16.mxu0 0
    %285 = vmatpush1.bf16.msra.mxu0 0
    %286 = vmatprep.subr.bf16.mxu0 0
    %287 = vmatpush1.bf16.msra.mxu0 0
    %288 = vmatprep.subr.bf16.mxu0 0
    %289 = vmatpush1.bf16.msra.mxu0 0
    %290 = vmatprep.subr.bf16.mxu0 0
    %291 = vmatpush1.bf16.msra.mxu0 0
    %292 = vmatprep.subr.bf16.mxu0 0
    %293 = vmatpush1.bf16.msra.mxu0 0
    %294 = vmatprep.subr.bf16.mxu0 0
    %295 = vmatpush1.bf16.msra.mxu0 0
    %296 = vmatprep.subr.bf16.mxu0 %v189
    %297 = vmatpush1.bf16.msra.mxu0 %v188
    %298 = vmatprep.subr.bf16.mxu0 %v185
    %299 = vmatpush1.bf16.msra.mxu0 %v184
    %300 = vmatprep.subr.bf16.mxu0 0
    %301 = vmatpush2.bf16.msra.mxu0 0
    %302 = vmatprep.subr.bf16.mxu0 0
    %303 = vmatpush2.bf16.msra.mxu0 0
    %304 = vmatprep.subr.bf16.mxu0 0
    %305 = vmatpush2.bf16.msra.mxu0 0
    %306 = vmatprep.subr.bf16.mxu0 0
    %307 = vmatpush2.bf16.msra.mxu0 0
    %308 = vmatprep.subr.bf16.mxu0 0
    %309 = vmatpush2.bf16.msra.mxu0 0
    %310 = vmatprep.subr.bf16.mxu0 0
    %311 = vmatpush2.bf16.msra.mxu0 0
    %312 = vmatprep.subr.bf16.mxu0 0
    %313 = vmatpush2.bf16.msra.mxu0 0
    %314 = vmatprep.subr.bf16.mxu0 0
    %315 = vmatpush2.bf16.msra.mxu0 0
    %316 = vmatprep.mubr.bf16.mxu0 0
    %317 = vmatmul.mubr.bf16.gmra.mxu0 %v200
    %v318 = vpop.f32.mrf.mxu0
    %v319 = vadd.f32 %v149, %v318
    %v320 = vpop.f32.mrf.mxu0
    %v321 = vadd.f32 %v153, %v320
    %v322 = vpop.f32.mrf.mxu0
    %v323 = vadd.f32 %v149, %v322
    %v324 = vpop.f32.mrf.mxu0
    %v325 = vadd.f32 %v153, %v324
    %326 = vmatprep.mubr.bf16.mxu0 0
    %327 = vmatmul.mubr.bf16.gmra.mxu0 %v203
    %v328 = vpop.f32.mrf.mxu0
    %v329 = vadd.f32 %v149, %v328
    %v330 = vpop.f32.mrf.mxu0
    %v331 = vadd.f32 %v153, %v330
    %v332 = vpop.f32.mrf.mxu0
    %v333 = vadd.f32 %v149, %v332
    %v334 = vpop.f32.mrf.mxu0
    %v335 = vadd.f32 %v153, %v334
    %336 = vmatprep.mubr.bf16.mxu0 0
    %337 = vmatmul.mubr.bf16.gmra.mxu0 %v206
    %v338 = vpop.f32.mrf.mxu0
    %v339 = vadd.f32 %v149, %v338
    %v340 = vpop.f32.mrf.mxu0
    %v341 = vadd.f32 %v153, %v340
    %v342 = vpop.f32.mrf.mxu0
    %v343 = vadd.f32 %v149, %v342
    %v344 = vpop.f32.mrf.mxu0
    %v345 = vadd.f32 %v153, %v344
    %346 = vmatprep.mubr.bf16.mxu0 0
    %347 = vmatmul.mubr.bf16.gmra.mxu0 %v209
    %v348 = vpop.f32.mrf.mxu0
    %v349 = vadd.f32 %v149, %v348
    %v350 = vpop.f32.mrf.mxu0
    %v351 = vadd.f32 %v153, %v350
    %v352 = vpop.f32.mrf.mxu0
    %v353 = vadd.f32 %v149, %v352
    %v354 = vpop.f32.mrf.mxu0
    %v355 = vadd.f32 %v153, %v354
    %356 = vdwg.mxu0
    %v357 = vpack.c.bf16 %v246, %v246
    %v358 = vpack.c.bf16 %v248, %v248
    %v359 = vpack.c.bf16 %v319, %v319
    %v360 = vpack.c.bf16 %v321, %v321
    %v361 = vpack.c.bf16 %v250, %v250
    %v362 = vpack.c.bf16 %v252, %v252
    %v363 = vpack.c.bf16 %v323, %v323
    %v364 = vpack.c.bf16 %v325, %v325
    %v365 = vpack.c.bf16 %v256, %v256
    %v366 = vpack.c.bf16 %v258, %v258
    %v367 = vpack.c.bf16 %v329, %v329
    %v368 = vpack.c.bf16 %v331, %v331
    %v369 = vpack.c.bf16 %v260, %v260
    %v370 = vpack.c.bf16 %v262, %v262
    %v371 = vpack.c.bf16 %v333, %v333
    %v372 = vpack.c.bf16 %v335, %v335
    %v373 = vpack.c.bf16 %v266, %v266
    %v374 = vpack.c.bf16 %v268, %v268
    %v375 = vpack.c.bf16 %v339, %v339
    %v376 = vpack.c.bf16 %v341, %v341
    %v377 = vpack.c.bf16 %v270, %v270
    %v378 = vpack.c.bf16 %v272, %v272
    %v379 = vpack.c.bf16 %v343, %v343
    %v380 = vpack.c.bf16 %v345, %v345
    %v381 = vpack.c.bf16 %v276, %v276
    %v382 = vpack.c.bf16 %v278, %v278
    %v383 = vpack.c.bf16 %v349, %v349
    %v384 = vpack.c.bf16 %v351, %v351
    %v385 = vpack.c.bf16 %v280, %v280
    %v386 = vpack.c.bf16 %v282, %v282
    %v387 = vpack.c.bf16 %v353, %v353
    %v388 = vpack.c.bf16 %v355, %v355
    %v421 = vunpack.c.l.b16 %v357
    %v422 = vunpack.c.l.b16 %v358
    %v423 = vunpack.c.l.b16 %v359
    %v424 = vunpack.c.l.b16 %v360
    %v425 = vunpack.c.l.b16 %v361
    %v426 = vunpack.c.l.b16 %v362
    %v427 = vunpack.c.l.b16 %v363
    %v428 = vunpack.c.l.b16 %v364
    %v429 = vunpack.c.l.b16 %v365
    %v430 = vunpack.c.l.b16 %v366
    %v431 = vunpack.c.l.b16 %v367
    %v432 = vunpack.c.l.b16 %v368
    %v433 = vunpack.c.l.b16 %v369
    %v434 = vunpack.c.l.b16 %v370
    %v435 = vunpack.c.l.b16 %v371
    %v436 = vunpack.c.l.b16 %v372
    %v437 = vunpack.c.l.b16 %v373
    %v438 = vunpack.c.l.b16 %v374
    %v439 = vunpack.c.l.b16 %v375
    %v440 = vunpack.c.l.b16 %v376
    %v441 = vunpack.c.l.b16 %v377
    %v442 = vunpack.c.l.b16 %v378
    %v443 = vunpack.c.l.b16 %v379
    %v444 = vunpack.c.l.b16 %v380
    %v445 = vunpack.c.l.b16 %v381
    %v446 = vunpack.c.l.b16 %v382
    %v447 = vunpack.c.l.b16 %v383
    %v448 = vunpack.c.l.b16 %v384
    %v449 = vunpack.c.l.b16 %v385
    %v450 = vunpack.c.l.b16 %v386
    %v451 = vunpack.c.l.b16 %v387
    %v452 = vunpack.c.l.b16 %v388
    %v453 = vpack.c.b16 %v422, %v421
    %v454 = vpack.c.b16 %v424, %v423
    %v455 = vpack.c.b16 %v426, %v425
    %v456 = vpack.c.b16 %v428, %v427
    %v457 = vpack.c.b16 %v430, %v429
    %v458 = vpack.c.b16 %v432, %v431
    %v459 = vpack.c.b16 %v434, %v433
    %v460 = vpack.c.b16 %v436, %v435
    %v461 = vpack.c.b16 %v438, %v437
    %v462 = vpack.c.b16 %v440, %v439
    %v463 = vpack.c.b16 %v442, %v441
    %v464 = vpack.c.b16 %v444, %v443
    %v465 = vpack.c.b16 %v446, %v445
    %v466 = vpack.c.b16 %v448, %v447
    %v467 = vpack.c.b16 %v450, %v449
    %v468 = vpack.c.b16 %v452, %v451
    %485 = vst [vmem:[#allocation2] sm:$0xff] %v453
    %486 = vst [vmem:[#allocation2 + $0x8] sm:$0xff] %v454
    %487 = vst [vmem:[#allocation2 + $0x10] sm:$0xff] %v455
    %488 = vst [vmem:[#allocation2 + $0x18] sm:$0xff] %v456
    %489 = vst [vmem:[#allocation2 + $0x20] sm:$0xff] %v457
    %490 = vst [vmem:[#allocation2 + $0x28] sm:$0xff] %v458
    %491 = vst [vmem:[#allocation2 + $0x30] sm:$0xff] %v459
    %492 = vst [vmem:[#allocation2 + $0x38] sm:$0xff] %v460
    %493 = vst [vmem:[#allocation2 + $0x40] sm:$0xff] %v461
    %494 = vst [vmem:[#allocation2 + $0x48] sm:$0xff] %v462
    %495 = vst [vmem:[#allocation2 + $0x50] sm:$0xff] %v463
    %496 = vst [vmem:[#allocation2 + $0x58] sm:$0xff] %v464
    %497 = vst [vmem:[#allocation2 + $0x60] sm:$0xff] %v465
    %498 = vst [vmem:[#allocation2 + $0x68] sm:$0xff] %v466
    %499 = vst [vmem:[#allocation2 + $0x70] sm:$0xff] %v467
    %500 = vst [vmem:[#allocation2 + $0x78] sm:$0xff] %v468
    %v501 = vld [vmem:[#allocation11] sm:$0xff]
    %v502 = vld [vmem:[#allocation11 + $0x8] sm:$0xff]
    %v503 = vld [vmem:[#allocation11 + $0x10] sm:$0xff]
    %v504 = vld [vmem:[#allocation11 + $0x18] sm:$0xff]
    %v505 = vld [vmem:[#allocation11 + $0x20] sm:$0xff]
    %v506 = vld [vmem:[#allocation11 + $0x28] sm:$0xff]
    %v507 = vld [vmem:[#allocation11 + $0x30] sm:$0xff]
    %v508 = vld [vmem:[#allocation11 + $0x38] sm:$0xff]
    %v509 = vld [vmem:[%s6] sm:$0xf]
    %v511 = vlaneseq
    %v512 = vshrl.u32 %v511, 7
    %v513 = vsub.s32 0, %v512
    %v514 = vrot.slane %v509, %v513
    %v515 = vlaneseq
    %v516 = vshrl.u32 %v515, 7
    %v517 = vsub.s32 1, %v516
    %v518 = vrot.slane %v509, %v517
    %v519 = vlaneseq
    %v520 = vshrl.u32 %v519, 7
    %v521 = vsub.s32 2, %v520
    %v522 = vrot.slane %v509, %v521
    %v523 = vlaneseq
    %v524 = vshrl.u32 %v523, 7
    %v525 = vsub.s32 3, %v524
    %v526 = vrot.slane %v509, %v525
    %v539 = vunpack.c.l.b16 %v501
    %v540 = vunpack.c.h.b16 %v501
    %v541 = vunpack.c.l.b16 %v502
    %v542 = vunpack.c.h.b16 %v502
    %v543 = vunpack.c.l.b16 %v503
    %v544 = vunpack.c.h.b16 %v503
    %v545 = vunpack.c.l.b16 %v504
    %v546 = vunpack.c.h.b16 %v504
    %v547 = vunpack.c.l.b16 %v505
    %v548 = vunpack.c.h.b16 %v505
    %v549 = vunpack.c.l.b16 %v506
    %v550 = vunpack.c.h.b16 %v506
    %v551 = vunpack.c.l.b16 %v507
    %v552 = vunpack.c.h.b16 %v507
    %v553 = vunpack.c.l.b16 %v508
    %v554 = vunpack.c.h.b16 %v508
    %v555 = vpack.c.b16 %v543, %v539
    %v556 = vpack.c.b16 %v544, %v540
    %v557 = vpack.c.b16 %v545, %v541
    %v558 = vpack.c.b16 %v546, %v542
    %v559 = vpack.c.b16 %v551, %v547
    %v560 = vpack.c.b16 %v552, %v548
    %v561 = vpack.c.b16 %v553, %v549
    %v562 = vpack.c.b16 %v554, %v550
    %571 = vmatprep.subr.bf16.mxu0 0
    %572 = vmatpush1.bf16.msra.mxu0 0
    %573 = vmatprep.subr.bf16.mxu0 0
    %574 = vmatpush1.bf16.msra.mxu0 0
    %575 = vmatprep.subr.bf16.mxu0 0
    %576 = vmatpush1.bf16.msra.mxu0 0
    %577 = vmatprep.subr.bf16.mxu0 0
    %578 = vmatpush1.bf16.msra.mxu0 0
    %579 = vmatprep.subr.bf16.mxu0 0
    %580 = vmatpush1.bf16.msra.mxu0 0
    %581 = vmatprep.subr.bf16.mxu0 0
    %582 = vmatpush1.bf16.msra.mxu0 0
    %583 = vmatprep.subr.bf16.mxu0 %v560
    %584 = vmatpush1.bf16.msra.mxu0 %v559
    %585 = vmatprep.subr.bf16.mxu0 %v556
    %586 = vmatpush1.bf16.msra.mxu0 %v555
    %587 = vmatprep.subr.bf16.mxu0 0
    %588 = vmatpush2.bf16.msra.mxu0 0
    %589 = vmatprep.subr.bf16.mxu0 0
    %590 = vmatpush2.bf16.msra.mxu0 0
    %591 = vmatprep.subr.bf16.mxu0 0
    %592 = vmatpush2.bf16.msra.mxu0 0
    %593 = vmatprep.subr.bf16.mxu0 0
    %594 = vmatpush2.bf16.msra.mxu0 0
    %595 = vmatprep.subr.bf16.mxu0 0
    %596 = vmatpush2.bf16.msra.mxu0 0
    %597 = vmatprep.subr.bf16.mxu0 0
    %598 = vmatpush2.bf16.msra.mxu0 0
    %599 = vmatprep.subr.bf16.mxu0 0
    %600 = vmatpush2.bf16.msra.mxu0 0
    %601 = vmatprep.subr.bf16.mxu0 0
    %602 = vmatpush2.bf16.msra.mxu0 0
    %603 = vmatprep.mubr.bf16.mxu0 0
    %604 = vmatmul.mubr.bf16.gmra.mxu0 %v200
    %v605 = vpop.f32.mrf.mxu0
    %v606 = vadd.f32 %v514, %v605
    %v607 = vpop.f32.mrf.mxu0
    %v608 = vadd.f32 %v518, %v607
    %v609 = vpop.f32.mrf.mxu0
    %v610 = vadd.f32 %v514, %v609
    %v611 = vpop.f32.mrf.mxu0
    %v612 = vadd.f32 %v518, %v611
    %613 = vmatprep.mubr.bf16.mxu0 0
    %614 = vmatmul.mubr.bf16.gmra.mxu0 %v203
    %v615 = vpop.f32.mrf.mxu0
    %v616 = vadd.f32 %v514, %v615
    %v617 = vpop.f32.mrf.mxu0
    %v618 = vadd.f32 %v518, %v617
    %v619 = vpop.f32.mrf.mxu0
    %v620 = vadd.f32 %v514, %v619
    %v621 = vpop.f32.mrf.mxu0
    %v622 = vadd.f32 %v518, %v621
    %623 = vmatprep.mubr.bf16.mxu0 0
    %624 = vmatmul.mubr.bf16.gmra.mxu0 %v206
    %v625 = vpop.f32.mrf.mxu0
    %v626 = vadd.f32 %v514, %v625
    %v627 = vpop.f32.mrf.mxu0
    %v628 = vadd.f32 %v518, %v627
    %v629 = vpop.f32.mrf.mxu0
    %v630 = vadd.f32 %v514, %v629
    %v631 = vpop.f32.mrf.mxu0
    %v632 = vadd.f32 %v518, %v631
    %633 = vmatprep.mubr.bf16.mxu0 0
    %634 = vmatmul.mubr.bf16.gmra.mxu0 %v209
    %v635 = vpop.f32.mrf.mxu0
    %v636 = vadd.f32 %v514, %v635
    %v637 = vpop.f32.mrf.mxu0
    %v638 = vadd.f32 %v518, %v637
    %v639 = vpop.f32.mrf.mxu0
    %v640 = vadd.f32 %v514, %v639
    %v641 = vpop.f32.mrf.mxu0
    %v642 = vadd.f32 %v518, %v641
    %643 = vdwg.mxu0
    %644 = vmatprep.subr.bf16.mxu0 0
    %645 = vmatpush1.bf16.msra.mxu0 0
    %646 = vmatprep.subr.bf16.mxu0 0
    %647 = vmatpush1.bf16.msra.mxu0 0
    %648 = vmatprep.subr.bf16.mxu0 0
    %649 = vmatpush1.bf16.msra.mxu0 0
    %650 = vmatprep.subr.bf16.mxu0 0
    %651 = vmatpush1.bf16.msra.mxu0 0
    %652 = vmatprep.subr.bf16.mxu0 0
    %653 = vmatpush1.bf16.msra.mxu0 0
    %654 = vmatprep.subr.bf16.mxu0 0
    %655 = vmatpush1.bf16.msra.mxu0 0
    %656 = vmatprep.subr.bf16.mxu0 %v562
    %657 = vmatpush1.bf16.msra.mxu0 %v561
    %658 = vmatprep.subr.bf16.mxu0 %v558
    %659 = vmatpush1.bf16.msra.mxu0 %v557
    %660 = vmatprep.subr.bf16.mxu0 0
    %661 = vmatpush2.bf16.msra.mxu0 0
    %662 = vmatprep.subr.bf16.mxu0 0
    %663 = vmatpush2.bf16.msra.mxu0 0
    %664 = vmatprep.subr.bf16.mxu0 0
    %665 = vmatpush2.bf16.msra.mxu0 0
    %666 = vmatprep.subr.bf16.mxu0 0
    %667 = vmatpush2.bf16.msra.mxu0 0
    %668 = vmatprep.subr.bf16.mxu0 0
    %669 = vmatpush2.bf16.msra.mxu0 0
    %670 = vmatprep.subr.bf16.mxu0 0
    %671 = vmatpush2.bf16.msra.mxu0 0
    %672 = vmatprep.subr.bf16.mxu0 0
    %673 = vmatpush2.bf16.msra.mxu0 0
    %674 = vmatprep.subr.bf16.mxu0 0
    %675 = vmatpush2.bf16.msra.mxu0 0
    %676 = vmatprep.mubr.bf16.mxu0 0
    %677 = vmatmul.mubr.bf16.gmra.mxu0 %v200
    %v678 = vpop.f32.mrf.mxu0
    %v679 = vadd.f32 %v522, %v678
    %v680 = vpop.f32.mrf.mxu0
    %v681 = vadd.f32 %v526, %v680
    %v682 = vpop.f32.mrf.mxu0
    %v683 = vadd.f32 %v522, %v682
    %v684 = vpop.f32.mrf.mxu0
    %v685 = vadd.f32 %v526, %v684
    %686 = vmatprep.mubr.bf16.mxu0 0
    %687 = vmatmul.mubr.bf16.gmra.mxu0 %v203
    %v688 = vpop.f32.mrf.mxu0
    %v689 = vadd.f32 %v522, %v688
    %v690 = vpop.f32.mrf.mxu0
    %v691 = vadd.f32 %v526, %v690
    %v692 = vpop.f32.mrf.mxu0
    %v693 = vadd.f32 %v522, %v692
    %v694 = vpop.f32.mrf.mxu0
    %v695 = vadd.f32 %v526, %v694
    %696 = vmatprep.mubr.bf16.mxu0 0
    %697 = vmatmul.mubr.bf16.gmra.mxu0 %v206
    %v698 = vpop.f32.mrf.mxu0
    %v699 = vadd.f32 %v522, %v698
    %v700 = vpop.f32.mrf.mxu0
    %v701 = vadd.f32 %v526, %v700
    %v702 = vpop.f32.mrf.mxu0
    %v703 = vadd.f32 %v522, %v702
    %v704 = vpop.f32.mrf.mxu0
    %v705 = vadd.f32 %v526, %v704
    %706 = vmatprep.mubr.bf16.mxu0 0
    %707 = vmatmul.mubr.bf16.gmra.mxu0 %v209
    %v708 = vpop.f32.mrf.mxu0
    %v709 = vadd.f32 %v522, %v708
    %v710 = vpop.f32.mrf.mxu0
    %v711 = vadd.f32 %v526, %v710
    %v712 = vpop.f32.mrf.mxu0
    %v713 = vadd.f32 %v522, %v712
    %v714 = vpop.f32.mrf.mxu0
    %v715 = vadd.f32 %v526, %v714
    %716 = vdwg.mxu0
    %v717 = vpack.c.bf16 %v606, %v606
    %v718 = vpack.c.bf16 %v608, %v608
    %v719 = vpack.c.bf16 %v679, %v679
    %v720 = vpack.c.bf16 %v681, %v681
    %v721 = vpack.c.bf16 %v610, %v610
    %v722 = vpack.c.bf16 %v612, %v612
    %v723 = vpack.c.bf16 %v683, %v683
    %v724 = vpack.c.bf16 %v685, %v685
    %v725 = vpack.c.bf16 %v616, %v616
    %v726 = vpack.c.bf16 %v618, %v618
    %v727 = vpack.c.bf16 %v689, %v689
    %v728 = vpack.c.bf16 %v691, %v691
    %v729 = vpack.c.bf16 %v620, %v620
    %v730 = vpack.c.bf16 %v622, %v622
    %v731 = vpack.c.bf16 %v693, %v693
    %v732 = vpack.c.bf16 %v695, %v695
    %v733 = vpack.c.bf16 %v626, %v626
    %v734 = vpack.c.bf16 %v628, %v628
    %v735 = vpack.c.bf16 %v699, %v699
    %v736 = vpack.c.bf16 %v701, %v701
    %v737 = vpack.c.bf16 %v630, %v630
    %v738 = vpack.c.bf16 %v632, %v632
    %v739 = vpack.c.bf16 %v703, %v703
    %v740 = vpack.c.bf16 %v705, %v705
    %v741 = vpack.c.bf16 %v636, %v636
    %v742 = vpack.c.bf16 %v638, %v638
    %v743 = vpack.c.bf16 %v709, %v709
    %v744 = vpack.c.bf16 %v711, %v711
    %v745 = vpack.c.bf16 %v640, %v640
    %v746 = vpack.c.bf16 %v642, %v642
    %v747 = vpack.c.bf16 %v713, %v713
    %v748 = vpack.c.bf16 %v715, %v715
    %v781 = vunpack.c.l.b16 %v717
    %v782 = vunpack.c.l.b16 %v718
    %v783 = vunpack.c.l.b16 %v719
    %v784 = vunpack.c.l.b16 %v720
    %v785 = vunpack.c.l.b16 %v721
    %v786 = vunpack.c.l.b16 %v722
    %v787 = vunpack.c.l.b16 %v723
    %v788 = vunpack.c.l.b16 %v724
    %v789 = vunpack.c.l.b16 %v725
    %v790 = vunpack.c.l.b16 %v726
    %v791 = vunpack.c.l.b16 %v727
    %v792 = vunpack.c.l.b16 %v728
    %v793 = vunpack.c.l.b16 %v729
    %v794 = vunpack.c.l.b16 %v730
    %v795 = vunpack.c.l.b16 %v731
    %v796 = vunpack.c.l.b16 %v732
    %v797 = vunpack.c.l.b16 %v733
    %v798 = vunpack.c.l.b16 %v734
    %v799 = vunpack.c.l.b16 %v735
    %v800 = vunpack.c.l.b16 %v736
    %v801 = vunpack.c.l.b16 %v737
    %v802 = vunpack.c.l.b16 %v738
    %v803 = vunpack.c.l.b16 %v739
    %v804 = vunpack.c.l.b16 %v740
    %v805 = vunpack.c.l.b16 %v741
    %v806 = vunpack.c.l.b16 %v742
    %v807 = vunpack.c.l.b16 %v743
    %v808 = vunpack.c.l.b16 %v744
    %v809 = vunpack.c.l.b16 %v745
    %v810 = vunpack.c.l.b16 %v746
    %v811 = vunpack.c.l.b16 %v747
    %v812 = vunpack.c.l.b16 %v748
    %v813 = vpack.c.b16 %v782, %v781
    %v814 = vpack.c.b16 %v784, %v783
    %v815 = vpack.c.b16 %v786, %v785
    %v816 = vpack.c.b16 %v788, %v787
    %v817 = vpack.c.b16 %v790, %v789
    %v818 = vpack.c.b16 %v792, %v791
    %v819 = vpack.c.b16 %v794, %v793
    %v820 = vpack.c.b16 %v796, %v795
    %v821 = vpack.c.b16 %v798, %v797
    %v822 = vpack.c.b16 %v800, %v799
    %v823 = vpack.c.b16 %v802, %v801
    %v824 = vpack.c.b16 %v804, %v803
    %v825 = vpack.c.b16 %v806, %v805
    %v826 = vpack.c.b16 %v808, %v807
    %v827 = vpack.c.b16 %v810, %v809
    %v828 = vpack.c.b16 %v812, %v811
    %845 = vst [vmem:[#allocation3] sm:$0xff] %v813
    %846 = vst [vmem:[#allocation3 + $0x8] sm:$0xff] %v814
    %847 = vst [vmem:[#allocation3 + $0x10] sm:$0xff] %v815
    %848 = vst [vmem:[#allocation3 + $0x18] sm:$0xff] %v816
    %849 = vst [vmem:[#allocation3 + $0x20] sm:$0xff] %v817
    %850 = vst [vmem:[#allocation3 + $0x28] sm:$0xff] %v818
    %851 = vst [vmem:[#allocation3 + $0x30] sm:$0xff] %v819
    %852 = vst [vmem:[#allocation3 + $0x38] sm:$0xff] %v820
    %853 = vst [vmem:[#allocation3 + $0x40] sm:$0xff] %v821
    %854 = vst [vmem:[#allocation3 + $0x48] sm:$0xff] %v822
    %855 = vst [vmem:[#allocation3 + $0x50] sm:$0xff] %v823
    %856 = vst [vmem:[#allocation3 + $0x58] sm:$0xff] %v824
    %857 = vst [vmem:[#allocation3 + $0x60] sm:$0xff] %v825
    %858 = vst [vmem:[#allocation3 + $0x68] sm:$0xff] %v826
    %859 = vst [vmem:[#allocation3 + $0x70] sm:$0xff] %v827
    %860 = vst [vmem:[#allocation3 + $0x78] sm:$0xff] %v828
    %v861 = vld [vmem:[#allocation10] sm:$0xff]
    %v862 = vld [vmem:[#allocation10 + $0x8] sm:$0xff]
    %v863 = vld [vmem:[#allocation10 + $0x10] sm:$0xff]
    %v864 = vld [vmem:[#allocation10 + $0x18] sm:$0xff]
    %v865 = vld [vmem:[#allocation10 + $0x20] sm:$0xff]
    %v866 = vld [vmem:[#allocation10 + $0x28] sm:$0xff]
    %v867 = vld [vmem:[#allocation10 + $0x30] sm:$0xff]
    %v868 = vld [vmem:[#allocation10 + $0x38] sm:$0xff]
    %v869 = vld [vmem:[#allocation10 + $0x40] sm:$0xff]
    %v870 = vld [vmem:[#allocation10 + $0x48] sm:$0xff]
    %v871 = vld [vmem:[#allocation10 + $0x50] sm:$0xff]
    %v872 = vld [vmem:[#allocation10 + $0x58] sm:$0xff]
    %v873 = vld [vmem:[#allocation10 + $0x60] sm:$0xff]
    %v874 = vld [vmem:[#allocation10 + $0x68] sm:$0xff]
    %v875 = vld [vmem:[#allocation10 + $0x70] sm:$0xff]
    %v876 = vld [vmem:[#allocation10 + $0x78] sm:$0xff]
    %v877 = vld [vmem:[#allocation10 + $0x80] sm:$0xff]
    %v878 = vld [vmem:[#allocation10 + $0x88] sm:$0xff]
    %v879 = vld [vmem:[#allocation10 + $0x90] sm:$0xff]
    %v880 = vld [vmem:[#allocation10 + $0x98] sm:$0xff]
    %v881 = vld [vmem:[#allocation10 + $0xa0] sm:$0xff]
    %v882 = vld [vmem:[#allocation10 + $0xa8] sm:$0xff]
    %v883 = vld [vmem:[#allocation10 + $0xb0] sm:$0xff]
    %v884 = vld [vmem:[#allocation10 + $0xb8] sm:$0xff]
    %v885 = vld [vmem:[#allocation10 + $0xc0] sm:$0xff]
    %v886 = vld [vmem:[#allocation10 + $0xc8] sm:$0xff]
    %v887 = vld [vmem:[#allocation10 + $0xd0] sm:$0xff]
    %v888 = vld [vmem:[#allocation10 + $0xd8] sm:$0xff]
    %v889 = vld [vmem:[#allocation10 + $0xe0] sm:$0xff]
    %v890 = vld [vmem:[#allocation10 + $0xe8] sm:$0xff]
    %v891 = vld [vmem:[#allocation10 + $0xf0] sm:$0xff]
    %v892 = vld [vmem:[#allocation10 + $0xf8] sm:$0xff]
    %v893 = vld [vmem:[#allocation13] sm:$0xff]
    %v894 = vld [vmem:[#allocation13 + $0x8] sm:$0xff]
    %v895 = vld [vmem:[#allocation13 + $0x10] sm:$0xff]
    %v896 = vld [vmem:[#allocation13 + $0x18] sm:$0xff]
    %v897 = vld [vmem:[#allocation13 + $0x20] sm:$0xff]
    %v898 = vld [vmem:[#allocation13 + $0x28] sm:$0xff]
    %v899 = vld [vmem:[#allocation13 + $0x30] sm:$0xff]
    %v900 = vld [vmem:[#allocation13 + $0x38] sm:$0xff]
    %v901 = vld [vmem:[#allocation13 + $0x40] sm:$0xff]
    %v902 = vld [vmem:[#allocation13 + $0x48] sm:$0xff]
    %v903 = vld [vmem:[#allocation13 + $0x50] sm:$0xff]
    %v904 = vld [vmem:[#allocation13 + $0x58] sm:$0xff]
    %v905 = vld [vmem:[#allocation13 + $0x60] sm:$0xff]
    %v906 = vld [vmem:[#allocation13 + $0x68] sm:$0xff]
    %v907 = vld [vmem:[#allocation13 + $0x70] sm:$0xff]
    %v908 = vld [vmem:[#allocation13 + $0x78] sm:$0xff]
    %v909 = vld [vmem:[#allocation13 + $0x80] sm:$0xff]
    %v910 = vld [vmem:[#allocation13 + $0x88] sm:$0xff]
    %v911 = vld [vmem:[#allocation13 + $0x90] sm:$0xff]
    %v912 = vld [vmem:[#allocation13 + $0x98] sm:$0xff]
    %v913 = vld [vmem:[#allocation13 + $0xa0] sm:$0xff]
    %v914 = vld [vmem:[#allocation13 + $0xa8] sm:$0xff]
    %v915 = vld [vmem:[#allocation13 + $0xb0] sm:$0xff]
    %v916 = vld [vmem:[#allocation13 + $0xb8] sm:$0xff]
    %v917 = vld [vmem:[#allocation13 + $0xc0] sm:$0xff]
    %v918 = vld [vmem:[#allocation13 + $0xc8] sm:$0xff]
    %v919 = vld [vmem:[#allocation13 + $0xd0] sm:$0xff]
    %v920 = vld [vmem:[#allocation13 + $0xd8] sm:$0xff]
    %v921 = vld [vmem:[#allocation13 + $0xe0] sm:$0xff]
    %v922 = vld [vmem:[#allocation13 + $0xe8] sm:$0xff]
    %v923 = vld [vmem:[#allocation13 + $0xf0] sm:$0xff]
    %v924 = vld [vmem:[#allocation13 + $0xf8] sm:$0xff]
    %v925 = vld [vmem:[#allocation2] sm:$0xff]
    %v926 = vld [vmem:[#allocation2 + $0x8] sm:$0xff]
    %v927 = vunpack.c.l.bf16 %v925
    %v928 = vunpack.c.h.bf16 %v925
    %v929 = vunpack.c.l.bf16 %v926
    %v930 = vunpack.c.h.bf16 %v926
    %v963 = vunpack.c.l.b16 %v861
    %v964 = vunpack.c.h.b16 %v861
    %v965 = vunpack.c.l.b16 %v862
    %v966 = vunpack.c.h.b16 %v862
    %v967 = vunpack.c.l.b16 %v863
    %v968 = vunpack.c.h.b16 %v863
    %v969 = vunpack.c.l.b16 %v864
    %v970 = vunpack.c.h.b16 %v864
    %v971 = vunpack.c.l.b16 %v865
    %v972 = vunpack.c.h.b16 %v865
    %v973 = vunpack.c.l.b16 %v866
    %v974 = vunpack.c.h.b16 %v866
    %v975 = vunpack.c.l.b16 %v867
    %v976 = vunpack.c.h.b16 %v867
    %v977 = vunpack.c.l.b16 %v868
    %v978 = vunpack.c.h.b16 %v868
    %v979 = vunpack.c.l.b16 %v869
    %v980 = vunpack.c.h.b16 %v869
    %v981 = vunpack.c.l.b16 %v870
    %v982 = vunpack.c.h.b16 %v870
    %v983 = vunpack.c.l.b16 %v871
    %v984 = vunpack.c.h.b16 %v871
    %v985 = vunpack.c.l.b16 %v872
    %v986 = vunpack.c.h.b16 %v872
    %v987 = vunpack.c.l.b16 %v873
    %v988 = vunpack.c.h.b16 %v873
    %v989 = vunpack.c.l.b16 %v874
    %v990 = vunpack.c.h.b16 %v874
    %v991 = vunpack.c.l.b16 %v875
    %v992 = vunpack.c.h.b16 %v875
    %v993 = vunpack.c.l.b16 %v876
    %v994 = vunpack.c.h.b16 %v876
    %v995 = vunpack.c.l.b16 %v877
    %v996 = vunpack.c.h.b16 %v877
    %v997 = vunpack.c.l.b16 %v878
    %v998 = vunpack.c.h.b16 %v878
    %v999 = vunpack.c.l.b16 %v879
    %v1000 = vunpack.c.h.b16 %v879
    %v1001 = vunpack.c.l.b16 %v880
    %v1002 = vunpack.c.h.b16 %v880
    %v1003 = vunpack.c.l.b16 %v881
    %v1004 = vunpack.c.h.b16 %v881
    %v1005 = vunpack.c.l.b16 %v882
    %v1006 = vunpack.c.h.b16 %v882
    %v1007 = vunpack.c.l.b16 %v883
    %v1008 = vunpack.c.h.b16 %v883
    %v1009 = vunpack.c.l.b16 %v884
    %v1010 = vunpack.c.h.b16 %v884
    %v1011 = vunpack.c.l.b16 %v885
    %v1012 = vunpack.c.h.b16 %v885
    %v1013 = vunpack.c.l.b16 %v886
    %v1014 = vunpack.c.h.b16 %v886
    %v1015 = vunpack.c.l.b16 %v887
    %v1016 = vunpack.c.h.b16 %v887
    %v1017 = vunpack.c.l.b16 %v888
    %v1018 = vunpack.c.h.b16 %v888
    %v1019 = vunpack.c.l.b16 %v889
    %v1020 = vunpack.c.h.b16 %v889
    %v1021 = vunpack.c.l.b16 %v890
    %v1022 = vunpack.c.h.b16 %v890
    %v1023 = vunpack.c.l.b16 %v891
    %v1024 = vunpack.c.h.b16 %v891
    %v1025 = vunpack.c.l.b16 %v892
    %v1026 = vunpack.c.h.b16 %v892
    %v1027 = vpack.c.b16 %v967, %v963
    %v1028 = vpack.c.b16 %v968, %v964
    %v1029 = vpack.c.b16 %v969, %v965
    %v1030 = vpack.c.b16 %v970, %v966
    %v1031 = vpack.c.b16 %v975, %v971
    %v1032 = vpack.c.b16 %v976, %v972
    %v1033 = vpack.c.b16 %v977, %v973
    %v1034 = vpack.c.b16 %v978, %v974
    %v1035 = vpack.c.b16 %v983, %v979
    %v1036 = vpack.c.b16 %v984, %v980
    %v1037 = vpack.c.b16 %v985, %v981
    %v1038 = vpack.c.b16 %v986, %v982
    %v1039 = vpack.c.b16 %v991, %v987
    %v1040 = vpack.c.b16 %v992, %v988
    %v1041 = vpack.c.b16 %v993, %v989
    %v1042 = vpack.c.b16 %v994, %v990
    %v1043 = vpack.c.b16 %v999, %v995
    %v1044 = vpack.c.b16 %v1000, %v996
    %v1045 = vpack.c.b16 %v1001, %v997
    %v1046 = vpack.c.b16 %v1002, %v998
    %v1047 = vpack.c.b16 %v1007, %v1003
    %v1048 = vpack.c.b16 %v1008, %v1004
    %v1049 = vpack.c.b16 %v1009, %v1005
    %v1050 = vpack.c.b16 %v1010, %v1006
    %v1051 = vpack.c.b16 %v1015, %v1011
    %v1052 = vpack.c.b16 %v1016, %v1012
    %v1053 = vpack.c.b16 %v1017, %v1013
    %v1054 = vpack.c.b16 %v1018, %v1014
    %v1055 = vpack.c.b16 %v1023, %v1019
    %v1056 = vpack.c.b16 %v1024, %v1020
    %v1057 = vpack.c.b16 %v1025, %v1021
    %v1058 = vpack.c.b16 %v1026, %v1022
    %1091 = vmatprep.subr.bf16.mxu0 %v1056
    %1092 = vmatpush1.bf16.msra.mxu0 %v1055
    %1093 = vmatprep.subr.bf16.mxu0 %v1052
    %1094 = vmatpush1.bf16.msra.mxu0 %v1051
    %1095 = vmatprep.subr.bf16.mxu0 %v1048
    %1096 = vmatpush1.bf16.msra.mxu0 %v1047
    %1097 = vmatprep.subr.bf16.mxu0 %v1044
    %1098 = vmatpush1.bf16.msra.mxu0 %v1043
    %1099 = vmatprep.subr.bf16.mxu0 %v1040
    %1100 = vmatpush1.bf16.msra.mxu0 %v1039
    %1101 = vmatprep.subr.bf16.mxu0 %v1036
    %1102 = vmatpush1.bf16.msra.mxu0 %v1035
    %1103 = vmatprep.subr.bf16.mxu0 %v1032
    %1104 = vmatpush1.bf16.msra.mxu0 %v1031
    %1105 = vmatprep.subr.bf16.mxu0 %v1028
    %1106 = vmatpush1.bf16.msra.mxu0 %v1027
    %1107 = vmatprep.subr.bf16.mxu0 0
    %1108 = vmatpush2.bf16.msra.mxu0 0
    %1109 = vmatprep.subr.bf16.mxu0 0
    %1110 = vmatpush2.bf16.msra.mxu0 0
    %1111 = vmatprep.subr.bf16.mxu0 0
    %1112 = vmatpush2.bf16.msra.mxu0 0
    %1113 = vmatprep.subr.bf16.mxu0 0
    %1114 = vmatpush2.bf16.msra.mxu0 0
    %1115 = vmatprep.subr.bf16.mxu0 0
    %1116 = vmatpush2.bf16.msra.mxu0 0
    %1117 = vmatprep.subr.bf16.mxu0 0
    %1118 = vmatpush2.bf16.msra.mxu0 0
    %1119 = vmatprep.subr.bf16.mxu0 0
    %1120 = vmatpush2.bf16.msra.mxu0 0
    %1121 = vmatprep.subr.bf16.mxu0 0
    %1122 = vmatpush2.bf16.msra.mxu0 0
    %1123 = vmatprep.mubr.bf16.mxu0 0
    %1124 = vmatmul.mubr.bf16.gmra.mxu0 0
    %v1125 = vpop.f32.mrf.mxu0
    %v1126 = vadd.f32 0.0, %v1125
    %v1127 = vpop.f32.mrf.mxu0
    %v1128 = vadd.f32 0.0, %v1127
    %v1129 = vpop.f32.mrf.mxu0
    %v1130 = vpop.f32.mrf.mxu0
    %1131 = vdwg.mxu0
    %1132 = vmatprep.subr.bf16.mxu0 %v1058
    %1133 = vmatpush1.bf16.msra.mxu0 %v1057
    %1134 = vmatprep.subr.bf16.mxu0 %v1054
    %1135 = vmatpush1.bf16.msra.mxu0 %v1053
    %1136 = vmatprep.subr.bf16.mxu0 %v1050
    %1137 = vmatpush1.bf16.msra.mxu0 %v1049
    %1138 = vmatprep.subr.bf16.mxu0 %v1046
    %1139 = vmatpush1.bf16.msra.mxu0 %v1045
    %1140 = vmatprep.subr.bf16.mxu0 %v1042
    %1141 = vmatpush1.bf16.msra.mxu0 %v1041
    %1142 = vmatprep.subr.bf16.mxu0 %v1038
    %1143 = vmatpush1.bf16.msra.mxu0 %v1037
    %1144 = vmatprep.subr.bf16.mxu0 %v1034
    %1145 = vmatpush1.bf16.msra.mxu0 %v1033
    %1146 = vmatprep.subr.bf16.mxu0 %v1030
    %1147 = vmatpush1.bf16.msra.mxu0 %v1029
    %1148 = vmatprep.subr.bf16.mxu0 0
    %1149 = vmatpush2.bf16.msra.mxu0 0
    %1150 = vmatprep.subr.bf16.mxu0 0
    %1151 = vmatpush2.bf16.msra.mxu0 0
    %1152 = vmatprep.subr.bf16.mxu0 0
    %1153 = vmatpush2.bf16.msra.mxu0 0
    %1154 = vmatprep.subr.bf16.mxu0 0
    %1155 = vmatpush2.bf16.msra.mxu0 0
    %1156 = vmatprep.subr.bf16.mxu0 0
    %1157 = vmatpush2.bf16.msra.mxu0 0
    %1158 = vmatprep.subr.bf16.mxu0 0
    %1159 = vmatpush2.bf16.msra.mxu0 0
    %1160 = vmatprep.subr.bf16.mxu0 0
    %1161 = vmatpush2.bf16.msra.mxu0 0
    %1162 = vmatprep.subr.bf16.mxu0 0
    %1163 = vmatpush2.bf16.msra.mxu0 0
    %1164 = vmatprep.mubr.bf16.mxu0 0
    %1165 = vmatmul.mubr.bf16.gmra.mxu0 0
    %v1166 = vpop.f32.mrf.mxu0
    %v1167 = vadd.f32 0.0, %v1166
    %v1168 = vpop.f32.mrf.mxu0
    %v1169 = vadd.f32 0.0, %v1168
    %v1170 = vpop.f32.mrf.mxu0
    %v1171 = vpop.f32.mrf.mxu0
    %1172 = vdwg.mxu0
    %v1173 = vadd.f32 %v927, %v1126
    %v1174 = vadd.f32 %v928, %v1128
    %v1175 = vadd.f32 %v929, %v1167
    %v1176 = vadd.f32 %v930, %v1169
    %v1177 = vxor.u32 %v1173, 2147483648
    %v1178 = vmul.f32 %v1177, 1.442695
    %v1179 = vpow.pop %v1178
    %v1180 = vadd.f32 %v1179, 1.0
    %v1181 = vrcp.pop %v1180
    %v1182 = vmul.f32 1.0, %v1181
    %v1183 = vxor.u32 %v1174, 2147483648
    %v1184 = vmul.f32 %v1183, 1.442695
    %v1185 = vpow.pop %v1184
    %v1186 = vadd.f32 %v1185, 1.0
    %v1187 = vrcp.pop %v1186
    %v1188 = vmul.f32 1.0, %v1187
    %v1189 = vtanh.pop %v1175
    %v1190 = vxor.u32 %v1176, 2147483648
    %v1191 = vmul.f32 %v1190, 1.442695
    %v1192 = vpow.pop %v1191
    %v1193 = vadd.f32 %v1192, 1.0
    %v1194 = vrcp.pop %v1193
    %v1195 = vmul.f32 1.0, %v1194
    %v1196 = vmul.f32 %v1188, 0.0
    %v1197 = vmul.f32 %v1182, %v1189
    %v1198 = vadd.f32 %v1196, %v1197
    %v1199 = vtanh.pop %v1198
    %v1200 = vmul.f32 %v1195, %v1199
    %1201 = vst [vmem:[#allocation4] sm:$0xff] %v1200
    %s1202 = scalar_lea.vmem [#allocation3], 112
    %v1203 = vld [vmem:[%s1202] sm:$0xff]
    %v1204 = vld [vmem:[%s1202 + $0x8] sm:$0xff]
    %v1205 = vunpack.c.l.bf16 %v1203
    %v1206 = vunpack.c.h.bf16 %v1203
    %v1207 = vunpack.c.l.bf16 %v1204
    %v1208 = vunpack.c.h.bf16 %v1204
    %v1241 = vunpack.c.l.b16 %v893
    %v1242 = vunpack.c.h.b16 %v893
    %v1243 = vunpack.c.l.b16 %v894
    %v1244 = vunpack.c.h.b16 %v894
    %v1245 = vunpack.c.l.b16 %v895
    %v1246 = vunpack.c.h.b16 %v895
    %v1247 = vunpack.c.l.b16 %v896
    %v1248 = vunpack.c.h.b16 %v896
    %v1249 = vunpack.c.l.b16 %v897
    %v1250 = vunpack.c.h.b16 %v897
    %v1251 = vunpack.c.l.b16 %v898
    %v1252 = vunpack.c.h.b16 %v898
    %v1253 = vunpack.c.l.b16 %v899
    %v1254 = vunpack.c.h.b16 %v899
    %v1255 = vunpack.c.l.b16 %v900
    %v1256 = vunpack.c.h.b16 %v900
    %v1257 = vunpack.c.l.b16 %v901
    %v1258 = vunpack.c.h.b16 %v901
    %v1259 = vunpack.c.l.b16 %v902
    %v1260 = vunpack.c.h.b16 %v902
    %v1261 = vunpack.c.l.b16 %v903
    %v1262 = vunpack.c.h.b16 %v903
    %v1263 = vunpack.c.l.b16 %v904
    %v1264 = vunpack.c.h.b16 %v904
    %v1265 = vunpack.c.l.b16 %v905
    %v1266 = vunpack.c.h.b16 %v905
    %v1267 = vunpack.c.l.b16 %v906
    %v1268 = vunpack.c.h.b16 %v906
    %v1269 = vunpack.c.l.b16 %v907
    %v1270 = vunpack.c.h.b16 %v907
    %v1271 = vunpack.c.l.b16 %v908
    %v1272 = vunpack.c.h.b16 %v908
    %v1273 = vunpack.c.l.b16 %v909
    %v1274 = vunpack.c.h.b16 %v909
    %v1275 = vunpack.c.l.b16 %v910
    %v1276 = vunpack.c.h.b16 %v910
    %v1277 = vunpack.c.l.b16 %v911
    %v1278 = vunpack.c.h.b16 %v911
    %v1279 = vunpack.c.l.b16 %v912
    %v1280 = vunpack.c.h.b16 %v912
    %v1281 = vunpack.c.l.b16 %v913
    %v1282 = vunpack.c.h.b16 %v913
    %v1283 = vunpack.c.l.b16 %v914
    %v1284 = vunpack.c.h.b16 %v914
    %v1285 = vunpack.c.l.b16 %v915
    %v1286 = vunpack.c.h.b16 %v915
    %v1287 = vunpack.c.l.b16 %v916
    %v1288 = vunpack.c.h.b16 %v916
    %v1289 = vunpack.c.l.b16 %v917
    %v1290 = vunpack.c.h.b16 %v917
    %v1291 = vunpack.c.l.b16 %v918
    %v1292 = vunpack.c.h.b16 %v918
    %v1293 = vunpack.c.l.b16 %v919
    %v1294 = vunpack.c.h.b16 %v919
    %v1295 = vunpack.c.l.b16 %v920
    %v1296 = vunpack.c.h.b16 %v920
    %v1297 = vunpack.c.l.b16 %v921
    %v1298 = vunpack.c.h.b16 %v921
    %v1299 = vunpack.c.l.b16 %v922
    %v1300 = vunpack.c.h.b16 %v922
    %v1301 = vunpack.c.l.b16 %v923
    %v1302 = vunpack.c.h.b16 %v923
    %v1303 = vunpack.c.l.b16 %v924
    %v1304 = vunpack.c.h.b16 %v924
    %v1305 = vpack.c.b16 %v1245, %v1241
    %v1306 = vpack.c.b16 %v1246, %v1242
    %v1307 = vpack.c.b16 %v1247, %v1243
    %v1308 = vpack.c.b16 %v1248, %v1244
    %v1309 = vpack.c.b16 %v1253, %v1249
    %v1310 = vpack.c.b16 %v1254, %v1250
    %v1311 = vpack.c.b16 %v1255, %v1251
    %v1312 = vpack.c.b16 %v1256, %v1252
    %v1313 = vpack.c.b16 %v1261, %v1257
    %v1314 = vpack.c.b16 %v1262, %v1258
    %v1315 = vpack.c.b16 %v1263, %v1259
    %v1316 = vpack.c.b16 %v1264, %v1260
    %v1317 = vpack.c.b16 %v1269, %v1265
    %v1318 = vpack.c.b16 %v1270, %v1266
    %v1319 = vpack.c.b16 %v1271, %v1267
    %v1320 = vpack.c.b16 %v1272, %v1268
    %v1321 = vpack.c.b16 %v1277, %v1273
    %v1322 = vpack.c.b16 %v1278, %v1274
    %v1323 = vpack.c.b16 %v1279, %v1275
    %v1324 = vpack.c.b16 %v1280, %v1276
    %v1325 = vpack.c.b16 %v1285, %v1281
    %v1326 = vpack.c.b16 %v1286, %v1282
    %v1327 = vpack.c.b16 %v1287, %v1283
    %v1328 = vpack.c.b16 %v1288, %v1284
    %v1329 = vpack.c.b16 %v1293, %v1289
    %v1330 = vpack.c.b16 %v1294, %v1290
    %v1331 = vpack.c.b16 %v1295, %v1291
    %v1332 = vpack.c.b16 %v1296, %v1292
    %v1333 = vpack.c.b16 %v1301, %v1297
    %v1334 = vpack.c.b16 %v1302, %v1298
    %v1335 = vpack.c.b16 %v1303, %v1299
    %v1336 = vpack.c.b16 %v1304, %v1300
    %1369 = vmatprep.subr.bf16.mxu0 %v1334
    %1370 = vmatpush1.bf16.msra.mxu0 %v1333
    %1371 = vmatprep.subr.bf16.mxu0 %v1330
    %1372 = vmatpush1.bf16.msra.mxu0 %v1329
    %1373 = vmatprep.subr.bf16.mxu0 %v1326
    %1374 = vmatpush1.bf16.msra.mxu0 %v1325
    %1375 = vmatprep.subr.bf16.mxu0 %v1322
    %1376 = vmatpush1.bf16.msra.mxu0 %v1321
    %1377 = vmatprep.subr.bf16.mxu0 %v1318
    %1378 = vmatpush1.bf16.msra.mxu0 %v1317
    %1379 = vmatprep.subr.bf16.mxu0 %v1314
    %1380 = vmatpush1.bf16.msra.mxu0 %v1313
    %1381 = vmatprep.subr.bf16.mxu0 %v1310
    %1382 = vmatpush1.bf16.msra.mxu0 %v1309
    %1383 = vmatprep.subr.bf16.mxu0 %v1306
    %1384 = vmatpush1.bf16.msra.mxu0 %v1305
    %1385 = vmatprep.subr.bf16.mxu0 0
    %1386 = vmatpush2.bf16.msra.mxu0 0
    %1387 = vmatprep.subr.bf16.mxu0 0
    %1388 = vmatpush2.bf16.msra.mxu0 0
    %1389 = vmatprep.subr.bf16.mxu0 0
    %1390 = vmatpush2.bf16.msra.mxu0 0
    %1391 = vmatprep.subr.bf16.mxu0 0
    %1392 = vmatpush2.bf16.msra.mxu0 0
    %1393 = vmatprep.subr.bf16.mxu0 0
    %1394 = vmatpush2.bf16.msra.mxu0 0
    %1395 = vmatprep.subr.bf16.mxu0 0
    %1396 = vmatpush2.bf16.msra.mxu0 0
    %1397 = vmatprep.subr.bf16.mxu0 0
    %1398 = vmatpush2.bf16.msra.mxu0 0
    %1399 = vmatprep.subr.bf16.mxu0 0
    %1400 = vmatpush2.bf16.msra.mxu0 0
    %1401 = vmatprep.mubr.bf16.mxu0 0
    %1402 = vmatmul.mubr.bf16.gmra.mxu0 0
    %v1403 = vpop.f32.mrf.mxu0
    %v1404 = vadd.f32 0.0, %v1403
    %v1405 = vpop.f32.mrf.mxu0
    %v1406 = vadd.f32 0.0, %v1405
    %v1407 = vpop.f32.mrf.mxu0
    %v1408 = vpop.f32.mrf.mxu0
    %1409 = vdwg.mxu0
    %1410 = vmatprep.subr.bf16.mxu0 %v1336
    %1411 = vmatpush1.bf16.msra.mxu0 %v1335
    %1412 = vmatprep.subr.bf16.mxu0 %v1332
    %1413 = vmatpush1.bf16.msra.mxu0 %v1331
    %1414 = vmatprep.subr.bf16.mxu0 %v1328
    %1415 = vmatpush1.bf16.msra.mxu0 %v1327
    %1416 = vmatprep.subr.bf16.mxu0 %v1324
    %1417 = vmatpush1.bf16.msra.mxu0 %v1323
    %1418 = vmatprep.subr.bf16.mxu0 %v1320
    %1419 = vmatpush1.bf16.msra.mxu0 %v1319
    %1420 = vmatprep.subr.bf16.mxu0 %v1316
    %1421 = vmatpush1.bf16.msra.mxu0 %v1315
    %1422 = vmatprep.subr.bf16.mxu0 %v1312
    %1423 = vmatpush1.bf16.msra.mxu0 %v1311
    %1424 = vmatprep.subr.bf16.mxu0 %v1308
    %1425 = vmatpush1.bf16.msra.mxu0 %v1307
    %1426 = vmatprep.subr.bf16.mxu0 0
    %1427 = vmatpush2.bf16.msra.mxu0 0
    %1428 = vmatprep.subr.bf16.mxu0 0
    %1429 = vmatpush2.bf16.msra.mxu0 0
    %1430 = vmatprep.subr.bf16.mxu0 0
    %1431 = vmatpush2.bf16.msra.mxu0 0
    %1432 = vmatprep.subr.bf16.mxu0 0
    %1433 = vmatpush2.bf16.msra.mxu0 0
    %1434 = vmatprep.subr.bf16.mxu0 0
    %1435 = vmatpush2.bf16.msra.mxu0 0
    %1436 = vmatprep.subr.bf16.mxu0 0
    %1437 = vmatpush2.bf16.msra.mxu0 0
    %1438 = vmatprep.subr.bf16.mxu0 0
    %1439 = vmatpush2.bf16.msra.mxu0 0
    %1440 = vmatprep.subr.bf16.mxu0 0
    %1441 = vmatpush2.bf16.msra.mxu0 0
    %1442 = vmatprep.mubr.bf16.mxu0 0
    %1443 = vmatmul.mubr.bf16.gmra.mxu0 0
    %v1444 = vpop.f32.mrf.mxu0
    %v1445 = vadd.f32 0.0, %v1444
    %v1446 = vpop.f32.mrf.mxu0
    %v1447 = vadd.f32 0.0, %v1446
    %v1448 = vpop.f32.mrf.mxu0
    %v1449 = vpop.f32.mrf.mxu0
    %1450 = vdwg.mxu0
    %v1451 = vadd.f32 %v1205, %v1404
    %v1452 = vadd.f32 %v1206, %v1406
    %v1453 = vadd.f32 %v1207, %v1445
    %v1454 = vadd.f32 %v1208, %v1447
    %v1455 = vxor.u32 %v1451, 2147483648
    %v1456 = vmul.f32 %v1455, 1.442695
    %v1457 = vpow.pop %v1456
    %v1458 = vadd.f32 %v1457, 1.0
    %v1459 = vrcp.pop %v1458
    %v1460 = vmul.f32 1.0, %v1459
    %v1461 = vxor.u32 %v1452, 2147483648
    %v1462 = vmul.f32 %v1461, 1.442695
    %v1463 = vpow.pop %v1462
    %v1464 = vadd.f32 %v1463, 1.0
    %v1465 = vrcp.pop %v1464
    %v1466 = vmul.f32 1.0, %v1465
    %v1467 = vtanh.pop %v1453
    %v1468 = vxor.u32 %v1454, 2147483648
    %v1469 = vmul.f32 %v1468, 1.442695
    %v1470 = vpow.pop %v1469
    %v1471 = vadd.f32 %v1470, 1.0
    %v1472 = vrcp.pop %v1471
    %v1473 = vmul.f32 1.0, %v1472
    %v1474 = vmul.f32 %v1466, 0.0
    %v1475 = vmul.f32 %v1460, %v1467
    %v1476 = vadd.f32 %v1474, %v1475
    %v1477 = vtanh.pop %v1476
    %v1478 = vmul.f32 %v1473, %v1477
    %s1479 = scalar_lea.vmem [#allocation4], 112
    %1480 = vst [vmem:[%s1479 + $0x8] sm:$0xff] %v1478
    %s1481 = scalar_lea.vmem [#allocation2], 16
    %v1482 = vld [vmem:[%s1481] sm:$0xff]
    %v1483 = vld [vmem:[%s1481 + $0x8] sm:$0xff]
    %v1484 = vunpack.c.l.bf16 %v1482
    %v1485 = vunpack.c.h.bf16 %v1482
    %v1486 = vunpack.c.l.bf16 %v1483
    %v1487 = vunpack.c.h.bf16 %v1483
    %v1488 = vpack.c.bf16 %v1200, %v1200
    %1489 = vmatprep.subr.bf16.mxu0 %v1056
    %1490 = vmatpush1.bf16.msra.mxu0 %v1055
    %1491 = vmatprep.subr.bf16.mxu0 %v1052
    %1492 = vmatpush1.bf16.msra.mxu0 %v1051
    %1493 = vmatprep.subr.bf16.mxu0 %v1048
    %1494 = vmatpush1.bf16.msra.mxu0 %v1047
    %1495 = vmatprep.subr.bf16.mxu0 %v1044
    %1496 = vmatpush1.bf16.msra.mxu0 %v1043
    %1497 = vmatprep.subr.bf16.mxu0 %v1040
    %1498 = vmatpush1.bf16.msra.mxu0 %v1039
    %1499 = vmatprep.subr.bf16.mxu0 %v1036
    %1500 = vmatpush1.bf16.msra.mxu0 %v1035
    %1501 = vmatprep.subr.bf16.mxu0 %v1032
    %1502 = vmatpush1.bf16.msra.mxu0 %v1031
    %1503 = vmatprep.subr.bf16.mxu0 %v1028
    %1504 = vmatpush1.bf16.msra.mxu0 %v1027
    %1505 = vmatprep.subr.bf16.mxu0 0
    %1506 = vmatpush2.bf16.msra.mxu0 0
    %1507 = vmatprep.subr.bf16.mxu0 0
    %1508 = vmatpush2.bf16.msra.mxu0 0
    %1509 = vmatprep.subr.bf16.mxu0 0
    %1510 = vmatpush2.bf16.msra.mxu0 0
    %1511 = vmatprep.subr.bf16.mxu0 0
    %1512 = vmatpush2.bf16.msra.mxu0 0
    %1513 = vmatprep.subr.bf16.mxu0 0
    %1514 = vmatpush2.bf16.msra.mxu0 0
    %1515 = vmatprep.subr.bf16.mxu0 0
    %1516 = vmatpush2.bf16.msra.mxu0 0
    %1517 = vmatprep.subr.bf16.mxu0 0
    %1518 = vmatpush2.bf16.msra.mxu0 0
    %1519 = vmatprep.subr.bf16.mxu0 0
    %1520 = vmatpush2.bf16.msra.mxu0 0
    %1521 = vmatprep.mubr.bf16.mxu0 0
    %1522 = vmatmul.mubr.bf16.gmra.mxu0 %v1488
    %v1523 = vpop.f32.mrf.mxu0
    %v1524 = vadd.f32 0.0, %v1523
    %v1525 = vpop.f32.mrf.mxu0
    %v1526 = vadd.f32 0.0, %v1525
    %v1527 = vpop.f32.mrf.mxu0
    %v1528 = vpop.f32.mrf.mxu0
    %1529 = vdwg.mxu0
    %1530 = vmatprep.subr.bf16.mxu0 %v1058
    %1531 = vmatpush1.bf16.msra.mxu0 %v1057
    %1532 = vmatprep.subr.bf16.mxu0 %v1054
    %1533 = vmatpush1.bf16.msra.mxu0 %v1053
    %1534 = vmatprep.subr.bf16.mxu0 %v1050
    %1535 = vmatpush1.bf16.msra.mxu0 %v1049
    %1536 = vmatprep.subr.bf16.mxu0 %v1046
    %1537 = vmatpush1.bf16.msra.mxu0 %v1045
    %1538 = vmatprep.subr.bf16.mxu0 %v1042
    %1539 = vmatpush1.bf16.msra.mxu0 %v1041
    %1540 = vmatprep.subr.bf16.mxu0 %v1038
    %1541 = vmatpush1.bf16.msra.mxu0 %v1037
    %1542 = vmatprep.subr.bf16.mxu0 %v1034
    %1543 = vmatpush1.bf16.msra.mxu0 %v1033
    %1544 = vmatprep.subr.bf16.mxu0 %v1030
    %1545 = vmatpush1.bf16.msra.mxu0 %v1029
    %1546 = vmatprep.subr.bf16.mxu0 0
    %1547 = vmatpush2.bf16.msra.mxu0 0
    %1548 = vmatprep.subr.bf16.mxu0 0
    %1549 = vmatpush2.bf16.msra.mxu0 0
    %1550 = vmatprep.subr.bf16.mxu0 0
    %1551 = vmatpush2.bf16.msra.mxu0 0
    %1552 = vmatprep.subr.bf16.mxu0 0
    %1553 = vmatpush2.bf16.msra.mxu0 0
    %1554 = vmatprep.subr.bf16.mxu0 0
    %1555 = vmatpush2.bf16.msra.mxu0 0
    %1556 = vmatprep.subr.bf16.mxu0 0
    %1557 = vmatpush2.bf16.msra.mxu0 0
    %1558 = vmatprep.subr.bf16.mxu0 0
    %1559 = vmatpush2.bf16.msra.mxu0 0
    %1560 = vmatprep.subr.bf16.mxu0 0
    %1561 = vmatpush2.bf16.msra.mxu0 0
    %1562 = vmatprep.mubr.bf16.mxu0 0
    %1563 = vmatmul.mubr.bf16.gmra.mxu0 %v1488
    %v1564 = vpop.f32.mrf.mxu0
    %v1565 = vadd.f32 0.0, %v1564
    %v1566 = vpop.f32.mrf.mxu0
    %v1567 = vadd.f32 0.0, %v1566
    %v1568 = vpop.f32.mrf.mxu0
    %v1569 = vpop.f32.mrf.mxu0
    %1570 = vdwg.mxu0
    %v1571 = vadd.f32 %v1484, %v1524
    %v1572 = vadd.f32 %v1485, %v1526
    %v1573 = vadd.f32 %v1486, %v1565
    %v1574 = vadd.f32 %v1487, %v1567
    %v1575 = vxor.u32 %v1571, 2147483648
    %v1576 = vmul.f32 %v1575, 1.442695
    %v1577 = vpow.pop %v1576
    %v1578 = vadd.f32 %v1577, 1.0
    %v1579 = vrcp.pop %v1578
    %v1580 = vmul.f32 1.0, %v1579
    %v1581 = vxor.u32 %v1572, 2147483648
    %v1582 = vmul.f32 %v1581, 1.442695
    %v1583 = vpow.pop %v1582
    %v1584 = vadd.f32 %v1583, 1.0
    %v1585 = vrcp.pop %v1584
    %v1586 = vmul.f32 1.0, %v1585
    %v1587 = vtanh.pop %v1573
    %v1588 = vxor.u32 %v1574, 2147483648
    %v1589 = vmul.f32 %v1588, 1.442695
    %v1590 = vpow.pop %v1589
    %v1591 = vadd.f32 %v1590, 1.0
    %v1592 = vrcp.pop %v1591
    %v1593 = vmul.f32 1.0, %v1592
    %v1594 = vmul.f32 %v1586, %v1198
    %v1595 = vmul.f32 %v1580, %v1587
    %v1596 = vadd.f32 %v1594, %v1595
    %v1597 = vtanh.pop %v1596
    %v1598 = vmul.f32 %v1593, %v1597
    %s1599 = scalar_lea.vmem [#allocation4], 16
    %1600 = vst [vmem:[%s1599] sm:$0xff] %v1598
    %s1601 = scalar_lea.vmem [#allocation3], 96
    %v1602 = vld [vmem:[%s1601] sm:$0xff]
    %v1603 = vld [vmem:[%s1601 + $0x8] sm:$0xff]
    %v1604 = vunpack.c.l.bf16 %v1602
    %v1605 = vunpack.c.h.bf16 %v1602
    %v1606 = vunpack.c.l.bf16 %v1603
    %v1607 = vunpack.c.h.bf16 %v1603
    %v1608 = vpack.c.bf16 %v1478, %v1478
    %1609 = vmatprep.subr.bf16.mxu0 %v1334
    %1610 = vmatpush1.bf16.msra.mxu0 %v1333
    %1611 = vmatprep.subr.bf16.mxu0 %v1330
    %1612 = vmatpush1.bf16.msra.mxu0 %v1329
    %1613 = vmatprep.subr.bf16.mxu0 %v1326
    %1614 = vmatpush1.bf16.msra.mxu0 %v1325
    %1615 = vmatprep.subr.bf16.mxu0 %v1322
    %1616 = vmatpush1.bf16.msra.mxu0 %v1321
    %1617 = vmatprep.subr.bf16.mxu0 %v1318
    %1618 = vmatpush1.bf16.msra.mxu0 %v1317
    %1619 = vmatprep.subr.bf16.mxu0 %v1314
    %1620 = vmatpush1.bf16.msra.mxu0 %v1313
    %1621 = vmatprep.subr.bf16.mxu0 %v1310
    %1622 = vmatpush1.bf16.msra.mxu0 %v1309
    %1623 = vmatprep.subr.bf16.mxu0 %v1306
    %1624 = vmatpush1.bf16.msra.mxu0 %v1305
    %1625 = vmatprep.subr.bf16.mxu0 0
    %1626 = vmatpush2.bf16.msra.mxu0 0
    %1627 = vmatprep.subr.bf16.mxu0 0
    %1628 = vmatpush2.bf16.msra.mxu0 0
    %1629 = vmatprep.subr.bf16.mxu0 0
    %1630 = vmatpush2.bf16.msra.mxu0 0
    %1631 = vmatprep.subr.bf16.mxu0 0
    %1632 = vmatpush2.bf16.msra.mxu0 0
    %1633 = vmatprep.subr.bf16.mxu0 0
    %1634 = vmatpush2.bf16.msra.mxu0 0
    %1635 = vmatprep.subr.bf16.mxu0 0
    %1636 = vmatpush2.bf16.msra.mxu0 0
    %1637 = vmatprep.subr.bf16.mxu0 0
    %1638 = vmatpush2.bf16.msra.mxu0 0
    %1639 = vmatprep.subr.bf16.mxu0 0
    %1640 = vmatpush2.bf16.msra.mxu0 0
    %1641 = vmatprep.mubr.bf16.mxu0 0
    %1642 = vmatmul.mubr.bf16.gmra.mxu0 %v1608
    %v1643 = vpop.f32.mrf.mxu0
    %v1644 = vadd.f32 0.0, %v1643
    %v1645 = vpop.f32.mrf.mxu0
    %v1646 = vadd.f32 0.0, %v1645
    %v1647 = vpop.f32.mrf.mxu0
    %v1648 = vpop.f32.mrf.mxu0
    %1649 = vdwg.mxu0
    %1650 = vmatprep.subr.bf16.mxu0 %v1336
    %1651 = vmatpush1.bf16.msra.mxu0 %v1335
    %1652 = vmatprep.subr.bf16.mxu0 %v1332
    %1653 = vmatpush1.bf16.msra.mxu0 %v1331
    %1654 = vmatprep.subr.bf16.mxu0 %v1328
    %1655 = vmatpush1.bf16.msra.mxu0 %v1327
    %1656 = vmatprep.subr.bf16.mxu0 %v1324
    %1657 = vmatpush1.bf16.msra.mxu0 %v1323
    %1658 = vmatprep.subr.bf16.mxu0 %v1320
    %1659 = vmatpush1.bf16.msra.mxu0 %v1319
    %1660 = vmatprep.subr.bf16.mxu0 %v1316
    %1661 = vmatpush1.bf16.msra.mxu0 %v1315
    %1662 = vmatprep.subr.bf16.mxu0 %v1312
    %1663 = vmatpush1.bf16.msra.mxu0 %v1311
    %1664 = vmatprep.subr.bf16.mxu0 %v1308
    %1665 = vmatpush1.bf16.msra.mxu0 %v1307
    %1666 = vmatprep.subr.bf16.mxu0 0
    %1667 = vmatpush2.bf16.msra.mxu0 0
    %1668 = vmatprep.subr.bf16.mxu0 0
    %1669 = vmatpush2.bf16.msra.mxu0 0
    %1670 = vmatprep.subr.bf16.mxu0 0
    %1671 = vmatpush2.bf16.msra.mxu0 0
    %1672 = vmatprep.subr.bf16.mxu0 0
    %1673 = vmatpush2.bf16.msra.mxu0 0
    %1674 = vmatprep.subr.bf16.mxu0 0
    %1675 = vmatpush2.bf16.msra.mxu0 0
    %1676 = vmatprep.subr.bf16.mxu0 0
    %1677 = vmatpush2.bf16.msra.mxu0 0
    %1678 = vmatprep.subr.bf16.mxu0 0
    %1679 = vmatpush2.bf16.msra.mxu0 0
    %1680 = vmatprep.subr.bf16.mxu0 0
    %1681 = vmatpush2.bf16.msra.mxu0 0
    %1682 = vmatprep.mubr.bf16.mxu0 0
    %1683 = vmatmul.mubr.bf16.gmra.mxu0 %v1608
    %v1684 = vpop.f32.mrf.mxu0
    %v1685 = vadd.f32 0.0, %v1684
    %v1686 = vpop.f32.mrf.mxu0
    %v1687 = vadd.f32 0.0, %v1686
    %v1688 = vpop.f32.mrf.mxu0
    %v1689 = vpop.f32.mrf.mxu0
    %1690 = vdwg.mxu0
    %v1691 = vadd.f32 %v1604, %v1644
    %v1692 = vadd.f32 %v1605, %v1646
    %v1693 = vadd.f32 %v1606, %v1685
    %v1694 = vadd.f32 %v1607, %v1687
    %v1695 = vxor.u32 %v1691, 2147483648
    %v1696 = vmul.f32 %v1695, 1.442695
    %v1697 = vpow.pop %v1696
    %v1698 = vadd.f32 %v1697, 1.0
    %v1699 = vrcp.pop %v1698
    %v1700 = vmul.f32 1.0, %v1699
    %v1701 = vxor.u32 %v1692, 2147483648
    %v1702 = vmul.f32 %v1701, 1.442695
    %v1703 = vpow.pop %v1702
    %v1704 = vadd.f32 %v1703, 1.0
    %v1705 = vrcp.pop %v1704
    %v1706 = vmul.f32 1.0, %v1705
    %v1707 = vtanh.pop %v1693
    %v1708 = vxor.u32 %v1694, 2147483648
    %v1709 = vmul.f32 %v1708, 1.442695
    %v1710 = vpow.pop %v1709
    %v1711 = vadd.f32 %v1710, 1.0
    %v1712 = vrcp.pop %v1711
    %v1713 = vmul.f32 1.0, %v1712
    %v1714 = vmul.f32 %v1706, %v1476
    %v1715 = vmul.f32 %v1700, %v1707
    %v1716 = vadd.f32 %v1714, %v1715
    %v1717 = vtanh.pop %v1716
    %v1718 = vmul.f32 %v1713, %v1717
    %s1719 = scalar_lea.vmem [#allocation4], 96
    %1720 = vst [vmem:[%s1719 + $0x8] sm:$0xff] %v1718
    %s1721 = scalar_lea.vmem [#allocation2], 32
    %v1722 = vld [vmem:[%s1721] sm:$0xff]
    %v1723 = vld [vmem:[%s1721 + $0x8] sm:$0xff]
    %v1724 = vunpack.c.l.bf16 %v1722
    %v1725 = vunpack.c.h.bf16 %v1722
    %v1726 = vunpack.c.l.bf16 %v1723
    %v1727 = vunpack.c.h.bf16 %v1723
    %v1728 = vpack.c.bf16 %v1598, %v1598
    %1729 = vmatprep.subr.bf16.mxu0 %v1056
    %1730 = vmatpush1.bf16.msra.mxu0 %v1055
    %1731 = vmatprep.subr.bf16.mxu0 %v1052
    %1732 = vmatpush1.bf16.msra.mxu0 %v1051
    %1733 = vmatprep.subr.bf16.mxu0 %v1048
    %1734 = vmatpush1.bf16.msra.mxu0 %v1047
    %1735 = vmatprep.subr.bf16.mxu0 %v1044
    %1736 = vmatpush1.bf16.msra.mxu0 %v1043
    %1737 = vmatprep.subr.bf16.mxu0 %v1040
    %1738 = vmatpush1.bf16.msra.mxu0 %v1039
    %1739 = vmatprep.subr.bf16.mxu0 %v1036
    %1740 = vmatpush1.bf16.msra.mxu0 %v1035
    %1741 = vmatprep.subr.bf16.mxu0 %v1032
    %1742 = vmatpush1.bf16.msra.mxu0 %v1031
    %1743 = vmatprep.subr.bf16.mxu0 %v1028
    %1744 = vmatpush1.bf16.msra.mxu0 %v1027
    %1745 = vmatprep.subr.bf16.mxu0 0
    %1746 = vmatpush2.bf16.msra.mxu0 0
    %1747 = vmatprep.subr.bf16.mxu0 0
    %1748 = vmatpush2.bf16.msra.mxu0 0
    %1749 = vmatprep.subr.bf16.mxu0 0
    %1750 = vmatpush2.bf16.msra.mxu0 0
    %1751 = vmatprep.subr.bf16.mxu0 0
    %1752 = vmatpush2.bf16.msra.mxu0 0
    %1753 = vmatprep.subr.bf16.mxu0 0
    %1754 = vmatpush2.bf16.msra.mxu0 0
    %1755 = vmatprep.subr.bf16.mxu0 0
    %1756 = vmatpush2.bf16.msra.mxu0 0
    %1757 = vmatprep.subr.bf16.mxu0 0
    %1758 = vmatpush2.bf16.msra.mxu0 0
    %1759 = vmatprep.subr.bf16.mxu0 0
    %1760 = vmatpush2.bf16.msra.mxu0 0
    %1761 = vmatprep.mubr.bf16.mxu0 0
    %1762 = vmatmul.mubr.bf16.gmra.mxu0 %v1728
    %v1763 = vpop.f32.mrf.mxu0
    %v1764 = vadd.f32 0.0, %v1763
    %v1765 = vpop.f32.mrf.mxu0
    %v1766 = vadd.f32 0.0, %v1765
    %v1767 = vpop.f32.mrf.mxu0
    %v1768 = vpop.f32.mrf.mxu0
    %1769 = vdwg.mxu0
    %1770 = vmatprep.subr.bf16.mxu0 %v1058
    %1771 = vmatpush1.bf16.msra.mxu0 %v1057
    %1772 = vmatprep.subr.bf16.mxu0 %v1054
    %1773 = vmatpush1.bf16.msra.mxu0 %v1053
    %1774 = vmatprep.subr.bf16.mxu0 %v1050
    %1775 = vmatpush1.bf16.msra.mxu0 %v1049
    %1776 = vmatprep.subr.bf16.mxu0 %v1046
    %1777 = vmatpush1.bf16.msra.mxu0 %v1045
    %1778 = vmatprep.subr.bf16.mxu0 %v1042
    %1779 = vmatpush1.bf16.msra.mxu0 %v1041
    %1780 = vmatprep.subr.bf16.mxu0 %v1038
    %1781 = vmatpush1.bf16.msra.mxu0 %v1037
    %1782 = vmatprep.subr.bf16.mxu0 %v1034
    %1783 = vmatpush1.bf16.msra.mxu0 %v1033
    %1784 = vmatprep.subr.bf16.mxu0 %v1030
    %1785 = vmatpush1.bf16.msra.mxu0 %v1029
    %1786 = vmatprep.subr.bf16.mxu0 0
    %1787 = vmatpush2.bf16.msra.mxu0 0
    %1788 = vmatprep.subr.bf16.mxu0 0
    %1789 = vmatpush2.bf16.msra.mxu0 0
    %1790 = vmatprep.subr.bf16.mxu0 0
    %1791 = vmatpush2.bf16.msra.mxu0 0
    %1792 = vmatprep.subr.bf16.mxu0 0
    %1793 = vmatpush2.bf16.msra.mxu0 0
    %1794 = vmatprep.subr.bf16.mxu0 0
    %1795 = vmatpush2.bf16.msra.mxu0 0
    %1796 = vmatprep.subr.bf16.mxu0 0
    %1797 = vmatpush2.bf16.msra.mxu0 0
    %1798 = vmatprep.subr.bf16.mxu0 0
    %1799 = vmatpush2.bf16.msra.mxu0 0
    %1800 = vmatprep.subr.bf16.mxu0 0
    %1801 = vmatpush2.bf16.msra.mxu0 0
    %1802 = vmatprep.mubr.bf16.mxu0 0
    %1803 = vmatmul.mubr.bf16.gmra.mxu0 %v1728
    %v1804 = vpop.f32.mrf.mxu0
    %v1805 = vadd.f32 0.0, %v1804
    %v1806 = vpop.f32.mrf.mxu0
    %v1807 = vadd.f32 0.0, %v1806
    %v1808 = vpop.f32.mrf.mxu0
    %v1809 = vpop.f32.mrf.mxu0
    %1810 = vdwg.mxu0
    %v1811 = vadd.f32 %v1724, %v1764
    %v1812 = vadd.f32 %v1725, %v1766
    %v1813 = vadd.f32 %v1726, %v1805
    %v1814 = vadd.f32 %v1727, %v1807
    %v1815 = vxor.u32 %v1811, 2147483648
    %v1816 = vmul.f32 %v1815, 1.442695
    %v1817 = vpow.pop %v1816
    %v1818 = vadd.f32 %v1817, 1.0
    %v1819 = vrcp.pop %v1818
    %v1820 = vmul.f32 1.0, %v1819
    %v1821 = vxor.u32 %v1812, 2147483648
    %v1822 = vmul.f32 %v1821, 1.442695
    %v1823 = vpow.pop %v1822
    %v1824 = vadd.f32 %v1823, 1.0
    %v1825 = vrcp.pop %v1824
    %v1826 = vmul.f32 1.0, %v1825
    %v1827 = vtanh.pop %v1813
    %v1828 = vxor.u32 %v1814, 2147483648
    %v1829 = vmul.f32 %v1828, 1.442695
    %v1830 = vpow.pop %v1829
    %v1831 = vadd.f32 %v1830, 1.0
    %v1832 = vrcp.pop %v1831
    %v1833 = vmul.f32 1.0, %v1832
    %v1834 = vmul.f32 %v1826, %v1596
    %v1835 = vmul.f32 %v1820, %v1827
    %v1836 = vadd.f32 %v1834, %v1835
    %v1837 = vtanh.pop %v1836
    %v1838 = vmul.f32 %v1833, %v1837
    %s1839 = scalar_lea.vmem [#allocation4], 32
    %1840 = vst [vmem:[%s1839] sm:$0xff] %v1838
    %s1841 = scalar_lea.vmem [#allocation3], 80
    %v1842 = vld [vmem:[%s1841] sm:$0xff]
    %v1843 = vld [vmem:[%s1841 + $0x8] sm:$0xff]
    %v1844 = vunpack.c.l.bf16 %v1842
    %v1845 = vunpack.c.h.bf16 %v1842
    %v1846 = vunpack.c.l.bf16 %v1843
    %v1847 = vunpack.c.h.bf16 %v1843
    %v1848 = vpack.c.bf16 %v1718, %v1718
    %1849 = vmatprep.subr.bf16.mxu0 %v1334
    %1850 = vmatpush1.bf16.msra.mxu0 %v1333
    %1851 = vmatprep.subr.bf16.mxu0 %v1330
    %1852 = vmatpush1.bf16.msra.mxu0 %v1329
    %1853 = vmatprep.subr.bf16.mxu0 %v1326
    %1854 = vmatpush1.bf16.msra.mxu0 %v1325
    %1855 = vmatprep.subr.bf16.mxu0 %v1322
    %1856 = vmatpush1.bf16.msra.mxu0 %v1321
    %1857 = vmatprep.subr.bf16.mxu0 %v1318
    %1858 = vmatpush1.bf16.msra.mxu0 %v1317
    %1859 = vmatprep.subr.bf16.mxu0 %v1314
    %1860 = vmatpush1.bf16.msra.mxu0 %v1313
    %1861 = vmatprep.subr.bf16.mxu0 %v1310
    %1862 = vmatpush1.bf16.msra.mxu0 %v1309
    %1863 = vmatprep.subr.bf16.mxu0 %v1306
    %1864 = vmatpush1.bf16.msra.mxu0 %v1305
    %1865 = vmatprep.subr.bf16.mxu0 0
    %1866 = vmatpush2.bf16.msra.mxu0 0
    %1867 = vmatprep.subr.bf16.mxu0 0
    %1868 = vmatpush2.bf16.msra.mxu0 0
    %1869 = vmatprep.subr.bf16.mxu0 0
    %1870 = vmatpush2.bf16.msra.mxu0 0
    %1871 = vmatprep.subr.bf16.mxu0 0
    %1872 = vmatpush2.bf16.msra.mxu0 0
    %1873 = vmatprep.subr.bf16.mxu0 0
    %1874 = vmatpush2.bf16.msra.mxu0 0
    %1875 = vmatprep.subr.bf16.mxu0 0
    %1876 = vmatpush2.bf16.msra.mxu0 0
    %1877 = vmatprep.subr.bf16.mxu0 0
    %1878 = vmatpush2.bf16.msra.mxu0 0
    %1879 = vmatprep.subr.bf16.mxu0 0
    %1880 = vmatpush2.bf16.msra.mxu0 0
    %1881 = vmatprep.mubr.bf16.mxu0 0
    %1882 = vmatmul.mubr.bf16.gmra.mxu0 %v1848
    %v1883 = vpop.f32.mrf.mxu0
    %v1884 = vadd.f32 0.0, %v1883
    %v1885 = vpop.f32.mrf.mxu0
    %v1886 = vadd.f32 0.0, %v1885
    %v1887 = vpop.f32.mrf.mxu0
    %v1888 = vpop.f32.mrf.mxu0
    %1889 = vdwg.mxu0
    %1890 = vmatprep.subr.bf16.mxu0 %v1336
    %1891 = vmatpush1.bf16.msra.mxu0 %v1335
    %1892 = vmatprep.subr.bf16.mxu0 %v1332
    %1893 = vmatpush1.bf16.msra.mxu0 %v1331
    %1894 = vmatprep.subr.bf16.mxu0 %v1328
    %1895 = vmatpush1.bf16.msra.mxu0 %v1327
    %1896 = vmatprep.subr.bf16.mxu0 %v1324
    %1897 = vmatpush1.bf16.msra.mxu0 %v1323
    %1898 = vmatprep.subr.bf16.mxu0 %v1320
    %1899 = vmatpush1.bf16.msra.mxu0 %v1319
    %1900 = vmatprep.subr.bf16.mxu0 %v1316
    %1901 = vmatpush1.bf16.msra.mxu0 %v1315
    %1902 = vmatprep.subr.bf16.mxu0 %v1312
    %1903 = vmatpush1.bf16.msra.mxu0 %v1311
    %1904 = vmatprep.subr.bf16.mxu0 %v1308
    %1905 = vmatpush1.bf16.msra.mxu0 %v1307
    %1906 = vmatprep.subr.bf16.mxu0 0
    %1907 = vmatpush2.bf16.msra.mxu0 0
    %1908 = vmatprep.subr.bf16.mxu0 0
    %1909 = vmatpush2.bf16.msra.mxu0 0
    %1910 = vmatprep.subr.bf16.mxu0 0
    %1911 = vmatpush2.bf16.msra.mxu0 0
    %1912 = vmatprep.subr.bf16.mxu0 0
    %1913 = vmatpush2.bf16.msra.mxu0 0
    %1914 = vmatprep.subr.bf16.mxu0 0
    %1915 = vmatpush2.bf16.msra.mxu0 0
    %1916 = vmatprep.subr.bf16.mxu0 0
    %1917 = vmatpush2.bf16.msra.mxu0 0
    %1918 = vmatprep.subr.bf16.mxu0 0
    %1919 = vmatpush2.bf16.msra.mxu0 0
    %1920 = vmatprep.subr.bf16.mxu0 0
    %1921 = vmatpush2.bf16.msra.mxu0 0
    %1922 = vmatprep.mubr.bf16.mxu0 0
    %1923 = vmatmul.mubr.bf16.gmra.mxu0 %v1848
    %v1924 = vpop.f32.mrf.mxu0
    %v1925 = vadd.f32 0.0, %v1924
    %v1926 = vpop.f32.mrf.mxu0
    %v1927 = vadd.f32 0.0, %v1926
    %v1928 = vpop.f32.mrf.mxu0
    %v1929 = vpop.f32.mrf.mxu0
    %1930 = vdwg.mxu0
    %v1931 = vadd.f32 %v1844, %v1884
    %v1932 = vadd.f32 %v1845, %v1886
    %v1933 = vadd.f32 %v1846, %v1925
    %v1934 = vadd.f32 %v1847, %v1927
    %v1935 = vxor.u32 %v1931, 2147483648
    %v1936 = vmul.f32 %v1935, 1.442695
    %v1937 = vpow.pop %v1936
    %v1938 = vadd.f32 %v1937, 1.0
    %v1939 = vrcp.pop %v1938
    %v1940 = vmul.f32 1.0, %v1939
    %v1941 = vxor.u32 %v1932, 2147483648
    %v1942 = vmul.f32 %v1941, 1.442695
    %v1943 = vpow.pop %v1942
    %v1944 = vadd.f32 %v1943, 1.0
    %v1945 = vrcp.pop %v1944
    %v1946 = vmul.f32 1.0, %v1945
    %v1947 = vtanh.pop %v1933
    %v1948 = vxor.u32 %v1934, 2147483648
    %v1949 = vmul.f32 %v1948, 1.442695
    %v1950 = vpow.pop %v1949
    %v1951 = vadd.f32 %v1950, 1.0
    %v1952 = vrcp.pop %v1951
    %v1953 = vmul.f32 1.0, %v1952
    %v1954 = vmul.f32 %v1946, %v1716
    %v1955 = vmul.f32 %v1940, %v1947
    %v1956 = vadd.f32 %v1954, %v1955
    %v1957 = vtanh.pop %v1956
    %v1958 = vmul.f32 %v1953, %v1957
    %s1959 = scalar_lea.vmem [#allocation4], 80
    %1960 = vst [vmem:[%s1959 + $0x8] sm:$0xff] %v1958
    %s1961 = scalar_lea.vmem [#allocation2], 48
    %v1962 = vld [vmem:[%s1961] sm:$0xff]
    %v1963 = vld [vmem:[%s1961 + $0x8] sm:$0xff]
    %v1964 = vunpack.c.l.bf16 %v1962
    %v1965 = vunpack.c.h.bf16 %v1962
    %v1966 = vunpack.c.l.bf16 %v1963
    %v1967 = vunpack.c.h.bf16 %v1963
    %v1968 = vpack.c.bf16 %v1838, %v1838
    %1969 = vmatprep.subr.bf16.mxu0 %v1056
    %1970 = vmatpush1.bf16.msra.mxu0 %v1055
    %1971 = vmatprep.subr.bf16.mxu0 %v1052
    %1972 = vmatpush1.bf16.msra.mxu0 %v1051
    %1973 = vmatprep.subr.bf16.mxu0 %v1048
    %1974 = vmatpush1.bf16.msra.mxu0 %v1047
    %1975 = vmatprep.subr.bf16.mxu0 %v1044
    %1976 = vmatpush1.bf16.msra.mxu0 %v1043
    %1977 = vmatprep.subr.bf16.mxu0 %v1040
    %1978 = vmatpush1.bf16.msra.mxu0 %v1039
    %1979 = vmatprep.subr.bf16.mxu0 %v1036
    %1980 = vmatpush1.bf16.msra.mxu0 %v1035
    %1981 = vmatprep.subr.bf16.mxu0 %v1032
    %1982 = vmatpush1.bf16.msra.mxu0 %v1031
    %1983 = vmatprep.subr.bf16.mxu0 %v1028
    %1984 = vmatpush1.bf16.msra.mxu0 %v1027
    %1985 = vmatprep.subr.bf16.mxu0 0
    %1986 = vmatpush2.bf16.msra.mxu0 0
    %1987 = vmatprep.subr.bf16.mxu0 0
    %1988 = vmatpush2.bf16.msra.mxu0 0
    %1989 = vmatprep.subr.bf16.mxu0 0
    %1990 = vmatpush2.bf16.msra.mxu0 0
    %1991 = vmatprep.subr.bf16.mxu0 0
    %1992 = vmatpush2.bf16.msra.mxu0 0
    %1993 = vmatprep.subr.bf16.mxu0 0
    %1994 = vmatpush2.bf16.msra.mxu0 0
    %1995 = vmatprep.subr.bf16.mxu0 0
    %1996 = vmatpush2.bf16.msra.mxu0 0
    %1997 = vmatprep.subr.bf16.mxu0 0
    %1998 = vmatpush2.bf16.msra.mxu0 0
    %1999 = vmatprep.subr.bf16.mxu0 0
    %2000 = vmatpush2.bf16.msra.mxu0 0
    %2001 = vmatprep.mubr.bf16.mxu0 0
    %2002 = vmatmul.mubr.bf16.gmra.mxu0 %v1968
    %v2003 = vpop.f32.mrf.mxu0
    %v2004 = vadd.f32 0.0, %v2003
    %v2005 = vpop.f32.mrf.mxu0
    %v2006 = vadd.f32 0.0, %v2005
    %v2007 = vpop.f32.mrf.mxu0
    %v2008 = vpop.f32.mrf.mxu0
    %2009 = vdwg.mxu0
    %2010 = vmatprep.subr.bf16.mxu0 %v1058
    %2011 = vmatpush1.bf16.msra.mxu0 %v1057
    %2012 = vmatprep.subr.bf16.mxu0 %v1054
    %2013 = vmatpush1.bf16.msra.mxu0 %v1053
    %2014 = vmatprep.subr.bf16.mxu0 %v1050
    %2015 = vmatpush1.bf16.msra.mxu0 %v1049
    %2016 = vmatprep.subr.bf16.mxu0 %v1046
    %2017 = vmatpush1.bf16.msra.mxu0 %v1045
    %2018 = vmatprep.subr.bf16.mxu0 %v1042
    %2019 = vmatpush1.bf16.msra.mxu0 %v1041
    %2020 = vmatprep.subr.bf16.mxu0 %v1038
    %2021 = vmatpush1.bf16.msra.mxu0 %v1037
    %2022 = vmatprep.subr.bf16.mxu0 %v1034
    %2023 = vmatpush1.bf16.msra.mxu0 %v1033
    %2024 = vmatprep.subr.bf16.mxu0 %v1030
    %2025 = vmatpush1.bf16.msra.mxu0 %v1029
    %2026 = vmatprep.subr.bf16.mxu0 0
    %2027 = vmatpush2.bf16.msra.mxu0 0
    %2028 = vmatprep.subr.bf16.mxu0 0
    %2029 = vmatpush2.bf16.msra.mxu0 0
    %2030 = vmatprep.subr.bf16.mxu0 0
    %2031 = vmatpush2.bf16.msra.mxu0 0
    %2032 = vmatprep.subr.bf16.mxu0 0
    %2033 = vmatpush2.bf16.msra.mxu0 0
    %2034 = vmatprep.subr.bf16.mxu0 0
    %2035 = vmatpush2.bf16.msra.mxu0 0
    %2036 = vmatprep.subr.bf16.mxu0 0
    %2037 = vmatpush2.bf16.msra.mxu0 0
    %2038 = vmatprep.subr.bf16.mxu0 0
    %2039 = vmatpush2.bf16.msra.mxu0 0
    %2040 = vmatprep.subr.bf16.mxu0 0
    %2041 = vmatpush2.bf16.msra.mxu0 0
    %2042 = vmatprep.mubr.bf16.mxu0 0
    %2043 = vmatmul.mubr.bf16.gmra.mxu0 %v1968
    %v2044 = vpop.f32.mrf.mxu0
    %v2045 = vadd.f32 0.0, %v2044
    %v2046 = vpop.f32.mrf.mxu0
    %v2047 = vadd.f32 0.0, %v2046
    %v2048 = vpop.f32.mrf.mxu0
    %v2049 = vpop.f32.mrf.mxu0
    %2050 = vdwg.mxu0
    %v2051 = vadd.f32 %v1964, %v2004
    %v2052 = vadd.f32 %v1965, %v2006
    %v2053 = vadd.f32 %v1966, %v2045
    %v2054 = vadd.f32 %v1967, %v2047
    %v2055 = vxor.u32 %v2051, 2147483648
    %v2056 = vmul.f32 %v2055, 1.442695
    %v2057 = vpow.pop %v2056
    %v2058 = vadd.f32 %v2057, 1.0
    %v2059 = vrcp.pop %v2058
    %v2060 = vmul.f32 1.0, %v2059
    %v2061 = vxor.u32 %v2052, 2147483648
    %v2062 = vmul.f32 %v2061, 1.442695
    %v2063 = vpow.pop %v2062
    %v2064 = vadd.f32 %v2063, 1.0
    %v2065 = vrcp.pop %v2064
    %v2066 = vmul.f32 1.0, %v2065
    %v2067 = vtanh.pop %v2053
    %v2068 = vxor.u32 %v2054, 2147483648
    %v2069 = vmul.f32 %v2068, 1.442695
    %v2070 = vpow.pop %v2069
    %v2071 = vadd.f32 %v2070, 1.0
    %v2072 = vrcp.pop %v2071
    %v2073 = vmul.f32 1.0, %v2072
    %v2074 = vmul.f32 %v2066, %v1836
    %v2075 = vmul.f32 %v2060, %v2067
    %v2076 = vadd.f32 %v2074, %v2075
    %v2077 = vtanh.pop %v2076
    %v2078 = vmul.f32 %v2073, %v2077
    %s2079 = scalar_lea.vmem [#allocation4], 48
    %2080 = vst [vmem:[%s2079] sm:$0xff] %v2078
    %s2081 = scalar_lea.vmem [#allocation3], 64
    %v2082 = vld [vmem:[%s2081] sm:$0xff]
    %v2083 = vld [vmem:[%s2081 + $0x8] sm:$0xff]
    %v2084 = vunpack.c.l.bf16 %v2082
    %v2085 = vunpack.c.h.bf16 %v2082
    %v2086 = vunpack.c.l.bf16 %v2083
    %v2087 = vunpack.c.h.bf16 %v2083
    %v2088 = vpack.c.bf16 %v1958, %v1958
    %2089 = vmatprep.subr.bf16.mxu0 %v1334
    %2090 = vmatpush1.bf16.msra.mxu0 %v1333
    %2091 = vmatprep.subr.bf16.mxu0 %v1330
    %2092 = vmatpush1.bf16.msra.mxu0 %v1329
    %2093 = vmatprep.subr.bf16.mxu0 %v1326
    %2094 = vmatpush1.bf16.msra.mxu0 %v1325
    %2095 = vmatprep.subr.bf16.mxu0 %v1322
    %2096 = vmatpush1.bf16.msra.mxu0 %v1321
    %2097 = vmatprep.subr.bf16.mxu0 %v1318
    %2098 = vmatpush1.bf16.msra.mxu0 %v1317
    %2099 = vmatprep.subr.bf16.mxu0 %v1314
    %2100 = vmatpush1.bf16.msra.mxu0 %v1313
    %2101 = vmatprep.subr.bf16.mxu0 %v1310
    %2102 = vmatpush1.bf16.msra.mxu0 %v1309
    %2103 = vmatprep.subr.bf16.mxu0 %v1306
    %2104 = vmatpush1.bf16.msra.mxu0 %v1305
    %2105 = vmatprep.subr.bf16.mxu0 0
    %2106 = vmatpush2.bf16.msra.mxu0 0
    %2107 = vmatprep.subr.bf16.mxu0 0
    %2108 = vmatpush2.bf16.msra.mxu0 0
    %2109 = vmatprep.subr.bf16.mxu0 0
    %2110 = vmatpush2.bf16.msra.mxu0 0
    %2111 = vmatprep.subr.bf16.mxu0 0
    %2112 = vmatpush2.bf16.msra.mxu0 0
    %2113 = vmatprep.subr.bf16.mxu0 0
    %2114 = vmatpush2.bf16.msra.mxu0 0
    %2115 = vmatprep.subr.bf16.mxu0 0
    %2116 = vmatpush2.bf16.msra.mxu0 0
    %2117 = vmatprep.subr.bf16.mxu0 0
    %2118 = vmatpush2.bf16.msra.mxu0 0
    %2119 = vmatprep.subr.bf16.mxu0 0
    %2120 = vmatpush2.bf16.msra.mxu0 0
    %2121 = vmatprep.mubr.bf16.mxu0 0
    %2122 = vmatmul.mubr.bf16.gmra.mxu0 %v2088
    %v2123 = vpop.f32.mrf.mxu0
    %v2124 = vadd.f32 0.0, %v2123
    %v2125 = vpop.f32.mrf.mxu0
    %v2126 = vadd.f32 0.0, %v2125
    %v2127 = vpop.f32.mrf.mxu0
    %v2128 = vpop.f32.mrf.mxu0
    %2129 = vdwg.mxu0
    %2130 = vmatprep.subr.bf16.mxu0 %v1336
    %2131 = vmatpush1.bf16.msra.mxu0 %v1335
    %2132 = vmatprep.subr.bf16.mxu0 %v1332
    %2133 = vmatpush1.bf16.msra.mxu0 %v1331
    %2134 = vmatprep.subr.bf16.mxu0 %v1328
    %2135 = vmatpush1.bf16.msra.mxu0 %v1327
    %2136 = vmatprep.subr.bf16.mxu0 %v1324
    %2137 = vmatpush1.bf16.msra.mxu0 %v1323
    %2138 = vmatprep.subr.bf16.mxu0 %v1320
    %2139 = vmatpush1.bf16.msra.mxu0 %v1319
    %2140 = vmatprep.subr.bf16.mxu0 %v1316
    %2141 = vmatpush1.bf16.msra.mxu0 %v1315
    %2142 = vmatprep.subr.bf16.mxu0 %v1312
    %2143 = vmatpush1.bf16.msra.mxu0 %v1311
    %2144 = vmatprep.subr.bf16.mxu0 %v1308
    %2145 = vmatpush1.bf16.msra.mxu0 %v1307
    %2146 = vmatprep.subr.bf16.mxu0 0
    %2147 = vmatpush2.bf16.msra.mxu0 0
    %2148 = vmatprep.subr.bf16.mxu0 0
    %2149 = vmatpush2.bf16.msra.mxu0 0
    %2150 = vmatprep.subr.bf16.mxu0 0
    %2151 = vmatpush2.bf16.msra.mxu0 0
    %2152 = vmatprep.subr.bf16.mxu0 0
    %2153 = vmatpush2.bf16.msra.mxu0 0
    %2154 = vmatprep.subr.bf16.mxu0 0
    %2155 = vmatpush2.bf16.msra.mxu0 0
    %2156 = vmatprep.subr.bf16.mxu0 0
    %2157 = vmatpush2.bf16.msra.mxu0 0
    %2158 = vmatprep.subr.bf16.mxu0 0
    %2159 = vmatpush2.bf16.msra.mxu0 0
    %2160 = vmatprep.subr.bf16.mxu0 0
    %2161 = vmatpush2.bf16.msra.mxu0 0
    %2162 = vmatprep.mubr.bf16.mxu0 0
    %2163 = vmatmul.mubr.bf16.gmra.mxu0 %v2088
    %v2164 = vpop.f32.mrf.mxu0
    %v2165 = vadd.f32 0.0, %v2164
    %v2166 = vpop.f32.mrf.mxu0
    %v2167 = vadd.f32 0.0, %v2166
    %v2168 = vpop.f32.mrf.mxu0
    %v2169 = vpop.f32.mrf.mxu0
    %2170 = vdwg.mxu0
    %v2171 = vadd.f32 %v2084, %v2124
    %v2172 = vadd.f32 %v2085, %v2126
    %v2173 = vadd.f32 %v2086, %v2165
    %v2174 = vadd.f32 %v2087, %v2167
    %v2175 = vxor.u32 %v2171, 2147483648
    %v2176 = vmul.f32 %v2175, 1.442695
    %v2177 = vpow.pop %v2176
    %v2178 = vadd.f32 %v2177, 1.0
    %v2179 = vrcp.pop %v2178
    %v2180 = vmul.f32 1.0, %v2179
    %v2181 = vxor.u32 %v2172, 2147483648
    %v2182 = vmul.f32 %v2181, 1.442695
    %v2183 = vpow.pop %v2182
    %v2184 = vadd.f32 %v2183, 1.0
    %v2185 = vrcp.pop %v2184
    %v2186 = vmul.f32 1.0, %v2185
    %v2187 = vtanh.pop %v2173
    %v2188 = vxor.u32 %v2174, 2147483648
    %v2189 = vmul.f32 %v2188, 1.442695
    %v2190 = vpow.pop %v2189
    %v2191 = vadd.f32 %v2190, 1.0
    %v2192 = vrcp.pop %v2191
    %v2193 = vmul.f32 1.0, %v2192
    %v2194 = vmul.f32 %v2186, %v1956
    %v2195 = vmul.f32 %v2180, %v2187
    %v2196 = vadd.f32 %v2194, %v2195
    %v2197 = vtanh.pop %v2196
    %v2198 = vmul.f32 %v2193, %v2197
    %s2199 = scalar_lea.vmem [#allocation4], 64
    %2200 = vst [vmem:[%s2199 + $0x8] sm:$0xff] %v2198
    %s2201 = scalar_lea.vmem [#allocation2], 64
    %v2202 = vld [vmem:[%s2201] sm:$0xff]
    %v2203 = vld [vmem:[%s2201 + $0x8] sm:$0xff]
    %v2204 = vunpack.c.l.bf16 %v2202
    %v2205 = vunpack.c.h.bf16 %v2202
    %v2206 = vunpack.c.l.bf16 %v2203
    %v2207 = vunpack.c.h.bf16 %v2203
    %v2208 = vpack.c.bf16 %v2078, %v2078
    %2209 = vmatprep.subr.bf16.mxu0 %v1056
    %2210 = vmatpush1.bf16.msra.mxu0 %v1055
    %2211 = vmatprep.subr.bf16.mxu0 %v1052
    %2212 = vmatpush1.bf16.msra.mxu0 %v1051
    %2213 = vmatprep.subr.bf16.mxu0 %v1048
    %2214 = vmatpush1.bf16.msra.mxu0 %v1047
    %2215 = vmatprep.subr.bf16.mxu0 %v1044
    %2216 = vmatpush1.bf16.msra.mxu0 %v1043
    %2217 = vmatprep.subr.bf16.mxu0 %v1040
    %2218 = vmatpush1.bf16.msra.mxu0 %v1039
    %2219 = vmatprep.subr.bf16.mxu0 %v1036
    %2220 = vmatpush1.bf16.msra.mxu0 %v1035
    %2221 = vmatprep.subr.bf16.mxu0 %v1032
    %2222 = vmatpush1.bf16.msra.mxu0 %v1031
    %2223 = vmatprep.subr.bf16.mxu0 %v1028
    %2224 = vmatpush1.bf16.msra.mxu0 %v1027
    %2225 = vmatprep.subr.bf16.mxu0 0
    %2226 = vmatpush2.bf16.msra.mxu0 0
    %2227 = vmatprep.subr.bf16.mxu0 0
    %2228 = vmatpush2.bf16.msra.mxu0 0
    %2229 = vmatprep.subr.bf16.mxu0 0
    %2230 = vmatpush2.bf16.msra.mxu0 0
    %2231 = vmatprep.subr.bf16.mxu0 0
    %2232 = vmatpush2.bf16.msra.mxu0 0
    %2233 = vmatprep.subr.bf16.mxu0 0
    %2234 = vmatpush2.bf16.msra.mxu0 0
    %2235 = vmatprep.subr.bf16.mxu0 0
    %2236 = vmatpush2.bf16.msra.mxu0 0
    %2237 = vmatprep.subr.bf16.mxu0 0
    %2238 = vmatpush2.bf16.msra.mxu0 0
    %2239 = vmatprep.subr.bf16.mxu0 0
    %2240 = vmatpush2.bf16.msra.mxu0 0
    %2241 = vmatprep.mubr.bf16.mxu0 0
    %2242 = vmatmul.mubr.bf16.gmra.mxu0 %v2208
    %v2243 = vpop.f32.mrf.mxu0
    %v2244 = vadd.f32 0.0, %v2243
    %v2245 = vpop.f32.mrf.mxu0
    %v2246 = vadd.f32 0.0, %v2245
    %v2247 = vpop.f32.mrf.mxu0
    %v2248 = vpop.f32.mrf.mxu0
    %2249 = vdwg.mxu0
    %2250 = vmatprep.subr.bf16.mxu0 %v1058
    %2251 = vmatpush1.bf16.msra.mxu0 %v1057
    %2252 = vmatprep.subr.bf16.mxu0 %v1054
    %2253 = vmatpush1.bf16.msra.mxu0 %v1053
    %2254 = vmatprep.subr.bf16.mxu0 %v1050
    %2255 = vmatpush1.bf16.msra.mxu0 %v1049
    %2256 = vmatprep.subr.bf16.mxu0 %v1046
    %2257 = vmatpush1.bf16.msra.mxu0 %v1045
    %2258 = vmatprep.subr.bf16.mxu0 %v1042
    %2259 = vmatpush1.bf16.msra.mxu0 %v1041
    %2260 = vmatprep.subr.bf16.mxu0 %v1038
    %2261 = vmatpush1.bf16.msra.mxu0 %v1037
    %2262 = vmatprep.subr.bf16.mxu0 %v1034
    %2263 = vmatpush1.bf16.msra.mxu0 %v1033
    %2264 = vmatprep.subr.bf16.mxu0 %v1030
    %2265 = vmatpush1.bf16.msra.mxu0 %v1029
    %2266 = vmatprep.subr.bf16.mxu0 0
    %2267 = vmatpush2.bf16.msra.mxu0 0
    %2268 = vmatprep.subr.bf16.mxu0 0
    %2269 = vmatpush2.bf16.msra.mxu0 0
    %2270 = vmatprep.subr.bf16.mxu0 0
    %2271 = vmatpush2.bf16.msra.mxu0 0
    %2272 = vmatprep.subr.bf16.mxu0 0
    %2273 = vmatpush2.bf16.msra.mxu0 0
    %2274 = vmatprep.subr.bf16.mxu0 0
    %2275 = vmatpush2.bf16.msra.mxu0 0
    %2276 = vmatprep.subr.bf16.mxu0 0
    %2277 = vmatpush2.bf16.msra.mxu0 0
    %2278 = vmatprep.subr.bf16.mxu0 0
    %2279 = vmatpush2.bf16.msra.mxu0 0
    %2280 = vmatprep.subr.bf16.mxu0 0
    %2281 = vmatpush2.bf16.msra.mxu0 0
    %2282 = vmatprep.mubr.bf16.mxu0 0
    %2283 = vmatmul.mubr.bf16.gmra.mxu0 %v2208
    %v2284 = vpop.f32.mrf.mxu0
    %v2285 = vadd.f32 0.0, %v2284
    %v2286 = vpop.f32.mrf.mxu0
    %v2287 = vadd.f32 0.0, %v2286
    %v2288 = vpop.f32.mrf.mxu0
    %v2289 = vpop.f32.mrf.mxu0
    %2290 = vdwg.mxu0
    %v2291 = vadd.f32 %v2204, %v2244
    %v2292 = vadd.f32 %v2205, %v2246
    %v2293 = vadd.f32 %v2206, %v2285
    %v2294 = vadd.f32 %v2207, %v2287
    %v2295 = vxor.u32 %v2291, 2147483648
    %v2296 = vmul.f32 %v2295, 1.442695
    %v2297 = vpow.pop %v2296
    %v2298 = vadd.f32 %v2297, 1.0
    %v2299 = vrcp.pop %v2298
    %v2300 = vmul.f32 1.0, %v2299
    %v2301 = vxor.u32 %v2292, 2147483648
    %v2302 = vmul.f32 %v2301, 1.442695
    %v2303 = vpow.pop %v2302
    %v2304 = vadd.f32 %v2303, 1.0
    %v2305 = vrcp.pop %v2304
    %v2306 = vmul.f32 1.0, %v2305
    %v2307 = vtanh.pop %v2293
    %v2308 = vxor.u32 %v2294, 2147483648
    %v2309 = vmul.f32 %v2308, 1.442695
    %v2310 = vpow.pop %v2309
    %v2311 = vadd.f32 %v2310, 1.0
    %v2312 = vrcp.pop %v2311
    %v2313 = vmul.f32 1.0, %v2312
    %v2314 = vmul.f32 %v2306, %v2076
    %v2315 = vmul.f32 %v2300, %v2307
    %v2316 = vadd.f32 %v2314, %v2315
    %v2317 = vtanh.pop %v2316
    %v2318 = vmul.f32 %v2313, %v2317
    %2319 = vst [vmem:[%s2199] sm:$0xff] %v2318
    %s2320 = scalar_lea.vmem [#allocation3], 48
    %v2321 = vld [vmem:[%s2320] sm:$0xff]
    %v2322 = vld [vmem:[%s2320 + $0x8] sm:$0xff]
    %v2323 = vunpack.c.l.bf16 %v2321
    %v2324 = vunpack.c.h.bf16 %v2321
    %v2325 = vunpack.c.l.bf16 %v2322
    %v2326 = vunpack.c.h.bf16 %v2322
    %v2327 = vpack.c.bf16 %v2198, %v2198
    %2328 = vmatprep.subr.bf16.mxu0 %v1334
    %2329 = vmatpush1.bf16.msra.mxu0 %v1333
    %2330 = vmatprep.subr.bf16.mxu0 %v1330
    %2331 = vmatpush1.bf16.msra.mxu0 %v1329
    %2332 = vmatprep.subr.bf16.mxu0 %v1326
    %2333 = vmatpush1.bf16.msra.mxu0 %v1325
    %2334 = vmatprep.subr.bf16.mxu0 %v1322
    %2335 = vmatpush1.bf16.msra.mxu0 %v1321
    %2336 = vmatprep.subr.bf16.mxu0 %v1318
    %2337 = vmatpush1.bf16.msra.mxu0 %v1317
    %2338 = vmatprep.subr.bf16.mxu0 %v1314
    %2339 = vmatpush1.bf16.msra.mxu0 %v1313
    %2340 = vmatprep.subr.bf16.mxu0 %v1310
    %2341 = vmatpush1.bf16.msra.mxu0 %v1309
    %2342 = vmatprep.subr.bf16.mxu0 %v1306
    %2343 = vmatpush1.bf16.msra.mxu0 %v1305
    %2344 = vmatprep.subr.bf16.mxu0 0
    %2345 = vmatpush2.bf16.msra.mxu0 0
    %2346 = vmatprep.subr.bf16.mxu0 0
    %2347 = vmatpush2.bf16.msra.mxu0 0
    %2348 = vmatprep.subr.bf16.mxu0 0
    %2349 = vmatpush2.bf16.msra.mxu0 0
    %2350 = vmatprep.subr.bf16.mxu0 0
    %2351 = vmatpush2.bf16.msra.mxu0 0
    %2352 = vmatprep.subr.bf16.mxu0 0
    %2353 = vmatpush2.bf16.msra.mxu0 0
    %2354 = vmatprep.subr.bf16.mxu0 0
    %2355 = vmatpush2.bf16.msra.mxu0 0
    %2356 = vmatprep.subr.bf16.mxu0 0
    %2357 = vmatpush2.bf16.msra.mxu0 0
    %2358 = vmatprep.subr.bf16.mxu0 0
    %2359 = vmatpush2.bf16.msra.mxu0 0
    %2360 = vmatprep.mubr.bf16.mxu0 0
    %2361 = vmatmul.mubr.bf16.gmra.mxu0 %v2327
    %v2362 = vpop.f32.mrf.mxu0
    %v2363 = vadd.f32 0.0, %v2362
    %v2364 = vpop.f32.mrf.mxu0
    %v2365 = vadd.f32 0.0, %v2364
    %v2366 = vpop.f32.mrf.mxu0
    %v2367 = vpop.f32.mrf.mxu0
    %2368 = vdwg.mxu0
    %2369 = vmatprep.subr.bf16.mxu0 %v1336
    %2370 = vmatpush1.bf16.msra.mxu0 %v1335
    %2371 = vmatprep.subr.bf16.mxu0 %v1332
    %2372 = vmatpush1.bf16.msra.mxu0 %v1331
    %2373 = vmatprep.subr.bf16.mxu0 %v1328
    %2374 = vmatpush1.bf16.msra.mxu0 %v1327
    %2375 = vmatprep.subr.bf16.mxu0 %v1324
    %2376 = vmatpush1.bf16.msra.mxu0 %v1323
    %2377 = vmatprep.subr.bf16.mxu0 %v1320
    %2378 = vmatpush1.bf16.msra.mxu0 %v1319
    %2379 = vmatprep.subr.bf16.mxu0 %v1316
    %2380 = vmatpush1.bf16.msra.mxu0 %v1315
    %2381 = vmatprep.subr.bf16.mxu0 %v1312
    %2382 = vmatpush1.bf16.msra.mxu0 %v1311
    %2383 = vmatprep.subr.bf16.mxu0 %v1308
    %2384 = vmatpush1.bf16.msra.mxu0 %v1307
    %2385 = vmatprep.subr.bf16.mxu0 0
    %2386 = vmatpush2.bf16.msra.mxu0 0
    %2387 = vmatprep.subr.bf16.mxu0 0
    %2388 = vmatpush2.bf16.msra.mxu0 0
    %2389 = vmatprep.subr.bf16.mxu0 0
    %2390 = vmatpush2.bf16.msra.mxu0 0
    %2391 = vmatprep.subr.bf16.mxu0 0
    %2392 = vmatpush2.bf16.msra.mxu0 0
    %2393 = vmatprep.subr.bf16.mxu0 0
    %2394 = vmatpush2.bf16.msra.mxu0 0
    %2395 = vmatprep.subr.bf16.mxu0 0
    %2396 = vmatpush2.bf16.msra.mxu0 0
    %2397 = vmatprep.subr.bf16.mxu0 0
    %2398 = vmatpush2.bf16.msra.mxu0 0
    %2399 = vmatprep.subr.bf16.mxu0 0
    %2400 = vmatpush2.bf16.msra.mxu0 0
    %2401 = vmatprep.mubr.bf16.mxu0 0
    %2402 = vmatmul.mubr.bf16.gmra.mxu0 %v2327
    %v2403 = vpop.f32.mrf.mxu0
    %v2404 = vadd.f32 0.0, %v2403
    %v2405 = vpop.f32.mrf.mxu0
    %v2406 = vadd.f32 0.0, %v2405
    %v2407 = vpop.f32.mrf.mxu0
    %v2408 = vpop.f32.mrf.mxu0
    %2409 = vdwg.mxu0
    %v2410 = vadd.f32 %v2323, %v2363
    %v2411 = vadd.f32 %v2324, %v2365
    %v2412 = vadd.f32 %v2325, %v2404
    %v2413 = vadd.f32 %v2326, %v2406
    %v2414 = vxor.u32 %v2410, 2147483648
    %v2415 = vmul.f32 %v2414, 1.442695
    %v2416 = vpow.pop %v2415
    %v2417 = vadd.f32 %v2416, 1.0
    %v2418 = vrcp.pop %v2417
    %v2419 = vmul.f32 1.0, %v2418
    %v2420 = vxor.u32 %v2411, 2147483648
    %v2421 = vmul.f32 %v2420, 1.442695
    %v2422 = vpow.pop %v2421
    %v2423 = vadd.f32 %v2422, 1.0
    %v2424 = vrcp.pop %v2423
    %v2425 = vmul.f32 1.0, %v2424
    %v2426 = vtanh.pop %v2412
    %v2427 = vxor.u32 %v2413, 2147483648
    %v2428 = vmul.f32 %v2427, 1.442695
    %v2429 = vpow.pop %v2428
    %v2430 = vadd.f32 %v2429, 1.0
    %v2431 = vrcp.pop %v2430
    %v2432 = vmul.f32 1.0, %v2431
    %v2433 = vmul.f32 %v2425, %v2196
    %v2434 = vmul.f32 %v2419, %v2426
    %v2435 = vadd.f32 %v2433, %v2434
    %v2436 = vtanh.pop %v2435
    %v2437 = vmul.f32 %v2432, %v2436
    %2438 = vst [vmem:[%s2079 + $0x8] sm:$0xff] %v2437
    %s2439 = scalar_lea.vmem [#allocation2], 80
    %v2440 = vld [vmem:[%s2439] sm:$0xff]
    %v2441 = vld [vmem:[%s2439 + $0x8] sm:$0xff]
    %v2442 = vunpack.c.l.bf16 %v2440
    %v2443 = vunpack.c.h.bf16 %v2440
    %v2444 = vunpack.c.l.bf16 %v2441
    %v2445 = vunpack.c.h.bf16 %v2441
    %v2446 = vpack.c.bf16 %v2318, %v2318
    %2447 = vmatprep.subr.bf16.mxu0 %v1056
    %2448 = vmatpush1.bf16.msra.mxu0 %v1055
    %2449 = vmatprep.subr.bf16.mxu0 %v1052
    %2450 = vmatpush1.bf16.msra.mxu0 %v1051
    %2451 = vmatprep.subr.bf16.mxu0 %v1048
    %2452 = vmatpush1.bf16.msra.mxu0 %v1047
    %2453 = vmatprep.subr.bf16.mxu0 %v1044
    %2454 = vmatpush1.bf16.msra.mxu0 %v1043
    %2455 = vmatprep.subr.bf16.mxu0 %v1040
    %2456 = vmatpush1.bf16.msra.mxu0 %v1039
    %2457 = vmatprep.subr.bf16.mxu0 %v1036
    %2458 = vmatpush1.bf16.msra.mxu0 %v1035
    %2459 = vmatprep.subr.bf16.mxu0 %v1032
    %2460 = vmatpush1.bf16.msra.mxu0 %v1031
    %2461 = vmatprep.subr.bf16.mxu0 %v1028
    %2462 = vmatpush1.bf16.msra.mxu0 %v1027
    %2463 = vmatprep.subr.bf16.mxu0 0
    %2464 = vmatpush2.bf16.msra.mxu0 0
    %2465 = vmatprep.subr.bf16.mxu0 0
    %2466 = vmatpush2.bf16.msra.mxu0 0
    %2467 = vmatprep.subr.bf16.mxu0 0
    %2468 = vmatpush2.bf16.msra.mxu0 0
    %2469 = vmatprep.subr.bf16.mxu0 0
    %2470 = vmatpush2.bf16.msra.mxu0 0
    %2471 = vmatprep.subr.bf16.mxu0 0
    %2472 = vmatpush2.bf16.msra.mxu0 0
    %2473 = vmatprep.subr.bf16.mxu0 0
    %2474 = vmatpush2.bf16.msra.mxu0 0
    %2475 = vmatprep.subr.bf16.mxu0 0
    %2476 = vmatpush2.bf16.msra.mxu0 0
    %2477 = vmatprep.subr.bf16.mxu0 0
    %2478 = vmatpush2.bf16.msra.mxu0 0
    %2479 = vmatprep.mubr.bf16.mxu0 0
    %2480 = vmatmul.mubr.bf16.gmra.mxu0 %v2446
    %v2481 = vpop.f32.mrf.mxu0
    %v2482 = vadd.f32 0.0, %v2481
    %v2483 = vpop.f32.mrf.mxu0
    %v2484 = vadd.f32 0.0, %v2483
    %v2485 = vpop.f32.mrf.mxu0
    %v2486 = vpop.f32.mrf.mxu0
    %2487 = vdwg.mxu0
    %2488 = vmatprep.subr.bf16.mxu0 %v1058
    %2489 = vmatpush1.bf16.msra.mxu0 %v1057
    %2490 = vmatprep.subr.bf16.mxu0 %v1054
    %2491 = vmatpush1.bf16.msra.mxu0 %v1053
    %2492 = vmatprep.subr.bf16.mxu0 %v1050
    %2493 = vmatpush1.bf16.msra.mxu0 %v1049
    %2494 = vmatprep.subr.bf16.mxu0 %v1046
    %2495 = vmatpush1.bf16.msra.mxu0 %v1045
    %2496 = vmatprep.subr.bf16.mxu0 %v1042
    %2497 = vmatpush1.bf16.msra.mxu0 %v1041
    %2498 = vmatprep.subr.bf16.mxu0 %v1038
    %2499 = vmatpush1.bf16.msra.mxu0 %v1037
    %2500 = vmatprep.subr.bf16.mxu0 %v1034
    %2501 = vmatpush1.bf16.msra.mxu0 %v1033
    %2502 = vmatprep.subr.bf16.mxu0 %v1030
    %2503 = vmatpush1.bf16.msra.mxu0 %v1029
    %2504 = vmatprep.subr.bf16.mxu0 0
    %2505 = vmatpush2.bf16.msra.mxu0 0
    %2506 = vmatprep.subr.bf16.mxu0 0
    %2507 = vmatpush2.bf16.msra.mxu0 0
    %2508 = vmatprep.subr.bf16.mxu0 0
    %2509 = vmatpush2.bf16.msra.mxu0 0
    %2510 = vmatprep.subr.bf16.mxu0 0
    %2511 = vmatpush2.bf16.msra.mxu0 0
    %2512 = vmatprep.subr.bf16.mxu0 0
    %2513 = vmatpush2.bf16.msra.mxu0 0
    %2514 = vmatprep.subr.bf16.mxu0 0
    %2515 = vmatpush2.bf16.msra.mxu0 0
    %2516 = vmatprep.subr.bf16.mxu0 0
    %2517 = vmatpush2.bf16.msra.mxu0 0
    %2518 = vmatprep.subr.bf16.mxu0 0
    %2519 = vmatpush2.bf16.msra.mxu0 0
    %2520 = vmatprep.mubr.bf16.mxu0 0
    %2521 = vmatmul.mubr.bf16.gmra.mxu0 %v2446
    %v2522 = vpop.f32.mrf.mxu0
    %v2523 = vadd.f32 0.0, %v2522
    %v2524 = vpop.f32.mrf.mxu0
    %v2525 = vadd.f32 0.0, %v2524
    %v2526 = vpop.f32.mrf.mxu0
    %v2527 = vpop.f32.mrf.mxu0
    %2528 = vdwg.mxu0
    %v2529 = vadd.f32 %v2442, %v2482
    %v2530 = vadd.f32 %v2443, %v2484
    %v2531 = vadd.f32 %v2444, %v2523
    %v2532 = vadd.f32 %v2445, %v2525
    %v2533 = vxor.u32 %v2529, 2147483648
    %v2534 = vmul.f32 %v2533, 1.442695
    %v2535 = vpow.pop %v2534
    %v2536 = vadd.f32 %v2535, 1.0
    %v2537 = vrcp.pop %v2536
    %v2538 = vmul.f32 1.0, %v2537
    %v2539 = vxor.u32 %v2530, 2147483648
    %v2540 = vmul.f32 %v2539, 1.442695
    %v2541 = vpow.pop %v2540
    %v2542 = vadd.f32 %v2541, 1.0
    %v2543 = vrcp.pop %v2542
    %v2544 = vmul.f32 1.0, %v2543
    %v2545 = vtanh.pop %v2531
    %v2546 = vxor.u32 %v2532, 2147483648
    %v2547 = vmul.f32 %v2546, 1.442695
    %v2548 = vpow.pop %v2547
    %v2549 = vadd.f32 %v2548, 1.0
    %v2550 = vrcp.pop %v2549
    %v2551 = vmul.f32 1.0, %v2550
    %v2552 = vmul.f32 %v2544, %v2316
    %v2553 = vmul.f32 %v2538, %v2545
    %v2554 = vadd.f32 %v2552, %v2553
    %v2555 = vtanh.pop %v2554
    %v2556 = vmul.f32 %v2551, %v2555
    %2557 = vst [vmem:[%s1959] sm:$0xff] %v2556
    %s2558 = scalar_lea.vmem [#allocation3], 32
    %v2559 = vld [vmem:[%s2558] sm:$0xff]
    %v2560 = vld [vmem:[%s2558 + $0x8] sm:$0xff]
    %v2561 = vunpack.c.l.bf16 %v2559
    %v2562 = vunpack.c.h.bf16 %v2559
    %v2563 = vunpack.c.l.bf16 %v2560
    %v2564 = vunpack.c.h.bf16 %v2560
    %v2565 = vpack.c.bf16 %v2437, %v2437
    %2566 = vmatprep.subr.bf16.mxu0 %v1334
    %2567 = vmatpush1.bf16.msra.mxu0 %v1333
    %2568 = vmatprep.subr.bf16.mxu0 %v1330
    %2569 = vmatpush1.bf16.msra.mxu0 %v1329
    %2570 = vmatprep.subr.bf16.mxu0 %v1326
    %2571 = vmatpush1.bf16.msra.mxu0 %v1325
    %2572 = vmatprep.subr.bf16.mxu0 %v1322
    %2573 = vmatpush1.bf16.msra.mxu0 %v1321
    %2574 = vmatprep.subr.bf16.mxu0 %v1318
    %2575 = vmatpush1.bf16.msra.mxu0 %v1317
    %2576 = vmatprep.subr.bf16.mxu0 %v1314
    %2577 = vmatpush1.bf16.msra.mxu0 %v1313
    %2578 = vmatprep.subr.bf16.mxu0 %v1310
    %2579 = vmatpush1.bf16.msra.mxu0 %v1309
    %2580 = vmatprep.subr.bf16.mxu0 %v1306
    %2581 = vmatpush1.bf16.msra.mxu0 %v1305
    %2582 = vmatprep.subr.bf16.mxu0 0
    %2583 = vmatpush2.bf16.msra.mxu0 0
    %2584 = vmatprep.subr.bf16.mxu0 0
    %2585 = vmatpush2.bf16.msra.mxu0 0
    %2586 = vmatprep.subr.bf16.mxu0 0
    %2587 = vmatpush2.bf16.msra.mxu0 0
    %2588 = vmatprep.subr.bf16.mxu0 0
    %2589 = vmatpush2.bf16.msra.mxu0 0
    %2590 = vmatprep.subr.bf16.mxu0 0
    %2591 = vmatpush2.bf16.msra.mxu0 0
    %2592 = vmatprep.subr.bf16.mxu0 0
    %2593 = vmatpush2.bf16.msra.mxu0 0
    %2594 = vmatprep.subr.bf16.mxu0 0
    %2595 = vmatpush2.bf16.msra.mxu0 0
    %2596 = vmatprep.subr.bf16.mxu0 0
    %2597 = vmatpush2.bf16.msra.mxu0 0
    %2598 = vmatprep.mubr.bf16.mxu0 0
    %2599 = vmatmul.mubr.bf16.gmra.mxu0 %v2565
    %v2600 = vpop.f32.mrf.mxu0
    %v2601 = vadd.f32 0.0, %v2600
    %v2602 = vpop.f32.mrf.mxu0
    %v2603 = vadd.f32 0.0, %v2602
    %v2604 = vpop.f32.mrf.mxu0
    %v2605 = vpop.f32.mrf.mxu0
    %2606 = vdwg.mxu0
    %2607 = vmatprep.subr.bf16.mxu0 %v1336
    %2608 = vmatpush1.bf16.msra.mxu0 %v1335
    %2609 = vmatprep.subr.bf16.mxu0 %v1332
    %2610 = vmatpush1.bf16.msra.mxu0 %v1331
    %2611 = vmatprep.subr.bf16.mxu0 %v1328
    %2612 = vmatpush1.bf16.msra.mxu0 %v1327
    %2613 = vmatprep.subr.bf16.mxu0 %v1324
    %2614 = vmatpush1.bf16.msra.mxu0 %v1323
    %2615 = vmatprep.subr.bf16.mxu0 %v1320
    %2616 = vmatpush1.bf16.msra.mxu0 %v1319
    %2617 = vmatprep.subr.bf16.mxu0 %v1316
    %2618 = vmatpush1.bf16.msra.mxu0 %v1315
    %2619 = vmatprep.subr.bf16.mxu0 %v1312
    %2620 = vmatpush1.bf16.msra.mxu0 %v1311
    %2621 = vmatprep.subr.bf16.mxu0 %v1308
    %2622 = vmatpush1.bf16.msra.mxu0 %v1307
    %2623 = vmatprep.subr.bf16.mxu0 0
    %2624 = vmatpush2.bf16.msra.mxu0 0
    %2625 = vmatprep.subr.bf16.mxu0 0
    %2626 = vmatpush2.bf16.msra.mxu0 0
    %2627 = vmatprep.subr.bf16.mxu0 0
    %2628 = vmatpush2.bf16.msra.mxu0 0
    %2629 = vmatprep.subr.bf16.mxu0 0
    %2630 = vmatpush2.bf16.msra.mxu0 0
    %2631 = vmatprep.subr.bf16.mxu0 0
    %2632 = vmatpush2.bf16.msra.mxu0 0
    %2633 = vmatprep.subr.bf16.mxu0 0
    %2634 = vmatpush2.bf16.msra.mxu0 0
    %2635 = vmatprep.subr.bf16.mxu0 0
    %2636 = vmatpush2.bf16.msra.mxu0 0
    %2637 = vmatprep.subr.bf16.mxu0 0
    %2638 = vmatpush2.bf16.msra.mxu0 0
    %2639 = vmatprep.mubr.bf16.mxu0 0
    %2640 = vmatmul.mubr.bf16.gmra.mxu0 %v2565
    %v2641 = vpop.f32.mrf.mxu0
    %v2642 = vadd.f32 0.0, %v2641
    %v2643 = vpop.f32.mrf.mxu0
    %v2644 = vadd.f32 0.0, %v2643
    %v2645 = vpop.f32.mrf.mxu0
    %v2646 = vpop.f32.mrf.mxu0
    %2647 = vdwg.mxu0
    %v2648 = vadd.f32 %v2561, %v2601
    %v2649 = vadd.f32 %v2562, %v2603
    %v2650 = vadd.f32 %v2563, %v2642
    %v2651 = vadd.f32 %v2564, %v2644
    %v2652 = vxor.u32 %v2648, 2147483648
    %v2653 = vmul.f32 %v2652, 1.442695
    %v2654 = vpow.pop %v2653
    %v2655 = vadd.f32 %v2654, 1.0
    %v2656 = vrcp.pop %v2655
    %v2657 = vmul.f32 1.0, %v2656
    %v2658 = vxor.u32 %v2649, 2147483648
    %v2659 = vmul.f32 %v2658, 1.442695
    %v2660 = vpow.pop %v2659
    %v2661 = vadd.f32 %v2660, 1.0
    %v2662 = vrcp.pop %v2661
    %v2663 = vmul.f32 1.0, %v2662
    %v2664 = vtanh.pop %v2650
    %v2665 = vxor.u32 %v2651, 2147483648
    %v2666 = vmul.f32 %v2665, 1.442695
    %v2667 = vpow.pop %v2666
    %v2668 = vadd.f32 %v2667, 1.0
    %v2669 = vrcp.pop %v2668
    %v2670 = vmul.f32 1.0, %v2669
    %v2671 = vmul.f32 %v2663, %v2435
    %v2672 = vmul.f32 %v2657, %v2664
    %v2673 = vadd.f32 %v2671, %v2672
    %v2674 = vtanh.pop %v2673
    %v2675 = vmul.f32 %v2670, %v2674
    %2676 = vst [vmem:[%s1839 + $0x8] sm:$0xff] %v2675
    %s2677 = scalar_lea.vmem [#allocation2], 96
    %v2678 = vld [vmem:[%s2677] sm:$0xff]
    %v2679 = vld [vmem:[%s2677 + $0x8] sm:$0xff]
    %v2680 = vunpack.c.l.bf16 %v2678
    %v2681 = vunpack.c.h.bf16 %v2678
    %v2682 = vunpack.c.l.bf16 %v2679
    %v2683 = vunpack.c.h.bf16 %v2679
    %v2684 = vpack.c.bf16 %v2556, %v2556
    %2685 = vmatprep.subr.bf16.mxu0 %v1056
    %2686 = vmatpush1.bf16.msra.mxu0 %v1055
    %2687 = vmatprep.subr.bf16.mxu0 %v1052
    %2688 = vmatpush1.bf16.msra.mxu0 %v1051
    %2689 = vmatprep.subr.bf16.mxu0 %v1048
    %2690 = vmatpush1.bf16.msra.mxu0 %v1047
    %2691 = vmatprep.subr.bf16.mxu0 %v1044
    %2692 = vmatpush1.bf16.msra.mxu0 %v1043
    %2693 = vmatprep.subr.bf16.mxu0 %v1040
    %2694 = vmatpush1.bf16.msra.mxu0 %v1039
    %2695 = vmatprep.subr.bf16.mxu0 %v1036
    %2696 = vmatpush1.bf16.msra.mxu0 %v1035
    %2697 = vmatprep.subr.bf16.mxu0 %v1032
    %2698 = vmatpush1.bf16.msra.mxu0 %v1031
    %2699 = vmatprep.subr.bf16.mxu0 %v1028
    %2700 = vmatpush1.bf16.msra.mxu0 %v1027
    %2701 = vmatprep.subr.bf16.mxu0 0
    %2702 = vmatpush2.bf16.msra.mxu0 0
    %2703 = vmatprep.subr.bf16.mxu0 0
    %2704 = vmatpush2.bf16.msra.mxu0 0
    %2705 = vmatprep.subr.bf16.mxu0 0
    %2706 = vmatpush2.bf16.msra.mxu0 0
    %2707 = vmatprep.subr.bf16.mxu0 0
    %2708 = vmatpush2.bf16.msra.mxu0 0
    %2709 = vmatprep.subr.bf16.mxu0 0
    %2710 = vmatpush2.bf16.msra.mxu0 0
    %2711 = vmatprep.subr.bf16.mxu0 0
    %2712 = vmatpush2.bf16.msra.mxu0 0
    %2713 = vmatprep.subr.bf16.mxu0 0
    %2714 = vmatpush2.bf16.msra.mxu0 0
    %2715 = vmatprep.subr.bf16.mxu0 0
    %2716 = vmatpush2.bf16.msra.mxu0 0
    %2717 = vmatprep.mubr.bf16.mxu0 0
    %2718 = vmatmul.mubr.bf16.gmra.mxu0 %v2684
    %v2719 = vpop.f32.mrf.mxu0
    %v2720 = vadd.f32 0.0, %v2719
    %v2721 = vpop.f32.mrf.mxu0
    %v2722 = vadd.f32 0.0, %v2721
    %v2723 = vpop.f32.mrf.mxu0
    %v2724 = vpop.f32.mrf.mxu0
    %2725 = vdwg.mxu0
    %2726 = vmatprep.subr.bf16.mxu0 %v1058
    %2727 = vmatpush1.bf16.msra.mxu0 %v1057
    %2728 = vmatprep.subr.bf16.mxu0 %v1054
    %2729 = vmatpush1.bf16.msra.mxu0 %v1053
    %2730 = vmatprep.subr.bf16.mxu0 %v1050
    %2731 = vmatpush1.bf16.msra.mxu0 %v1049
    %2732 = vmatprep.subr.bf16.mxu0 %v1046
    %2733 = vmatpush1.bf16.msra.mxu0 %v1045
    %2734 = vmatprep.subr.bf16.mxu0 %v1042
    %2735 = vmatpush1.bf16.msra.mxu0 %v1041
    %2736 = vmatprep.subr.bf16.mxu0 %v1038
    %2737 = vmatpush1.bf16.msra.mxu0 %v1037
    %2738 = vmatprep.subr.bf16.mxu0 %v1034
    %2739 = vmatpush1.bf16.msra.mxu0 %v1033
    %2740 = vmatprep.subr.bf16.mxu0 %v1030
    %2741 = vmatpush1.bf16.msra.mxu0 %v1029
    %2742 = vmatprep.subr.bf16.mxu0 0
    %2743 = vmatpush2.bf16.msra.mxu0 0
    %2744 = vmatprep.subr.bf16.mxu0 0
    %2745 = vmatpush2.bf16.msra.mxu0 0
    %2746 = vmatprep.subr.bf16.mxu0 0
    %2747 = vmatpush2.bf16.msra.mxu0 0
    %2748 = vmatprep.subr.bf16.mxu0 0
    %2749 = vmatpush2.bf16.msra.mxu0 0
    %2750 = vmatprep.subr.bf16.mxu0 0
    %2751 = vmatpush2.bf16.msra.mxu0 0
    %2752 = vmatprep.subr.bf16.mxu0 0
    %2753 = vmatpush2.bf16.msra.mxu0 0
    %2754 = vmatprep.subr.bf16.mxu0 0
    %2755 = vmatpush2.bf16.msra.mxu0 0
    %2756 = vmatprep.subr.bf16.mxu0 0
    %2757 = vmatpush2.bf16.msra.mxu0 0
    %2758 = vmatprep.mubr.bf16.mxu0 0
    %2759 = vmatmul.mubr.bf16.gmra.mxu0 %v2684
    %v2760 = vpop.f32.mrf.mxu0
    %v2761 = vadd.f32 0.0, %v2760
    %v2762 = vpop.f32.mrf.mxu0
    %v2763 = vadd.f32 0.0, %v2762
    %v2764 = vpop.f32.mrf.mxu0
    %v2765 = vpop.f32.mrf.mxu0
    %2766 = vdwg.mxu0
    %v2767 = vadd.f32 %v2680, %v2720
    %v2768 = vadd.f32 %v2681, %v2722
    %v2769 = vadd.f32 %v2682, %v2761
    %v2770 = vadd.f32 %v2683, %v2763
    %v2771 = vxor.u32 %v2767, 2147483648
    %v2772 = vmul.f32 %v2771, 1.442695
    %v2773 = vpow.pop %v2772
    %v2774 = vadd.f32 %v2773, 1.0
    %v2775 = vrcp.pop %v2774
    %v2776 = vmul.f32 1.0, %v2775
    %v2777 = vxor.u32 %v2768, 2147483648
    %v2778 = vmul.f32 %v2777, 1.442695
    %v2779 = vpow.pop %v2778
    %v2780 = vadd.f32 %v2779, 1.0
    %v2781 = vrcp.pop %v2780
    %v2782 = vmul.f32 1.0, %v2781
    %v2783 = vtanh.pop %v2769
    %v2784 = vxor.u32 %v2770, 2147483648
    %v2785 = vmul.f32 %v2784, 1.442695
    %v2786 = vpow.pop %v2785
    %v2787 = vadd.f32 %v2786, 1.0
    %v2788 = vrcp.pop %v2787
    %v2789 = vmul.f32 1.0, %v2788
    %v2790 = vmul.f32 %v2782, %v2554
    %v2791 = vmul.f32 %v2776, %v2783
    %v2792 = vadd.f32 %v2790, %v2791
    %v2793 = vtanh.pop %v2792
    %v2794 = vmul.f32 %v2789, %v2793
    %2795 = vst [vmem:[%s1719] sm:$0xff] %v2794
    %s2796 = scalar_lea.vmem [#allocation3], 16
    %v2797 = vld [vmem:[%s2796] sm:$0xff]
    %v2798 = vld [vmem:[%s2796 + $0x8] sm:$0xff]
    %v2799 = vunpack.c.l.bf16 %v2797
    %v2800 = vunpack.c.h.bf16 %v2797
    %v2801 = vunpack.c.l.bf16 %v2798
    %v2802 = vunpack.c.h.bf16 %v2798
    %v2803 = vpack.c.bf16 %v2675, %v2675
    %2804 = vmatprep.subr.bf16.mxu0 %v1334
    %2805 = vmatpush1.bf16.msra.mxu0 %v1333
    %2806 = vmatprep.subr.bf16.mxu0 %v1330
    %2807 = vmatpush1.bf16.msra.mxu0 %v1329
    %2808 = vmatprep.subr.bf16.mxu0 %v1326
    %2809 = vmatpush1.bf16.msra.mxu0 %v1325
    %2810 = vmatprep.subr.bf16.mxu0 %v1322
    %2811 = vmatpush1.bf16.msra.mxu0 %v1321
    %2812 = vmatprep.subr.bf16.mxu0 %v1318
    %2813 = vmatpush1.bf16.msra.mxu0 %v1317
    %2814 = vmatprep.subr.bf16.mxu0 %v1314
    %2815 = vmatpush1.bf16.msra.mxu0 %v1313
    %2816 = vmatprep.subr.bf16.mxu0 %v1310
    %2817 = vmatpush1.bf16.msra.mxu0 %v1309
    %2818 = vmatprep.subr.bf16.mxu0 %v1306
    %2819 = vmatpush1.bf16.msra.mxu0 %v1305
    %2820 = vmatprep.subr.bf16.mxu0 0
    %2821 = vmatpush2.bf16.msra.mxu0 0
    %2822 = vmatprep.subr.bf16.mxu0 0
    %2823 = vmatpush2.bf16.msra.mxu0 0
    %2824 = vmatprep.subr.bf16.mxu0 0
    %2825 = vmatpush2.bf16.msra.mxu0 0
    %2826 = vmatprep.subr.bf16.mxu0 0
    %2827 = vmatpush2.bf16.msra.mxu0 0
    %2828 = vmatprep.subr.bf16.mxu0 0
    %2829 = vmatpush2.bf16.msra.mxu0 0
    %2830 = vmatprep.subr.bf16.mxu0 0
    %2831 = vmatpush2.bf16.msra.mxu0 0
    %2832 = vmatprep.subr.bf16.mxu0 0
    %2833 = vmatpush2.bf16.msra.mxu0 0
    %2834 = vmatprep.subr.bf16.mxu0 0
    %2835 = vmatpush2.bf16.msra.mxu0 0
    %2836 = vmatprep.mubr.bf16.mxu0 0
    %2837 = vmatmul.mubr.bf16.gmra.mxu0 %v2803
    %v2838 = vpop.f32.mrf.mxu0
    %v2839 = vadd.f32 0.0, %v2838
    %v2840 = vpop.f32.mrf.mxu0
    %v2841 = vadd.f32 0.0, %v2840
    %v2842 = vpop.f32.mrf.mxu0
    %v2843 = vpop.f32.mrf.mxu0
    %2844 = vdwg.mxu0
    %2845 = vmatprep.subr.bf16.mxu0 %v1336
    %2846 = vmatpush1.bf16.msra.mxu0 %v1335
    %2847 = vmatprep.subr.bf16.mxu0 %v1332
    %2848 = vmatpush1.bf16.msra.mxu0 %v1331
    %2849 = vmatprep.subr.bf16.mxu0 %v1328
    %2850 = vmatpush1.bf16.msra.mxu0 %v1327
    %2851 = vmatprep.subr.bf16.mxu0 %v1324
    %2852 = vmatpush1.bf16.msra.mxu0 %v1323
    %2853 = vmatprep.subr.bf16.mxu0 %v1320
    %2854 = vmatpush1.bf16.msra.mxu0 %v1319
    %2855 = vmatprep.subr.bf16.mxu0 %v1316
    %2856 = vmatpush1.bf16.msra.mxu0 %v1315
    %2857 = vmatprep.subr.bf16.mxu0 %v1312
    %2858 = vmatpush1.bf16.msra.mxu0 %v1311
    %2859 = vmatprep.subr.bf16.mxu0 %v1308
    %2860 = vmatpush1.bf16.msra.mxu0 %v1307
    %2861 = vmatprep.subr.bf16.mxu0 0
    %2862 = vmatpush2.bf16.msra.mxu0 0
    %2863 = vmatprep.subr.bf16.mxu0 0
    %2864 = vmatpush2.bf16.msra.mxu0 0
    %2865 = vmatprep.subr.bf16.mxu0 0
    %2866 = vmatpush2.bf16.msra.mxu0 0
    %2867 = vmatprep.subr.bf16.mxu0 0
    %2868 = vmatpush2.bf16.msra.mxu0 0
    %2869 = vmatprep.subr.bf16.mxu0 0
    %2870 = vmatpush2.bf16.msra.mxu0 0
    %2871 = vmatprep.subr.bf16.mxu0 0
    %2872 = vmatpush2.bf16.msra.mxu0 0
    %2873 = vmatprep.subr.bf16.mxu0 0
    %2874 = vmatpush2.bf16.msra.mxu0 0
    %2875 = vmatprep.subr.bf16.mxu0 0
    %2876 = vmatpush2.bf16.msra.mxu0 0
    %2877 = vmatprep.mubr.bf16.mxu0 0
    %2878 = vmatmul.mubr.bf16.gmra.mxu0 %v2803
    %v2879 = vpop.f32.mrf.mxu0
    %v2880 = vadd.f32 0.0, %v2879
    %v2881 = vpop.f32.mrf.mxu0
    %v2882 = vadd.f32 0.0, %v2881
    %v2883 = vpop.f32.mrf.mxu0
    %v2884 = vpop.f32.mrf.mxu0
    %2885 = vdwg.mxu0
    %v2886 = vadd.f32 %v2799, %v2839
    %v2887 = vadd.f32 %v2800, %v2841
    %v2888 = vadd.f32 %v2801, %v2880
    %v2889 = vadd.f32 %v2802, %v2882
    %v2890 = vxor.u32 %v2886, 2147483648
    %v2891 = vmul.f32 %v2890, 1.442695
    %v2892 = vpow.pop %v2891
    %v2893 = vadd.f32 %v2892, 1.0
    %v2894 = vrcp.pop %v2893
    %v2895 = vmul.f32 1.0, %v2894
    %v2896 = vxor.u32 %v2887, 2147483648
    %v2897 = vmul.f32 %v2896, 1.442695
    %v2898 = vpow.pop %v2897
    %v2899 = vadd.f32 %v2898, 1.0
    %v2900 = vrcp.pop %v2899
    %v2901 = vmul.f32 1.0, %v2900
    %v2902 = vtanh.pop %v2888
    %v2903 = vxor.u32 %v2889, 2147483648
    %v2904 = vmul.f32 %v2903, 1.442695
    %v2905 = vpow.pop %v2904
    %v2906 = vadd.f32 %v2905, 1.0
    %v2907 = vrcp.pop %v2906
    %v2908 = vmul.f32 1.0, %v2907
    %v2909 = vmul.f32 %v2901, %v2673
    %v2910 = vmul.f32 %v2895, %v2902
    %v2911 = vadd.f32 %v2909, %v2910
    %v2912 = vtanh.pop %v2911
    %v2913 = vmul.f32 %v2908, %v2912
    %2914 = vst [vmem:[%s1599 + $0x8] sm:$0xff] %v2913
    %s2915 = scalar_lea.vmem [#allocation2], 112
    %v2916 = vld [vmem:[%s2915] sm:$0xff]
    %v2917 = vld [vmem:[%s2915 + $0x8] sm:$0xff]
    %v2918 = vunpack.c.l.bf16 %v2916
    %v2919 = vunpack.c.h.bf16 %v2916
    %v2920 = vunpack.c.l.bf16 %v2917
    %v2921 = vunpack.c.h.bf16 %v2917
    %v2922 = vpack.c.bf16 %v2794, %v2794
    %2923 = vmatprep.subr.bf16.mxu0 %v1056
    %2924 = vmatpush1.bf16.msra.mxu0 %v1055
    %2925 = vmatprep.subr.bf16.mxu0 %v1052
    %2926 = vmatpush1.bf16.msra.mxu0 %v1051
    %2927 = vmatprep.subr.bf16.mxu0 %v1048
    %2928 = vmatpush1.bf16.msra.mxu0 %v1047
    %2929 = vmatprep.subr.bf16.mxu0 %v1044
    %2930 = vmatpush1.bf16.msra.mxu0 %v1043
    %2931 = vmatprep.subr.bf16.mxu0 %v1040
    %2932 = vmatpush1.bf16.msra.mxu0 %v1039
    %2933 = vmatprep.subr.bf16.mxu0 %v1036
    %2934 = vmatpush1.bf16.msra.mxu0 %v1035
    %2935 = vmatprep.subr.bf16.mxu0 %v1032
    %2936 = vmatpush1.bf16.msra.mxu0 %v1031
    %2937 = vmatprep.subr.bf16.mxu0 %v1028
    %2938 = vmatpush1.bf16.msra.mxu0 %v1027
    %2939 = vmatprep.subr.bf16.mxu0 0
    %2940 = vmatpush2.bf16.msra.mxu0 0
    %2941 = vmatprep.subr.bf16.mxu0 0
    %2942 = vmatpush2.bf16.msra.mxu0 0
    %2943 = vmatprep.subr.bf16.mxu0 0
    %2944 = vmatpush2.bf16.msra.mxu0 0
    %2945 = vmatprep.subr.bf16.mxu0 0
    %2946 = vmatpush2.bf16.msra.mxu0 0
    %2947 = vmatprep.subr.bf16.mxu0 0
    %2948 = vmatpush2.bf16.msra.mxu0 0
    %2949 = vmatprep.subr.bf16.mxu0 0
    %2950 = vmatpush2.bf16.msra.mxu0 0
    %2951 = vmatprep.subr.bf16.mxu0 0
    %2952 = vmatpush2.bf16.msra.mxu0 0
    %2953 = vmatprep.subr.bf16.mxu0 0
    %2954 = vmatpush2.bf16.msra.mxu0 0
    %2955 = vmatprep.mubr.bf16.mxu0 0
    %2956 = vmatmul.mubr.bf16.gmra.mxu0 %v2922
    %v2957 = vpop.f32.mrf.mxu0
    %v2958 = vadd.f32 0.0, %v2957
    %v2959 = vpop.f32.mrf.mxu0
    %v2960 = vadd.f32 0.0, %v2959
    %v2961 = vpop.f32.mrf.mxu0
    %v2962 = vpop.f32.mrf.mxu0
    %2963 = vdwg.mxu0
    %2964 = vmatprep.subr.bf16.mxu0 %v1058
    %2965 = vmatpush1.bf16.msra.mxu0 %v1057
    %2966 = vmatprep.subr.bf16.mxu0 %v1054
    %2967 = vmatpush1.bf16.msra.mxu0 %v1053
    %2968 = vmatprep.subr.bf16.mxu0 %v1050
    %2969 = vmatpush1.bf16.msra.mxu0 %v1049
    %2970 = vmatprep.subr.bf16.mxu0 %v1046
    %2971 = vmatpush1.bf16.msra.mxu0 %v1045
    %2972 = vmatprep.subr.bf16.mxu0 %v1042
    %2973 = vmatpush1.bf16.msra.mxu0 %v1041
    %2974 = vmatprep.subr.bf16.mxu0 %v1038
    %2975 = vmatpush1.bf16.msra.mxu0 %v1037
    %2976 = vmatprep.subr.bf16.mxu0 %v1034
    %2977 = vmatpush1.bf16.msra.mxu0 %v1033
    %2978 = vmatprep.subr.bf16.mxu0 %v1030
    %2979 = vmatpush1.bf16.msra.mxu0 %v1029
    %2980 = vmatprep.subr.bf16.mxu0 0
    %2981 = vmatpush2.bf16.msra.mxu0 0
    %2982 = vmatprep.subr.bf16.mxu0 0
    %2983 = vmatpush2.bf16.msra.mxu0 0
    %2984 = vmatprep.subr.bf16.mxu0 0
    %2985 = vmatpush2.bf16.msra.mxu0 0
    %2986 = vmatprep.subr.bf16.mxu0 0
    %2987 = vmatpush2.bf16.msra.mxu0 0
    %2988 = vmatprep.subr.bf16.mxu0 0
    %2989 = vmatpush2.bf16.msra.mxu0 0
    %2990 = vmatprep.subr.bf16.mxu0 0
    %2991 = vmatpush2.bf16.msra.mxu0 0
    %2992 = vmatprep.subr.bf16.mxu0 0
    %2993 = vmatpush2.bf16.msra.mxu0 0
    %2994 = vmatprep.subr.bf16.mxu0 0
    %2995 = vmatpush2.bf16.msra.mxu0 0
    %2996 = vmatprep.mubr.bf16.mxu0 0
    %2997 = vmatmul.mubr.bf16.gmra.mxu0 %v2922
    %v2998 = vpop.f32.mrf.mxu0
    %v2999 = vadd.f32 0.0, %v2998
    %v3000 = vpop.f32.mrf.mxu0
    %v3001 = vadd.f32 0.0, %v3000
    %v3002 = vpop.f32.mrf.mxu0
    %v3003 = vpop.f32.mrf.mxu0
    %3004 = vdwg.mxu0
    %v3005 = vadd.f32 %v2918, %v2958
    %v3006 = vadd.f32 %v2919, %v2960
    %v3007 = vadd.f32 %v2920, %v2999
    %v3008 = vadd.f32 %v2921, %v3001
    %v3009 = vxor.u32 %v3005, 2147483648
    %v3010 = vmul.f32 %v3009, 1.442695
    %v3011 = vpow.pop %v3010
    %v3012 = vadd.f32 %v3011, 1.0
    %v3013 = vrcp.pop %v3012
    %v3014 = vmul.f32 1.0, %v3013
    %v3015 = vxor.u32 %v3006, 2147483648
    %v3016 = vmul.f32 %v3015, 1.442695
    %v3017 = vpow.pop %v3016
    %v3018 = vadd.f32 %v3017, 1.0
    %v3019 = vrcp.pop %v3018
    %v3020 = vmul.f32 1.0, %v3019
    %v3021 = vtanh.pop %v3007
    %v3022 = vxor.u32 %v3008, 2147483648
    %v3023 = vmul.f32 %v3022, 1.442695
    %v3024 = vpow.pop %v3023
    %v3025 = vadd.f32 %v3024, 1.0
    %v3026 = vrcp.pop %v3025
    %v3027 = vmul.f32 1.0, %v3026
    %v3028 = vmul.f32 %v3020, %v2792
    %v3029 = vmul.f32 %v3014, %v3021
    %v3030 = vadd.f32 %v3028, %v3029
    %v3031 = vtanh.pop %v3030
    %v3032 = vmul.f32 %v3027, %v3031
    %3033 = vst [vmem:[%s1479] sm:$0xff] %v3032
    %v3034 = vld [vmem:[#allocation3] sm:$0xff]
    %v3035 = vld [vmem:[#allocation3 + $0x8] sm:$0xff]
    %v3036 = vunpack.c.l.bf16 %v3034
    %v3037 = vunpack.c.h.bf16 %v3034
    %v3038 = vunpack.c.l.bf16 %v3035
    %v3039 = vunpack.c.h.bf16 %v3035
    %v3040 = vpack.c.bf16 %v2913, %v2913
    %3041 = vmatprep.subr.bf16.mxu0 %v1334
    %3042 = vmatpush1.bf16.msra.mxu0 %v1333
    %3043 = vmatprep.subr.bf16.mxu0 %v1330
    %3044 = vmatpush1.bf16.msra.mxu0 %v1329
    %3045 = vmatprep.subr.bf16.mxu0 %v1326
    %3046 = vmatpush1.bf16.msra.mxu0 %v1325
    %3047 = vmatprep.subr.bf16.mxu0 %v1322
    %3048 = vmatpush1.bf16.msra.mxu0 %v1321
    %3049 = vmatprep.subr.bf16.mxu0 %v1318
    %3050 = vmatpush1.bf16.msra.mxu0 %v1317
    %3051 = vmatprep.subr.bf16.mxu0 %v1314
    %3052 = vmatpush1.bf16.msra.mxu0 %v1313
    %3053 = vmatprep.subr.bf16.mxu0 %v1310
    %3054 = vmatpush1.bf16.msra.mxu0 %v1309
    %3055 = vmatprep.subr.bf16.mxu0 %v1306
    %3056 = vmatpush1.bf16.msra.mxu0 %v1305
    %3057 = vmatprep.subr.bf16.mxu0 0
    %3058 = vmatpush2.bf16.msra.mxu0 0
    %3059 = vmatprep.subr.bf16.mxu0 0
    %3060 = vmatpush2.bf16.msra.mxu0 0
    %3061 = vmatprep.subr.bf16.mxu0 0
    %3062 = vmatpush2.bf16.msra.mxu0 0
    %3063 = vmatprep.subr.bf16.mxu0 0
    %3064 = vmatpush2.bf16.msra.mxu0 0
    %3065 = vmatprep.subr.bf16.mxu0 0
    %3066 = vmatpush2.bf16.msra.mxu0 0
    %3067 = vmatprep.subr.bf16.mxu0 0
    %3068 = vmatpush2.bf16.msra.mxu0 0
    %3069 = vmatprep.subr.bf16.mxu0 0
    %3070 = vmatpush2.bf16.msra.mxu0 0
    %3071 = vmatprep.subr.bf16.mxu0 0
    %3072 = vmatpush2.bf16.msra.mxu0 0
    %3073 = vmatprep.mubr.bf16.mxu0 0
    %3074 = vmatmul.mubr.bf16.gmra.mxu0 %v3040
    %v3075 = vpop.f32.mrf.mxu0
    %v3076 = vadd.f32 0.0, %v3075
    %v3077 = vpop.f32.mrf.mxu0
    %v3078 = vadd.f32 0.0, %v3077
    %v3079 = vpop.f32.mrf.mxu0
    %v3080 = vpop.f32.mrf.mxu0
    %3081 = vdwg.mxu0
    %3082 = vmatprep.subr.bf16.mxu0 %v1336
    %3083 = vmatpush1.bf16.msra.mxu0 %v1335
    %3084 = vmatprep.subr.bf16.mxu0 %v1332
    %3085 = vmatpush1.bf16.msra.mxu0 %v1331
    %3086 = vmatprep.subr.bf16.mxu0 %v1328
    %3087 = vmatpush1.bf16.msra.mxu0 %v1327
    %3088 = vmatprep.subr.bf16.mxu0 %v1324
    %3089 = vmatpush1.bf16.msra.mxu0 %v1323
    %3090 = vmatprep.subr.bf16.mxu0 %v1320
    %3091 = vmatpush1.bf16.msra.mxu0 %v1319
    %3092 = vmatprep.subr.bf16.mxu0 %v1316
    %3093 = vmatpush1.bf16.msra.mxu0 %v1315
    %3094 = vmatprep.subr.bf16.mxu0 %v1312
    %3095 = vmatpush1.bf16.msra.mxu0 %v1311
    %3096 = vmatprep.subr.bf16.mxu0 %v1308
    %3097 = vmatpush1.bf16.msra.mxu0 %v1307
    %3098 = vmatprep.subr.bf16.mxu0 0
    %3099 = vmatpush2.bf16.msra.mxu0 0
    %3100 = vmatprep.subr.bf16.mxu0 0
    %3101 = vmatpush2.bf16.msra.mxu0 0
    %3102 = vmatprep.subr.bf16.mxu0 0
    %3103 = vmatpush2.bf16.msra.mxu0 0
    %3104 = vmatprep.subr.bf16.mxu0 0
    %3105 = vmatpush2.bf16.msra.mxu0 0
    %3106 = vmatprep.subr.bf16.mxu0 0
    %3107 = vmatpush2.bf16.msra.mxu0 0
    %3108 = vmatprep.subr.bf16.mxu0 0
    %3109 = vmatpush2.bf16.msra.mxu0 0
    %3110 = vmatprep.subr.bf16.mxu0 0
    %3111 = vmatpush2.bf16.msra.mxu0 0
    %3112 = vmatprep.subr.bf16.mxu0 0
    %3113 = vmatpush2.bf16.msra.mxu0 0
    %3114 = vmatprep.mubr.bf16.mxu0 0
    %3115 = vmatmul.mubr.bf16.gmra.mxu0 %v3040
    %v3116 = vpop.f32.mrf.mxu0
    %v3117 = vadd.f32 0.0, %v3116
    %v3118 = vpop.f32.mrf.mxu0
    %v3119 = vadd.f32 0.0, %v3118
    %v3120 = vpop.f32.mrf.mxu0
    %v3121 = vpop.f32.mrf.mxu0
    %3122 = vdwg.mxu0
    %v3123 = vadd.f32 %v3036, %v3076
    %v3124 = vadd.f32 %v3037, %v3078
    %v3125 = vadd.f32 %v3038, %v3117
    %v3126 = vadd.f32 %v3039, %v3119
    %v3127 = vxor.u32 %v3123, 2147483648
    %v3128 = vmul.f32 %v3127, 1.442695
    %v3129 = vpow.pop %v3128
    %v3130 = vadd.f32 %v3129, 1.0
    %v3131 = vrcp.pop %v3130
    %v3132 = vmul.f32 1.0, %v3131
    %v3133 = vxor.u32 %v3124, 2147483648
    %v3134 = vmul.f32 %v3133, 1.442695
    %v3135 = vpow.pop %v3134
    %v3136 = vadd.f32 %v3135, 1.0
    %v3137 = vrcp.pop %v3136
    %v3138 = vmul.f32 1.0, %v3137
    %v3139 = vtanh.pop %v3125
    %v3140 = vxor.u32 %v3126, 2147483648
    %v3141 = vmul.f32 %v3140, 1.442695
    %v3142 = vpow.pop %v3141
    %v3143 = vadd.f32 %v3142, 1.0
    %v3144 = vrcp.pop %v3143
    %v3145 = vmul.f32 1.0, %v3144
    %v3146 = vmul.f32 %v3138, %v2911
    %v3147 = vmul.f32 %v3132, %v3139
    %v3148 = vadd.f32 %v3146, %v3147
    %v3149 = vtanh.pop %v3148
    %v3150 = vmul.f32 %v3145, %v3149
    %3151 = vst [vmem:[#allocation4 + $0x8] sm:$0xff] %v3150
    %v3152 = vld [vmem:[#allocation4] sm:$0xff]
    %v3153 = vld [vmem:[#allocation4 + $0x8] sm:$0xff]
    %v3154 = vld [vmem:[#allocation4 + $0x10] sm:$0xff]
    %v3155 = vld [vmem:[#allocation4 + $0x18] sm:$0xff]
    %v3156 = vld [vmem:[#allocation4 + $0x20] sm:$0xff]
    %v3157 = vld [vmem:[#allocation4 + $0x28] sm:$0xff]
    %v3158 = vld [vmem:[#allocation4 + $0x30] sm:$0xff]
    %v3159 = vld [vmem:[#allocation4 + $0x38] sm:$0xff]
    %v3160 = vld [vmem:[#allocation4 + $0x40] sm:$0xff]
    %v3161 = vld [vmem:[#allocation4 + $0x48] sm:$0xff]
    %v3162 = vld [vmem:[#allocation4 + $0x50] sm:$0xff]
    %v3163 = vld [vmem:[#allocation4 + $0x58] sm:$0xff]
    %v3164 = vld [vmem:[#allocation4 + $0x60] sm:$0xff]
    %v3165 = vld [vmem:[#allocation4 + $0x68] sm:$0xff]
    %v3166 = vld [vmem:[#allocation4 + $0x70] sm:$0xff]
    %v3167 = vld [vmem:[#allocation4 + $0x78] sm:$0xff]
    %v3168 = vpack.c.bf16 %v3154, %v3152
    %v3169 = vpack.c.bf16 %v3155, %v3153
    %v3170 = vpack.c.bf16 %v3158, %v3156
    %v3171 = vpack.c.bf16 %v3159, %v3157
    %v3172 = vpack.c.bf16 %v3162, %v3160
    %v3173 = vpack.c.bf16 %v3163, %v3161
    %v3174 = vpack.c.bf16 %v3166, %v3164
    %v3175 = vpack.c.bf16 %v3167, %v3165
    %v3176 = vld [vmem:[#allocation14] sm:$0xf]
    %v3177 = vld [vmem:[#allocation14 + $0x4] sm:$0xf]
    %v3178 = vld [vmem:[#allocation14 + $0x8] sm:$0xf]
    %v3179 = vld [vmem:[#allocation14 + $0xc] sm:$0xf]
    %v3180 = vld [vmem:[#allocation14 + $0x10] sm:$0xf]
    %v3181 = vld [vmem:[#allocation14 + $0x14] sm:$0xf]
    %v3182 = vld [vmem:[#allocation14 + $0x18] sm:$0xf]
    %v3183 = vld [vmem:[#allocation14 + $0x1c] sm:$0xf]
    %v3184 = vld [vmem:[#allocation14 + $0x20] sm:$0xf]
    %v3185 = vld [vmem:[#allocation14 + $0x24] sm:$0xf]
    %v3186 = vld [vmem:[#allocation14 + $0x28] sm:$0xf]
    %v3187 = vld [vmem:[#allocation14 + $0x2c] sm:$0xf]
    %v3188 = vld [vmem:[#allocation14 + $0x30] sm:$0xf]
    %v3189 = vld [vmem:[#allocation14 + $0x34] sm:$0xf]
    %v3190 = vld [vmem:[#allocation14 + $0x38] sm:$0xf]
    %v3191 = vld [vmem:[#allocation14 + $0x3c] sm:$0xf]
    %v3192 = vld [vmem:[#allocation14 + $0x40] sm:$0xf]
    %v3193 = vld [vmem:[#allocation14 + $0x44] sm:$0xf]
    %v3194 = vld [vmem:[#allocation14 + $0x48] sm:$0xf]
    %v3195 = vld [vmem:[#allocation14 + $0x4c] sm:$0xf]
    %v3196 = vld [vmem:[#allocation14 + $0x50] sm:$0xf]
    %v3197 = vld [vmem:[#allocation14 + $0x54] sm:$0xf]
    %v3198 = vld [vmem:[#allocation14 + $0x58] sm:$0xf]
    %v3199 = vld [vmem:[#allocation14 + $0x5c] sm:$0xf]
    %v3200 = vld [vmem:[#allocation14 + $0x60] sm:$0xf]
    %v3201 = vld [vmem:[#allocation14 + $0x64] sm:$0xf]
    %v3202 = vld [vmem:[#allocation14 + $0x68] sm:$0xf]
    %v3203 = vld [vmem:[#allocation14 + $0x6c] sm:$0xf]
    %v3204 = vld [vmem:[#allocation14 + $0x70] sm:$0xf]
    %v3205 = vld [vmem:[#allocation14 + $0x74] sm:$0xf]
    %v3206 = vld [vmem:[#allocation14 + $0x78] sm:$0xf]
    %v3207 = vld [vmem:[#allocation14 + $0x7c] sm:$0xf]
    %v3208 = vld [vmem:[%s8] sm:$0x1]
    %v3210 = vlaneseq
    %v3211 = vshrl.u32 %v3210, 7
    %v3212 = vsub.s32 0, %v3211
    %v3213 = vrot.slane %v3208, %v3212
    %v3247 = vunpack.c.l.b16 %v3176
    %v3248 = vunpack.c.l.b16 %v3177
    %v3249 = vunpack.c.l.b16 %v3178
    %v3250 = vunpack.c.l.b16 %v3179
    %v3251 = vunpack.c.l.b16 %v3180
    %v3252 = vunpack.c.l.b16 %v3181
    %v3253 = vunpack.c.l.b16 %v3182
    %v3254 = vunpack.c.l.b16 %v3183
    %v3255 = vunpack.c.l.b16 %v3184
    %v3256 = vunpack.c.l.b16 %v3185
    %v3257 = vunpack.c.l.b16 %v3186
    %v3258 = vunpack.c.l.b16 %v3187
    %v3259 = vunpack.c.l.b16 %v3188
    %v3260 = vunpack.c.l.b16 %v3189
    %v3261 = vunpack.c.l.b16 %v3190
    %v3262 = vunpack.c.l.b16 %v3191
    %v3263 = vunpack.c.l.b16 %v3192
    %v3264 = vunpack.c.l.b16 %v3193
    %v3265 = vunpack.c.l.b16 %v3194
    %v3266 = vunpack.c.l.b16 %v3195
    %v3267 = vunpack.c.l.b16 %v3196
    %v3268 = vunpack.c.l.b16 %v3197
    %v3269 = vunpack.c.l.b16 %v3198
    %v3270 = vunpack.c.l.b16 %v3199
    %v3271 = vunpack.c.l.b16 %v3200
    %v3272 = vunpack.c.l.b16 %v3201
    %v3273 = vunpack.c.l.b16 %v3202
    %v3274 = vunpack.c.l.b16 %v3203
    %v3275 = vunpack.c.l.b16 %v3204
    %v3276 = vunpack.c.l.b16 %v3205
    %v3277 = vunpack.c.l.b16 %v3206
    %v3278 = vunpack.c.l.b16 %v3207
    %v3279 = vpack.c.b16 %v3248, %v3247
    %v3280 = vpack.c.b16 %v3250, %v3249
    %v3281 = vpack.c.b16 %v3252, %v3251
    %v3282 = vpack.c.b16 %v3254, %v3253
    %v3283 = vpack.c.b16 %v3256, %v3255
    %v3284 = vpack.c.b16 %v3258, %v3257
    %v3285 = vpack.c.b16 %v3260, %v3259
    %v3286 = vpack.c.b16 %v3262, %v3261
    %v3287 = vpack.c.b16 %v3264, %v3263
    %v3288 = vpack.c.b16 %v3266, %v3265
    %v3289 = vpack.c.b16 %v3268, %v3267
    %v3290 = vpack.c.b16 %v3270, %v3269
    %v3291 = vpack.c.b16 %v3272, %v3271
    %v3292 = vpack.c.b16 %v3274, %v3273
    %v3293 = vpack.c.b16 %v3276, %v3275
    %v3294 = vpack.c.b16 %v3278, %v3277
    %3311 = vmatprep.subr.bf16.mxu0 0
    %3312 = vmatpush1.bf16.msra.mxu0 %v3286
    %3313 = vmatprep.subr.bf16.mxu0 0
    %3314 = vmatpush1.bf16.msra.mxu0 %v3285
    %3315 = vmatprep.subr.bf16.mxu0 0
    %3316 = vmatpush1.bf16.msra.mxu0 %v3284
    %3317 = vmatprep.subr.bf16.mxu0 0
    %3318 = vmatpush1.bf16.msra.mxu0 %v3283
    %3319 = vmatprep.subr.bf16.mxu0 0
    %3320 = vmatpush1.bf16.msra.mxu0 %v3282
    %3321 = vmatprep.subr.bf16.mxu0 0
    %3322 = vmatpush1.bf16.msra.mxu0 %v3281
    %3323 = vmatprep.subr.bf16.mxu0 0
    %3324 = vmatpush1.bf16.msra.mxu0 %v3280
    %3325 = vmatprep.subr.bf16.mxu0 0
    %3326 = vmatpush1.bf16.msra.mxu0 %v3279
    %3327 = vmatprep.subr.bf16.mxu0 0
    %3328 = vmatpush2.bf16.msra.mxu0 %v3294
    %3329 = vmatprep.subr.bf16.mxu0 0
    %3330 = vmatpush2.bf16.msra.mxu0 %v3293
    %3331 = vmatprep.subr.bf16.mxu0 0
    %3332 = vmatpush2.bf16.msra.mxu0 %v3292
    %3333 = vmatprep.subr.bf16.mxu0 0
    %3334 = vmatpush2.bf16.msra.mxu0 %v3291
    %3335 = vmatprep.subr.bf16.mxu0 0
    %3336 = vmatpush2.bf16.msra.mxu0 %v3290
    %3337 = vmatprep.subr.bf16.mxu0 0
    %3338 = vmatpush2.bf16.msra.mxu0 %v3289
    %3339 = vmatprep.subr.bf16.mxu0 0
    %3340 = vmatpush2.bf16.msra.mxu0 %v3288
    %3341 = vmatprep.subr.bf16.mxu0 0
    %3342 = vmatpush2.bf16.msra.mxu0 %v3287
    %3343 = vmatprep.mubr.bf16.mxu0 %v3169
    %3344 = vmatmul.mubr.bf16.gmra.mxu0 %v3168
    %v3345 = vpop.f32.mrf.mxu0
    %v3346 = vadd.f32 %v3213, %v3345
    %v3347 = vpop.f32.mrf.mxu0
    %v3348 = vpop.f32.mrf.mxu0
    %v3349 = vadd.f32 %v3213, %v3348
    %v3350 = vpop.f32.mrf.mxu0
    %3351 = vmatprep.mubr.bf16.mxu0 %v3171
    %3352 = vmatmul.mubr.bf16.gmra.mxu0 %v3170
    %v3353 = vpop.f32.mrf.mxu0
    %v3354 = vadd.f32 %v3213, %v3353
    %v3355 = vpop.f32.mrf.mxu0
    %v3356 = vpop.f32.mrf.mxu0
    %v3357 = vadd.f32 %v3213, %v3356
    %v3358 = vpop.f32.mrf.mxu0
    %3359 = vmatprep.mubr.bf16.mxu0 %v3173
    %3360 = vmatmul.mubr.bf16.gmra.mxu0 %v3172
    %v3361 = vpop.f32.mrf.mxu0
    %v3362 = vadd.f32 %v3213, %v3361
    %v3363 = vpop.f32.mrf.mxu0
    %v3364 = vpop.f32.mrf.mxu0
    %v3365 = vadd.f32 %v3213, %v3364
    %v3366 = vpop.f32.mrf.mxu0
    %3367 = vmatprep.mubr.bf16.mxu0 %v3175
    %3368 = vmatmul.mubr.bf16.gmra.mxu0 %v3174
    %v3369 = vpop.f32.mrf.mxu0
    %v3370 = vadd.f32 %v3213, %v3369
    %v3371 = vpop.f32.mrf.mxu0
    %v3372 = vpop.f32.mrf.mxu0
    %v3373 = vadd.f32 %v3213, %v3372
    %v3374 = vpop.f32.mrf.mxu0
    %3375 = vdwg.mxu0
    %3376 = vst [vmem:[#allocation16] sm:$0xff] %v3346
    %3377 = vst [vmem:[#allocation16 + $0x8] sm:$0xff] %v3349
    %3378 = vst [vmem:[#allocation16 + $0x10] sm:$0xff] %v3354
    %3379 = vst [vmem:[#allocation16 + $0x18] sm:$0xff] %v3357
    %3380 = vst [vmem:[#allocation16 + $0x20] sm:$0xff] %v3362
    %3381 = vst [vmem:[#allocation16 + $0x28] sm:$0xff] %v3365
    %3382 = vst [vmem:[#allocation16 + $0x30] sm:$0xff] %v3370
    %3383 = vst [vmem:[#allocation16 + $0x38] sm:$0xff] %v3373
    // Predicated region
    $region62: #{tpu_custom_call.1} parent=1 // pred_check
      _
    $region63: #{tpu_custom_call.1} parent=1 // pred_check_branch
      %3385 = sbr.rel (0) target = $region65
    $region64: #{tpu_custom_call.1} parent=1 // pred_region
      %s3387 = ssub.s32 1024, 1024
      %3388 = vsyncadd [#allocation7], %s3387
      %s3389 = sshll.u32 [#allocation16], 4
      %s3390 = int_to_ptr.vmem [resolvable:$true] %s3389
      %3395 = dma.vmem_to_hbm [thread:$0]  %s3390, 1024, %s9, [#allocation7], 128, 128, 8
    $region65: #{tpu_custom_call.1} parent=1 // pred_fallthru
      _
    // Predicated region
    $region66: #{tpu_custom_call.1} parent=1 // pred_check
      _
    $region67: #{tpu_custom_call.1} parent=1 // pred_check_branch
      %3397 = sbr.rel (0) target = $region69
    $region68: #{tpu_custom_call.1} parent=1 // pred_region
      %3398 = dma.done [#allocation7], 1024
    $region69: #{tpu_custom_call.1} parent=1 // pred_fallthru
      _
    %3399 = vsyncpa [#allocation6], 1
    %3400 = vsyncpa [#allocation9], 1
    %3401 = vsyncpa [#allocation12], 1
    %3402 = vsyncpa [#allocation15], 1
    %3403 = vsyncpa [#allocation7], 1

</llo_original>
